<compile_context>
chip_gen: v6e
topology: v6e:2x2x1
jax: 0.10.0
libtpu: 0.0.40
codegen_flags: <defaults>
</compile_context>

<pallas_src>
import jax
import jax.numpy as jnp
from jax import lax
from jax.experimental import pallas as pl
from jax.experimental.pallas import tpu as pltpu


def _make_upscale_kernel(H, W, cin, out_ch, k):
    HW = H * W
    cout4 = out_ch * 4
    half = k // 2
    pad = half * (W + 1)  # left/right zero pad of the flattened spatial axis

    def kernel(x_ref, wb_ref, o_ref, padbuf_ref):
        # ---------------- in-kernel zero padding (no wrapper jnp.pad) -------
        padbuf_ref[...] = jnp.zeros(padbuf_ref.shape, jnp.float32)
        padbuf_ref[:, pad:pad + HW] = x_ref[0].astype(jnp.float32)

        # ---------------- im2col slab: shifted + masked taps ----------------
        wi = lax.broadcasted_iota(jnp.int32, (1, HW), 1) % W   # column index
        taps = []
        for dh in range(-half, half + 1):
            for dw in range(-half, half + 1):
                off = pad + dh * W + dw
                patch = padbuf_ref[:, off:off + HW]            # (cin, HW)
                if dw < 0:                                     # mask horizontal wrap
                    patch = jnp.where(wi >= -dw, patch, 0.0)
                elif dw > 0:
                    patch = jnp.where(wi < W - dw, patch, 0.0)
                taps.append(patch)
        taps.append(jnp.ones((1, HW), jnp.float32))            # bias row
        p = jnp.concatenate(taps, axis=0)                      # (k*k*cin + 1, HW)

        # ---------------- single MXU matmul, f32 accumulation ---------------
        acc = jnp.dot(wb_ref[...].astype(jnp.float32), p,
                      preferred_element_type=jnp.float32)      # (cout4, HW)
        acc = jnp.where(acc >= 0, acc, 0.1 * acc)              # LeakyReLU(0.1)

        # ---------------- fused pixel_shuffle(2) ----------------------------
        # acc rows are ordered r = (2*i + j) * out_ch + c  (wrapper reorders W).
        t3 = acc.T.reshape(H, W, cout4)                        # (H, W, cout4)
        g00 = t3[:, :, 0 * out_ch:1 * out_ch]                  # (i, j) = (0, 0)
        g01 = t3[:, :, 1 * out_ch:2 * out_ch]                  # (0, 1)
        g10 = t3[:, :, 2 * out_ch:3 * out_ch]                  # (1, 0)
        g11 = t3[:, :, 3 * out_ch:4 * out_ch]                  # (1, 1)
        top = jnp.stack([g00, g01], axis=2).reshape(H, 2 * W, out_ch)   # rows 2h
        bot = jnp.stack([g10, g11], axis=2).reshape(H, 2 * W, out_ch)   # rows 2h+1
        up = jnp.stack([top, bot], axis=1).reshape(2 * H, 2 * W, out_ch)
        # (2H*2W, out_ch) -> (out_ch, 2H*2W): lane-dense output store.
        o_ref[0] = up.reshape(4 * HW, out_ch).T.astype(o_ref.dtype)

    return kernel


def upscale_forward(x_nchw, weight_oihw, bias):
    """Upscale forward: (N, Cin, H, W) -> (N, out_ch, 2H, 2W) (NCHW in/out)."""
    N, cin, H, W = x_nchw.shape
    cout4, cin_w, k, k2 = weight_oihw.shape
    assert cin_w == cin and k == k2 and k % 2 == 1, "odd 'same' kernel expected"
    assert cout4 % 4 == 0
    out_ch = cout4 // 4
    HW = H * W

    # Reorder conv output channels so kernel rows are r = (2*i + j)*out_ch + c,
    # matching torch channel o = 4*c + 2*i + j (pixel_shuffle layout).
    g = jnp.arange(cout4) // out_ch
    c = jnp.arange(cout4) % out_ch
    o_idx = 4 * c + g
    w_r = weight_oihw[o_idx]                                   # (cout4, cin, k, k)
    b_r = bias[o_idx]                                          # (cout4,)

    # (cout4, cin, kh, kw) -> (cout4, k*k*cin); fold bias as last column.
    w_mat = jnp.transpose(w_r, (0, 2, 3, 1)).reshape(cout4, k * k * cin)
    wb = jnp.concatenate([w_mat, b_r[:, None]], axis=1).astype(jnp.float32)
    K1 = k * k * cin + 1

    x_flat = x_nchw.reshape(N, cin, HW)                        # free reshape
    pad = (k // 2) * (W + 1)
    kernel = _make_upscale_kernel(H, W, cin, out_ch, k)

    y_flat = pl.pallas_call(
        kernel,
        out_shape=jax.ShapeDtypeStruct((N, out_ch, 4 * HW), x_nchw.dtype),
        grid_spec=pltpu.PrefetchScalarGridSpec(
            num_scalar_prefetch=0,
            grid=(N,),
            in_specs=[
                pl.BlockSpec((1, cin, HW), lambda n: (n, 0, 0)),
                pl.BlockSpec((cout4, K1), lambda n: (0, 0)),
            ],
            out_specs=pl.BlockSpec((1, out_ch, 4 * HW), lambda n: (n, 0, 0)),
            scratch_shapes=[pltpu.VMEM((cin, HW + 2 * pad), jnp.float32)],
        ),
        compiler_params=pltpu.CompilerParams(
            dimension_semantics=("parallel",),
        ),
    )(x_flat, wb)

    # Free reshape: (N, out_ch, (2H)*(2W)) -> (N, out_ch, 2H, 2W).
    return y_flat.reshape(N, out_ch, 2 * H, 2 * W)


def _reference_forward(x_nchw, weight_oihw, bias):
    """Pure-JAX reference (lax conv) for a correctness sanity check."""
    y = lax.conv_general_dilated(
        x_nchw, weight_oihw,
        window_strides=(1, 1), padding="SAME",
        dimension_numbers=("NCHW", "OIHW", "NCHW"),
    ) + bias.reshape(1, -1, 1, 1)
    y = jnp.where(y >= 0, y, 0.1 * y)
    N, C4, H, W = y.shape
    C, r = C4 // 4, 2
    y = y.reshape(N, C, r, r, H, W)
    y = jnp.transpose(y, (0, 1, 4, 2, 5, 3)).reshape(N, C, H * r, W * r)
    return y


if __name__ == "__main__":
    key = jax.random.PRNGKey(0)
    k_x, k_w, k_b = jax.random.split(key, 3)

    N, in_ch, H, W = 2, 4, 16, 16
    out_ch, ksize = 4, 3

    x = jax.random.normal(k_x, (N, in_ch, H, W), dtype=jnp.float32)
    weight = 0.1 * jax.random.normal(
        k_w, (out_ch * 4, in_ch, ksize, ksize), dtype=jnp.float32)
    bias = 0.1 * jax.random.normal(k_b, (out_ch * 4,), dtype=jnp.float32)

    out = jax.block_until_ready(upscale_forward(x, weight, bias))
    ref = jax.block_until_ready(_reference_forward(x, weight, bias))

    assert out.shape == (N, out_ch, 2 * H, 2 * W), out.shape
    assert jnp.allclose(out, ref, atol=1e-4, rtol=1e-4), \
        float(jnp.max(jnp.abs(out - ref)))

    print("KERNEL_OK")
</pallas_src>

<mosaic_0001>
module attributes {stable_mosaic.version = 11 : i64} {
  func.func @kernel(%arg0: i32, %arg1: memref<1x4x256xf32, #tpu.memory_space<vmem>>, %arg2: memref<16x37xf32, #tpu.memory_space<vmem>>, %arg3: memref<1x4x1024xf32, #tpu.memory_space<vmem>>, %arg4: memref<4x290xf32, #tpu.memory_space<vmem>>) attributes {dimension_semantics = [#tpu.dimension_semantics<parallel>], iteration_bounds = array<i64: 2>, scalar_prefetch = 0 : i64, scratch_operands = 1 : i64, tpu.core_type = #tpu.core_type<tc>, window_params = [{transform_indices = @transform_0, window_bounds = array<i64: 1, 4, 256>}, {pipeline_mode = #tpu.pipeline_mode<synchronous>, transform_indices = @transform_1, window_bounds = array<i64: 16, 37>}, {transform_indices = @transform_2, window_bounds = array<i64: 1, 4, 1024>}]} {
    %cst = arith.constant 0.000000e+00 : f32
    %0 = vector.broadcast %cst : f32 to vector<4x290xf32>
    %c0 = arith.constant 0 : index
    %c0_0 = arith.constant 0 : index
    %1 = vector.load %arg4[%c0, %c0_0] : memref<4x290xf32, #tpu.memory_space<vmem>>, vector<4x290xf32>
    tpu.vector_store %arg4[%c0, %c0_0], %0 {strides = array<i32>} : memref<4x290xf32, #tpu.memory_space<vmem>>, vector<4x290xf32>,
    %c0_1 = arith.constant 0 : index
    %c0_2 = arith.constant 0 : index
    %c0_3 = arith.constant 0 : index
    %2 = vector.load %arg1[%c0_1, %c0_2, %c0_3] : memref<1x4x256xf32, #tpu.memory_space<vmem>>, vector<1x4x256xf32>
    %3 = vector.shape_cast %2 : vector<1x4x256xf32> to vector<4x256xf32>
    %c0_4 = arith.constant 0 : index
    %c17 = arith.constant 17 : index
    %4 = vector.load %arg4[%c0_4, %c17] : memref<4x290xf32, #tpu.memory_space<vmem>>, vector<4x256xf32>
    tpu.vector_store %arg4[%c0_4, %c17], %3 {strides = array<i32>} : memref<4x290xf32, #tpu.memory_space<vmem>>, vector<4x256xf32>,
    %5 = tpu.iota {dimensions = array<i32: 1>} : vector<1x256xi32>
    %c16_i32 = arith.constant 16 : i32
    %c0_i32 = arith.constant 0 : i32
    %6 = arith.cmpi eq, %c16_i32, %c0_i32 : i32
    %c1_i32 = arith.constant 1 : i32
    %7 = arith.select %6, %c1_i32, %c16_i32 : i32
    %8 = vector.broadcast %7 : i32 to vector<1x256xi32>
    %9 = arith.remsi %5, %8 : vector<1x256xi32>
    %c0_i32_5 = arith.constant 0 : i32
    %10 = vector.broadcast %c0_i32_5 : i32 to vector<1x256xi32>
    %11 = arith.cmpi ne, %9, %10 : vector<1x256xi32>
    %c0_i32_6 = arith.constant 0 : i32
    %12 = vector.broadcast %c0_i32_6 : i32 to vector<1x256xi32>
    %13 = arith.cmpi slt, %9, %12 : vector<1x256xi32>
    %c0_i32_7 = arith.constant 0 : i32
    %14 = arith.cmpi slt, %7, %c0_i32_7 : i32
    %15 = vector.broadcast %14 : i1 to vector<1x256xi1>
    %16 = vector.broadcast %15 : vector<1x256xi1> to vector<1x256xi1>
    %17 = arith.xori %13, %16 : vector<1x256xi1>
    %18 = arith.andi %17, %11 : vector<1x256xi1>
    %19 = vector.broadcast %7 : i32 to vector<1x256xi32>
    %20 = arith.addi %9, %19 : vector<1x256xi32>
    %21 = arith.select %18, %20, %9 : vector<1x256xi1>, vector<1x256xi32>
    %c0_8 = arith.constant 0 : index
    %c0_9 = arith.constant 0 : index
    %22 = vector.load %arg4[%c0_8, %c0_9] : memref<4x290xf32, #tpu.memory_space<vmem>>, vector<4x256xf32>
    %c1_i32_10 = arith.constant 1 : i32
    %23 = vector.broadcast %c1_i32_10 : i32 to vector<1x256xi32>
    %24 = arith.cmpi sge, %21, %23 : vector<1x256xi32>
    %cst_11 = arith.constant 0.000000e+00 : f32
    %25 = vector.shape_cast %24 : vector<1x256xi1> to vector<1x256xi1>
    %26 = vector.broadcast %25 : vector<1x256xi1> to vector<4x256xi1>
    %27 = vector.broadcast %cst_11 : f32 to vector<4x256xf32>
    %28 = arith.select %26, %22, %27 : vector<4x256xi1>, vector<4x256xf32>
    %c0_12 = arith.constant 0 : index
    %c1 = arith.constant 1 : index
    %29 = vector.load %arg4[%c0_12, %c1] : memref<4x290xf32, #tpu.memory_space<vmem>>, vector<4x256xf32>
    %c0_13 = arith.constant 0 : index
    %c2 = arith.constant 2 : index
    %30 = vector.load %arg4[%c0_13, %c2] : memref<4x290xf32, #tpu.memory_space<vmem>>, vector<4x256xf32>
    %c15_i32 = arith.constant 15 : i32
    %31 = vector.broadcast %c15_i32 : i32 to vector<1x256xi32>
    %32 = arith.cmpi slt, %21, %31 : vector<1x256xi32>
    %cst_14 = arith.constant 0.000000e+00 : f32
    %33 = vector.shape_cast %32 : vector<1x256xi1> to vector<1x256xi1>
    %34 = vector.broadcast %33 : vector<1x256xi1> to vector<4x256xi1>
    %35 = vector.broadcast %cst_14 : f32 to vector<4x256xf32>
    %36 = arith.select %34, %30, %35 : vector<4x256xi1>, vector<4x256xf32>
    %c0_15 = arith.constant 0 : index
    %c16 = arith.constant 16 : index
    %37 = vector.load %arg4[%c0_15, %c16] : memref<4x290xf32, #tpu.memory_space<vmem>>, vector<4x256xf32>
    %c1_i32_16 = arith.constant 1 : i32
    %38 = vector.broadcast %c1_i32_16 : i32 to vector<1x256xi32>
    %39 = arith.cmpi sge, %21, %38 : vector<1x256xi32>
    %cst_17 = arith.constant 0.000000e+00 : f32
    %40 = vector.shape_cast %39 : vector<1x256xi1> to vector<1x256xi1>
    %41 = vector.broadcast %40 : vector<1x256xi1> to vector<4x256xi1>
    %42 = vector.broadcast %cst_17 : f32 to vector<4x256xf32>
    %43 = arith.select %41, %37, %42 : vector<4x256xi1>, vector<4x256xf32>
    %c0_18 = arith.constant 0 : index
    %c17_19 = arith.constant 17 : index
    %44 = vector.load %arg4[%c0_18, %c17_19] : memref<4x290xf32, #tpu.memory_space<vmem>>, vector<4x256xf32>
    %c0_20 = arith.constant 0 : index
    %c18 = arith.constant 18 : index
    %45 = vector.load %arg4[%c0_20, %c18] : memref<4x290xf32, #tpu.memory_space<vmem>>, vector<4x256xf32>
    %c15_i32_21 = arith.constant 15 : i32
    %46 = vector.broadcast %c15_i32_21 : i32 to vector<1x256xi32>
    %47 = arith.cmpi slt, %21, %46 : vector<1x256xi32>
    %cst_22 = arith.constant 0.000000e+00 : f32
    %48 = vector.shape_cast %47 : vector<1x256xi1> to vector<1x256xi1>
    %49 = vector.broadcast %48 : vector<1x256xi1> to vector<4x256xi1>
    %50 = vector.broadcast %cst_22 : f32 to vector<4x256xf32>
    %51 = arith.select %49, %45, %50 : vector<4x256xi1>, vector<4x256xf32>
    %c0_23 = arith.constant 0 : index
    %c32 = arith.constant 32 : index
    %52 = vector.load %arg4[%c0_23, %c32] : memref<4x290xf32, #tpu.memory_space<vmem>>, vector<4x256xf32>
    %c1_i32_24 = arith.constant 1 : i32
    %53 = vector.broadcast %c1_i32_24 : i32 to vector<1x256xi32>
    %54 = arith.cmpi sge, %21, %53 : vector<1x256xi32>
    %cst_25 = arith.constant 0.000000e+00 : f32
    %55 = vector.shape_cast %54 : vector<1x256xi1> to vector<1x256xi1>
    %56 = vector.broadcast %55 : vector<1x256xi1> to vector<4x256xi1>
    %57 = vector.broadcast %cst_25 : f32 to vector<4x256xf32>
    %58 = arith.select %56, %52, %57 : vector<4x256xi1>, vector<4x256xf32>
    %c0_26 = arith.constant 0 : index
    %c33 = arith.constant 33 : index
    %59 = vector.load %arg4[%c0_26, %c33] : memref<4x290xf32, #tpu.memory_space<vmem>>, vector<4x256xf32>
    %c0_27 = arith.constant 0 : index
    %c34 = arith.constant 34 : index
    %60 = vector.load %arg4[%c0_27, %c34] : memref<4x290xf32, #tpu.memory_space<vmem>>, vector<4x256xf32>
    %c15_i32_28 = arith.constant 15 : i32
    %61 = vector.broadcast %c15_i32_28 : i32 to vector<1x256xi32>
    %62 = arith.cmpi slt, %21, %61 : vector<1x256xi32>
    %cst_29 = arith.constant 0.000000e+00 : f32
    %63 = vector.shape_cast %62 : vector<1x256xi1> to vector<1x256xi1>
    %64 = vector.broadcast %63 : vector<1x256xi1> to vector<4x256xi1>
    %65 = vector.broadcast %cst_29 : f32 to vector<4x256xf32>
    %66 = arith.select %64, %60, %65 : vector<4x256xi1>, vector<4x256xf32>
    %cst_30 = arith.constant 1.000000e+00 : f32
    %67 = vector.broadcast %cst_30 : f32 to vector<1x256xf32>
    %68 = tpu.concatenate %28, %29, %36, %43, %44, %51, %58, %59, %66, %67 in 0 : vector<4x256xf32>, vector<4x256xf32>, vector<4x256xf32>, vector<4x256xf32>, vector<4x256xf32>, vector<4x256xf32>, vector<4x256xf32>, vector<4x256xf32>, vector<4x256xf32>, vector<1x256xf32> -> vector<37x256xf32>
    %c0_31 = arith.constant 0 : index
    %c0_32 = arith.constant 0 : index
    %69 = vector.load %arg2[%c0_31, %c0_32] : memref<16x37xf32, #tpu.memory_space<vmem>>, vector<16x37xf32>
    %cst_33 = arith.constant dense<0.000000e+00> : vector<16x256xf32>
    %70 = tpu.matmul %69, %68, %cst_33 {dimension_numbers = #tpu.dot_dimension_numbers<[1], [0], [0], [1], [0, 0, 1, 1], [], []>} : vector<16x37xf32>, vector<37x256xf32>, vector<16x256xf32> -> vector<16x256xf32>
    %cst_34 = arith.constant 0.000000e+00 : f32
    %71 = vector.broadcast %cst_34 : f32 to vector<16x256xf32>
    %72 = arith.cmpf oge, %70, %71 : vector<16x256xf32>
    %cst_35 = arith.constant 1.000000e-01 : f32
    %73 = vector.broadcast %cst_35 : f32 to vector<16x256xf32>
    %74 = arith.mulf %73, %70 : vector<16x256xf32>
    %75 = arith.select %72, %70, %74 : vector<16x256xi1>, vector<16x256xf32>
    %76 = tpu.transpose %75, [1, 0] : vector<16x256xf32> -> vector<256x16xf32>
    %77 = vector.shape_cast %76 : vector<256x16xf32> to vector<16x16x16xf32>
    %78 = vector.extract_strided_slice %77 {offsets = [0, 0, 0], sizes = [16, 16, 4], strides = [1, 1, 1]} : vector<16x16x16xf32> to vector<16x16x4xf32>
    %79 = vector.extract_strided_slice %77 {offsets = [0, 0, 4], sizes = [16, 16, 4], strides = [1, 1, 1]} : vector<16x16x16xf32> to vector<16x16x4xf32>
    %80 = vector.extract_strided_slice %77 {offsets = [0, 0, 8], sizes = [16, 16, 4], strides = [1, 1, 1]} : vector<16x16x16xf32> to vector<16x16x4xf32>
    %81 = vector.extract_strided_slice %77 {offsets = [0, 0, 12], sizes = [16, 16, 4], strides = [1, 1, 1]} : vector<16x16x16xf32> to vector<16x16x4xf32>
    %82 = vector.shape_cast %78 : vector<16x16x4xf32> to vector<16x16x1x4xf32>
    %83 = vector.shape_cast %79 : vector<16x16x4xf32> to vector<16x16x1x4xf32>
    %84 = tpu.concatenate %82, %83 in 2 : vector<16x16x1x4xf32>, vector<16x16x1x4xf32> -> vector<16x16x2x4xf32>
    %85 = vector.shape_cast %84 : vector<16x16x2x4xf32> to vector<16x32x4xf32>
    %86 = vector.shape_cast %80 : vector<16x16x4xf32> to vector<16x16x1x4xf32>
    %87 = vector.shape_cast %81 : vector<16x16x4xf32> to vector<16x16x1x4xf32>
    %88 = tpu.concatenate %86, %87 in 2 : vector<16x16x1x4xf32>, vector<16x16x1x4xf32> -> vector<16x16x2x4xf32>
    %89 = vector.shape_cast %88 : vector<16x16x2x4xf32> to vector<16x32x4xf32>
    %90 = vector.shape_cast %85 : vector<16x32x4xf32> to vector<16x1x32x4xf32>
    %91 = vector.shape_cast %89 : vector<16x32x4xf32> to vector<16x1x32x4xf32>
    %92 = tpu.concatenate %90, %91 in 1 : vector<16x1x32x4xf32>, vector<16x1x32x4xf32> -> vector<16x2x32x4xf32>
    %93 = vector.shape_cast %92 : vector<16x2x32x4xf32> to vector<32x32x4xf32>
    %94 = vector.shape_cast %93 : vector<32x32x4xf32> to vector<1024x4xf32>
    %95 = tpu.transpose %94, [1, 0] : vector<1024x4xf32> -> vector<4x1024xf32>
    %c0_36 = arith.constant 0 : index
    %c0_37 = arith.constant 0 : index
    %c0_38 = arith.constant 0 : index
    %96 = vector.load %arg3[%c0_36, %c0_37, %c0_38] : memref<1x4x1024xf32, #tpu.memory_space<vmem>>, vector<1x4x1024xf32>
    %97 = vector.shape_cast %96 : vector<1x4x1024xf32> to vector<4x1024xf32>
    %98 = vector.shape_cast %95 : vector<4x1024xf32> to vector<1x4x1024xf32>
    tpu.vector_store %arg3[%c0_36, %c0_37, %c0_38], %98 {strides = array<i32>} : memref<1x4x1024xf32, #tpu.memory_space<vmem>>, vector<1x4x1024xf32>,
    return
  }
  func.func @transform_0(%arg0: i32) -> (i32, i32, i32) {
    %c0_i32 = arith.constant 0 : i32
    %c0_i32_0 = arith.constant 0 : i32
    %c0_i32_1 = arith.constant 0 : i32
    return %arg0, %c0_i32, %c0_i32_0 : i32, i32, i32
  }
  func.func @transform_1(%arg0: i32) -> (i32, i32) {
    %c0_i32 = arith.constant 0 : i32
    %c0_i32_0 = arith.constant 0 : i32
    %c0_i32_1 = arith.constant 0 : i32
    return %c0_i32, %c0_i32_0 : i32, i32
  }
  func.func @transform_2(%arg0: i32) -> (i32, i32, i32) {
    %c0_i32 = arith.constant 0 : i32
    %c0_i32_0 = arith.constant 0 : i32
    %c0_i32_1 = arith.constant 0 : i32
    return %arg0, %c0_i32, %c0_i32_0 : i32, i32, i32
  }
}

</mosaic_0001>

<llo_original>
// kernel: tpu_custom_call.1
$region0: #{tpu_custom_call.1}
  #allocation0 [shape = 'u32[]', space=smem, size = 0x4, offset = 0x4, fixed_abs, tag = 'smem constant byte address 0x4 - core index']
  #allocation1 [shape = 'u32[144,128]{1,0:T(1,128)}', space=vmem, size = 0x12000, scoped, tag = 'internal scratch']
  #allocation2 [shape = 'f32[4,290]{1,0:T(4,128)}', space=vmem, size = 0x1800, scoped, tag = 'scratch operand']
  %s0 = inlined_call_operand.hbm [shape: f32[2,4,256], index: 0, kind: input, shape index: {}]
  %s1 = inlined_call_operand.hbm [shape: f32[16,37], index: 1, kind: input, shape index: {}]
  %s2 = inlined_call_operand.hbm [shape: f32[2,4,1024], index: 2, kind: output, shape index: {}]
  %s3 = sld [smem:[#allocation0]]
  $region49: #{tpu_custom_call.1} parent=0
    _
  %s5 = ssub.s32 1, %s3
  %s6 = scalar_select 0, %s5, %s3
  $region1: #{tpu_custom_call.1} parent=0
    #allocation3 [shape = 'u8[8192]{0}', space=vmem, size = 0x2000, scoped, tag = 'input window, operand 0']
    #allocation4 [shape = 's32[2]{0}', space=sflag, size = 0x8, scoped, tag = 'scoped memory for tpu_custom_call.1']
    #allocation5 [shape = 's32[2]{0}', space=sflag, size = 0x8, scoped, tag = 'scoped memory for tpu_custom_call.1']
    #allocation6 [shape = 'u8[8192]{0}', space=vmem, size = 0x2000, scoped, tag = 'input window, operand 1, single buffered']
    #allocation7 [shape = 's32[1]{0}', space=sflag, size = 0x4, scoped, tag = 'scoped memory for tpu_custom_call.1']
    #allocation8 [shape = 'u8[32768]{0}', space=vmem, size = 0x8000, scoped, tag = 'output window, operand 0']
    %7 = vsyncpa [#allocation4], 0
    %s8 = scalar_lea.sflag [#allocation4], 1
    %9 = vsyncpa %s8, 0
    %10 = vsyncpa [#allocation7], 0
    %11 = vsyncpa [#allocation5], 0
    %s12 = scalar_lea.sflag [#allocation5], 1
    %13 = vsyncpa %s12, 0
    loop: start=0, step=1, limit=4
    $region2: #{tpu_custom_call.1} parent=1 // loop_pre_header
      _
    $region3: #{tpu_custom_call.1} parent=1 // loop_header
      %s15 = sphi 0, %s19
      %p16 = scmp.ge.s32.totalorder %s15, 4
      %s25 = sphi 0, %s27
      %s28 = sphi 0, %s25
      %s29 = sphi 0, %s28
      %s45 = sphi 0, %s29
      %s49 = sphi 0, %s49
      %s51 = sphi 0, %s49
      %s52 = sphi 0, %s51
      %s66 = sphi 0, %s52
      %s72 = sphi 0, %s74
      %s75 = sphi 0, %s72
      %s76 = sphi 0, %s75
      %s92 = sphi 0, %s76
    $region4: #{tpu_custom_call.1} parent=1 // loop_header_branch
      %18 = sbr.rel (%p16) target = $region8
    $region5: #{tpu_custom_call.1} parent=1 // loop_body
      %s20 = ssub.s32 %s15, 1
      %s21 = ssub.s32 %s15, 2
      %s22 = sadd.s32 %s15, 1
      %s23 = ssub.s32 %s15, %s22
      %p24 = scmp.eq.s32.totalorder %s23, 0
      %s26 = sadd.s32 %s25, 1
      %s27 = scalar_select %p24, %s25, %s26
      %p30 = pneg %p24
      %p31 = scmp.eq.s32.totalorder %s15, 1
      %p32 = por %p30, %p31
      %p33 = scmp.ne.s32.totalorder %s25, %s28
      %p34 = scmp.eq.s32.totalorder %s15, 0
      %p35 = por %p33, %p34
      %p36 = scmp.ne.s32.totalorder %s25, %s28
      %p37 = scmp.eq.s32.totalorder %s20, 1
      %p38 = por %p36, %p37
      %p39 = scmp.ne.s32.totalorder %s28, %s29
      %p40 = scmp.eq.s32.totalorder %s20, 0
      %p41 = por %p39, %p40
      %p42 = scmp.ne.s32.totalorder %s28, %s29
      %p43 = scmp.eq.s32.totalorder %s21, 1
      %p44 = por %p42, %p43
      %p46 = scmp.ne.s32.totalorder %s29, %s45
      %p47 = scmp.eq.s32.totalorder %s21, 0
      %p48 = por %p46, %p47
      %s50 = sadd.s32 %s49, 1
      %p53 = scmp.eq.s32.totalorder %s15, 1
      %p54 = scmp.ne.s32.totalorder %s49, %s51
      %p55 = scmp.eq.s32.totalorder %s15, 0
      %p56 = por %p54, %p55
      %p57 = scmp.ne.s32.totalorder %s49, %s51
      %p58 = scmp.eq.s32.totalorder %s20, 1
      %p59 = por %p57, %p58
      %p60 = scmp.ne.s32.totalorder %s51, %s52
      %p61 = scmp.eq.s32.totalorder %s20, 0
      %p62 = por %p60, %p61
      %p63 = scmp.ne.s32.totalorder %s51, %s52
      %p64 = scmp.eq.s32.totalorder %s21, 1
      %p65 = por %p63, %p64
      %p67 = scmp.ne.s32.totalorder %s52, %s66
      %p68 = scmp.eq.s32.totalorder %s21, 0
      %p69 = por %p67, %p68
      %s70 = ssub.s32 %s15, %s22
      %p71 = scmp.eq.s32.totalorder %s70, 0
      %s73 = sadd.s32 %s72, 1
      %s74 = scalar_select %p71, %s72, %s73
      %p77 = pneg %p71
      %p78 = scmp.eq.s32.totalorder %s15, 1
      %p79 = por %p77, %p78
      %p80 = scmp.ne.s32.totalorder %s72, %s75
      %p81 = scmp.eq.s32.totalorder %s15, 0
      %p82 = por %p80, %p81
      %p83 = scmp.ne.s32.totalorder %s72, %s75
      %p84 = scmp.eq.s32.totalorder %s20, 1
      %p85 = por %p83, %p84
      %p86 = scmp.ne.s32.totalorder %s75, %s76
      %p87 = scmp.eq.s32.totalorder %s20, 0
      %p88 = por %p86, %p87
      %p89 = scmp.ne.s32.totalorder %s75, %s76
      %p90 = scmp.eq.s32.totalorder %s21, 1
      %p91 = por %p89, %p90
      %p93 = scmp.ne.s32.totalorder %s76, %s92
      %p94 = scmp.eq.s32.totalorder %s21, 0
      %p95 = por %p93, %p94
      %p96 = scmp.le.s32.totalorder 1, %s15
      %p97 = scmp.lt.s32.totalorder %s15, 3
      %p98 = pnand %p96, %p97
      %p99 = pneg %p98
      // Predicated region
      $region9: #{tpu_custom_call.1} parent=5 // pred_check
        _
      $region10: #{tpu_custom_call.1} parent=5 // pred_check_branch
        %101 = sbr.rel (%p98) target = $region12
      $region11: #{tpu_custom_call.1} parent=5 // pred_region
        %s102 = ssub.s32 %s15, 1
        // Predicated region
        $region13: #{tpu_custom_call.1} parent=11 // pred_check
          %p103 = pneg %p62
        $region14: #{tpu_custom_call.1} parent=11 // pred_check_branch
          %105 = sbr.rel (%p103) target = $region16
        $region15: #{tpu_custom_call.1} parent=11 // pred_region
          %s107 = ssub.s32 256, 256
          %108 = vsyncadd [#allocation7], %s107
          %s109 = sshll.u32 [#allocation6], 4
          %s110 = int_to_ptr.vmem [resolvable:$true] %s109
          %115 = dma.hbm_to_vmem [thread:$0]  %s1, 256, %s110, [#allocation7], 128, 128, 8
        $region16: #{tpu_custom_call.1} parent=11 // pred_fallthru
          _
      $region12: #{tpu_custom_call.1} parent=5 // pred_fallthru
        _
      %p116 = scmp.lt.s32.totalorder %s15, 2
      // Predicated region
      $region17: #{tpu_custom_call.1} parent=5 // pred_check
        %p117 = pneg %p116
      $region18: #{tpu_custom_call.1} parent=5 // pred_check_branch
        %119 = sbr.rel (%p117) target = $region20
      $region19: #{tpu_custom_call.1} parent=5 // pred_region
        // Predicated region
        $region21: #{tpu_custom_call.1} parent=19 // pred_check
          %p120 = pneg %p35
        $region22: #{tpu_custom_call.1} parent=19 // pred_check_branch
          %122 = sbr.rel (%p120) target = $region24
        $region23: #{tpu_custom_call.1} parent=19 // pred_region
          %s123 = sand.u32 %s25, 1
          %s124 = scalar_lea.sflag [#allocation4], %s123
          %s125 = sand.u32 %s25, 1
          %s126 = smul.addr %s125, 8
          %s127 = scalar_lea.vmem [#allocation3], %s126
          %s129 = ssub.s32 128, 128
          %130 = vsyncadd %s124, %s129
          %s131 = smul.addr %s15, 2
          %s132 = smul.addr %s131, 64
          %s133 = scalar_lea.hbm %s0, %s132
          %s135 = sshll.u32 %s127, 4
          %s136 = int_to_ptr.vmem [resolvable:$true] %s135
          %138 = dma.hbm_to_vmem [thread:$0]  %s133, 128, %s136, %s124
        $region24: #{tpu_custom_call.1} parent=19 // pred_fallthru
          _
      $region20: #{tpu_custom_call.1} parent=5 // pred_fallthru
        _
      %p139 = scmp.le.s32.totalorder 1, %s15
      %p140 = scmp.lt.s32.totalorder %s15, 3
      %p141 = pnand %p139, %p140
      %p142 = pneg %p141
      // Predicated region
      $region25: #{tpu_custom_call.1} parent=5 // pred_check
        _
      $region26: #{tpu_custom_call.1} parent=5 // pred_check_branch
        %144 = sbr.rel (%p141) target = $region28
      $region27: #{tpu_custom_call.1} parent=5 // pred_region
        %s145 = ssub.s32 %s15, 1
        %s146 = sand.u32 %s28, 1
        %s147 = scalar_lea.sflag [#allocation4], %s146
        %s148 = sand.u32 %s28, 1
        %s149 = smul.addr %s148, 8
        %s150 = scalar_lea.vmem [#allocation3], %s149
        // Predicated region
        $region29: #{tpu_custom_call.1} parent=27 // pred_check
          %p151 = pneg %p41
        $region30: #{tpu_custom_call.1} parent=27 // pred_check_branch
          %153 = sbr.rel (%p151) target = $region32
        $region31: #{tpu_custom_call.1} parent=27 // pred_region
          %154 = dma.done %s147, 128
        $region32: #{tpu_custom_call.1} parent=27 // pred_fallthru
          _
        // Predicated region
        $region33: #{tpu_custom_call.1} parent=27 // pred_check
          %p155 = pneg %p62
        $region34: #{tpu_custom_call.1} parent=27 // pred_check_branch
          %157 = sbr.rel (%p155) target = $region36
        $region35: #{tpu_custom_call.1} parent=27 // pred_region
          %158 = dma.done [#allocation7], 256
        $region36: #{tpu_custom_call.1} parent=27 // pred_fallthru
          _
        %s159 = sand.u32 %s28, 1
        %s160 = scalar_lea.sflag [#allocation4], %s159
        %s161 = sand.u32 %s28, 1
        %s162 = smul.addr %s161, 8
        %s163 = scalar_lea.vmem [#allocation3], %s162
        %p164 = pneg %p41
        %p165 = pneg %p38
        %p166 = pneg %p62
        %p167 = pneg %p59
        %p168 = pneg %p88
        %p169 = pneg %p85
        %s170 = sand.u32 %s75, 1
        %s171 = scalar_lea.sflag [#allocation5], %s170
        %s172 = sand.u32 %s75, 1
        %s173 = smul.addr %s172, 32
        %s174 = scalar_lea.vmem [#allocation8], %s173
        %175 = vst [vmem:[#allocation2] sm:$0xff] 0.0
        %vm176 = vcmask 273408
        %177 = vst.msk [vmem:[#allocation2 + $0x8] sm:$0xf] %vm176, 0.0
        %v178 = vld [vmem:[%s150] sm:$0xff]
        %180 = vrot.lane.b32.xlu0 %v178, 17
        %v181 = vpop.permute.xlu0 %180
        %v182 = vrot.slane %v181, 4
        %vm183 = vcmask 138240
        %v184 = vsel %vm183, %v182, %v181
        %vm187 = vcmask 1043592
        %vm188 = vcmask 1047556
        %vm189 = vmor %vm188, %vm187
        %190 = vst.msk [vmem:[#allocation2] sm:$0xff] %vm189, %v184
        %vm191 = vcmask 134144
        %192 = vst.msk [vmem:[#allocation2 + $0x8] sm:$0xf] %vm191, %v182
        %v193 = vlaneseq
        %v194 = vand.u32 %v193, 127
        %v195 = vadd.s32 %v194, 128
        %vm196 = vcmp.lt.s32.totalorder %v194, 0
        %v197 = vsub.s32 0, %v194
        %v198 = vsel %vm196, %v197, %v194
        %v199 = vshrl.u32 %v198, 4
        %v200 = vand.u32 %v198, 15
        %v201 = vsub.s32 0, %v200
        %v202 = vsel %vm196, %v201, %v200
        %vm203 = vcmp.lt.s32.totalorder %v195, 0
        %v204 = vsub.s32 0, %v195
        %v205 = vsel %vm203, %v204, %v195
        %v206 = vshrl.u32 %v205, 4
        %v207 = vand.u32 %v205, 15
        %v208 = vsub.s32 0, %v207
        %v209 = vsel %vm203, %v208, %v207
        %vm210 = vcmp.ne.s32.totalorder %v202, 0
        %vm211 = vcmp.ne.s32.totalorder %v209, 0
        %vm212 = vcmp.lt.s32.totalorder %v202, 0
        %vm213 = vcmp.lt.s32.totalorder %v209, 0
        %vm214 = vmand %vm212, %vm210
        %vm215 = vmand %vm213, %vm211
        %v216 = vadd.s32 %v202, 16
        %v217 = vadd.s32 %v209, 16
        %v218 = vsel %vm214, %v216, %v202
        %v219 = vsel %vm215, %v217, %v209
        %v220 = vld [vmem:[#allocation2] sm:$0xff]
        %vm221 = vcmp.ge.s32.totalorder %v218, 1
        %vm222 = vcmp.ge.s32.totalorder %v219, 1
        %v223 = vsel %vm221, 1, 0
        %v224 = vsel %vm222, 1, 0
        %vm225 = vcmp.eq.s32.totalorder %v223, 1
        %vm226 = vcmp.eq.s32.totalorder %v224, 1
        %v228 = vcombine.high %v220, %v220
        %v230 = vsel %vm225, %v220, 0.0
        %v231 = vsel %vm226, %v228, 0.0
        %v232 = vld [vmem:[#allocation2 + $0x8] sm:$0xf]
        %vm233 = vcmp.lt.s32.totalorder %v218, 15
        %vm234 = vcmp.lt.s32.totalorder %v219, 15
        %v235 = vsel %vm233, 1, 0
        %v236 = vsel %vm234, 1, 0
        %vm237 = vcmp.eq.s32.totalorder %v235, 1
        %vm238 = vcmp.eq.s32.totalorder %v236, 1
        %240 = vrot.lane.b32.xlu0 %v220, 126
        %v241 = vpop.permute.xlu0 %240
        %242 = vrot.lane.b32.xlu0 %v228, 126
        %v243 = vpop.permute.xlu0 %242
        %244 = vrot.lane.b32.xlu0 %v232, 126
        %v245 = vpop.permute.xlu0 %244
        %vm246 = vcmask 1031168
        %v247 = vsel %vm246, %v241, %v243
        %v248 = vsel %vm246, %v243, %v245
        %v251 = vsel %vm237, %v247, 0.0
        %v252 = vsel %vm238, %v248, 0.0
        %253 = vrot.lane.b32.xlu0 %v220, 112
        %v254 = vpop.permute.xlu0 %253
        %255 = vrot.lane.b32.xlu0 %v228, 112
        %v256 = vpop.permute.xlu0 %255
        %257 = vrot.lane.b32.xlu0 %v232, 112
        %v258 = vpop.permute.xlu0 %257
        %vm259 = vcmask 916480
        %v260 = vsel %vm259, %v254, %v256
        %v261 = vsel %vm259, %v256, %v258
        %v264 = vsel %vm225, %v260, 0.0
        %v265 = vsel %vm226, %v261, 0.0
        %266 = vrot.lane.b32.xlu0 %v220, 110
        %v267 = vpop.permute.xlu0 %266
        %268 = vrot.lane.b32.xlu0 %v228, 110
        %v269 = vpop.permute.xlu0 %268
        %270 = vrot.lane.b32.xlu0 %v232, 110
        %v271 = vpop.permute.xlu0 %270
        %vm272 = vcmask 900096
        %v273 = vsel %vm272, %v267, %v269
        %v274 = vsel %vm272, %v269, %v271
        %v277 = vsel %vm237, %v273, 0.0
        %v278 = vsel %vm238, %v274, 0.0
        %279 = vrot.lane.b32.xlu0 %v220, 96
        %v280 = vpop.permute.xlu0 %279
        %281 = vrot.lane.b32.xlu0 %v228, 96
        %v282 = vpop.permute.xlu0 %281
        %283 = vrot.lane.b32.xlu0 %v232, 96
        %v284 = vpop.permute.xlu0 %283
        %vm285 = vcmask 785408
        %v286 = vsel %vm285, %v280, %v282
        %v287 = vsel %vm285, %v282, %v284
        %v290 = vsel %vm225, %v286, 0.0
        %v291 = vsel %vm226, %v287, 0.0
        %292 = vrot.lane.b32.xlu0 %v220, 94
        %v293 = vpop.permute.xlu0 %292
        %294 = vrot.lane.b32.xlu0 %v228, 94
        %v295 = vpop.permute.xlu0 %294
        %296 = vrot.lane.b32.xlu0 %v232, 94
        %v297 = vpop.permute.xlu0 %296
        %vm298 = vcmask 769024
        %v299 = vsel %vm298, %v293, %v295
        %v300 = vsel %vm298, %v295, %v297
        %v303 = vsel %vm237, %v299, 0.0
        %v304 = vsel %vm238, %v300, 0.0
        %v305 = vcombine.low %v220, %v220
        %v306 = vcombine.low %v232, %v232
        %307 = vrot.lane.b32.xlu0 %v305, 127
        %v308 = vpop.permute.xlu0 %307
        %309 = vrot.lane.b32.xlu0 %v220, 127
        %v310 = vpop.permute.xlu0 %309
        %311 = vrot.lane.b32.xlu0 %v306, 127
        %v312 = vpop.permute.xlu0 %311
        %vm313 = vcmask 1039360
        %v314 = vsel %vm313, %v308, %v310
        %v315 = vsel %vm313, %v310, %v312
        %v320 = vrot.slane %v264, 4
        %v321 = vrot.slane %v265, 4
        %324 = vrot.lane.b32.xlu0 %v220, 111
        %v325 = vpop.permute.xlu0 %324
        %326 = vrot.lane.b32.xlu0 %v228, 111
        %v327 = vpop.permute.xlu0 %326
        %328 = vrot.lane.b32.xlu0 %v232, 111
        %v329 = vpop.permute.xlu0 %328
        %vm330 = vcmask 908288
        %v331 = vsel %vm330, %v325, %v327
        %v332 = vsel %vm330, %v327, %v329
        %v337 = vrot.slane %v277, 4
        %v338 = vrot.slane %v278, 4
        %341 = vrot.lane.b32.xlu0 %v305, 95
        %v342 = vpop.permute.xlu0 %341
        %343 = vrot.lane.b32.xlu0 %v220, 95
        %v344 = vpop.permute.xlu0 %343
        %345 = vrot.lane.b32.xlu0 %v306, 95
        %v346 = vpop.permute.xlu0 %345
        %vm347 = vcmask 777216
        %v348 = vsel %vm347, %v342, %v344
        %v349 = vsel %vm347, %v344, %v346
        %vm352 = vcmask 1043456
        %v353 = vsel %vm352, %v230, %v314
        %v354 = vsel %vm352, %v231, %v315
        %v355 = vsel %vm352, %v251, %v320
        %v356 = vsel %vm352, %v252, %v321
        %v357 = vsel %vm352, %v331, %v337
        %v358 = vsel %vm352, %v332, %v338
        %v359 = vsel %vm352, %v290, %v348
        %v360 = vsel %vm352, %v291, %v349
        %v361 = vsel %vm352, %v303, 1.0
        %v362 = vsel %vm352, %v304, 1.0
        %v363 = vld [vmem:[#allocation6] sm:$0xff]
        %v364 = vld [vmem:[#allocation6 + $0x8] sm:$0xff]
        %vm365 = vcmask 302080
        %v367 = vsel %vm365, %v363, 0
        %v370 = vsel %vm365, %v364, 0
        %vm372 = vcmask 1044480
        %v374 = vsel %vm372, %v361, 0
        %v377 = vsel %vm372, %v362, 0
        %379 = vmatprep.subr.mxu0 0.0
        %380 = vmatpush1.msra.mxu0 0.0
        %381 = vmatprep.subr.mxu0 0.0
        %382 = vmatpush1.msra.mxu0 0.0
        %383 = vmatprep.subr.mxu0 0.0
        %384 = vmatpush1.msra.mxu0 0.0
        %385 = vmatprep.subr.mxu0 0.0
        %386 = vmatpush1.msra.mxu0 0.0
        %387 = vmatprep.subr.mxu0 0.0
        %388 = vmatpush1.msra.mxu0 0.0
        %389 = vmatprep.subr.mxu0 0.0
        %390 = vmatpush1.msra.mxu0 0.0
        %391 = vmatprep.subr.mxu0 0.0
        %392 = vmatpush1.msra.mxu0 0.0
        %393 = vmatprep.subr.mxu0 0.0
        %394 = vmatpush1.msra.mxu0 0.0
        %395 = vmatprep.subr.mxu0 0.0
        %396 = vmatpush1.msra.mxu0 0.0
        %397 = vmatprep.subr.mxu0 0.0
        %398 = vmatpush1.msra.mxu0 0.0
        %399 = vmatprep.subr.mxu0 0.0
        %400 = vmatpush1.msra.mxu0 0.0
        %401 = vmatprep.subr.mxu0 %v377
        %402 = vmatpush1.msra.mxu0 %v374
        %403 = vmatprep.subr.mxu0 %v360
        %404 = vmatpush1.msra.mxu0 %v359
        %405 = vmatprep.subr.mxu0 %v358
        %406 = vmatpush1.msra.mxu0 %v357
        %407 = vmatprep.subr.mxu0 %v356
        %408 = vmatpush1.msra.mxu0 %v355
        %409 = vmatprep.subr.mxu0 %v354
        %410 = vmatpush1.msra.mxu0 %v353
        %411 = vmatprep.subr.mxu0 0.0
        %412 = vmatpush2.msra.mxu0 0.0
        %413 = vmatprep.subr.mxu0 0.0
        %414 = vmatpush2.msra.mxu0 0.0
        %415 = vmatprep.subr.mxu0 0.0
        %416 = vmatpush2.msra.mxu0 0.0
        %417 = vmatprep.subr.mxu0 0.0
        %418 = vmatpush2.msra.mxu0 0.0
        %419 = vmatprep.subr.mxu0 0.0
        %420 = vmatpush2.msra.mxu0 0.0
        %421 = vmatprep.subr.mxu0 0.0
        %422 = vmatpush2.msra.mxu0 0.0
        %423 = vmatprep.subr.mxu0 0.0
        %424 = vmatpush2.msra.mxu0 0.0
        %425 = vmatprep.subr.mxu0 0.0
        %426 = vmatpush2.msra.mxu0 0.0
        %427 = vmatprep.subr.mxu0 0.0
        %428 = vmatpush2.msra.mxu0 0.0
        %429 = vmatprep.subr.mxu0 0.0
        %430 = vmatpush2.msra.mxu0 0.0
        %431 = vmatprep.subr.mxu0 0.0
        %432 = vmatpush2.msra.mxu0 0.0
        %433 = vmatprep.subr.mxu0 0.0
        %434 = vmatpush2.msra.mxu0 0.0
        %435 = vmatprep.subr.mxu0 0.0
        %436 = vmatpush2.msra.mxu0 0.0
        %437 = vmatprep.subr.mxu0 0.0
        %438 = vmatpush2.msra.mxu0 0.0
        %439 = vmatprep.subr.mxu0 0.0
        %440 = vmatpush2.msra.mxu0 0.0
        %441 = vmatprep.subr.mxu0 0.0
        %442 = vmatpush2.msra.mxu0 0.0
        %443 = vmatprep.mubr.f32.mxu0 0.0
        %444 = vmatmul.mubr.f32.gmra.mxu0 %v367
        %v445 = vpop.f32.mrf.mxu0
        %v446 = vadd.f32 0.0, %v445
        %v447 = vpop.f32.mrf.mxu0
        %v448 = vadd.f32 0.0, %v447
        %449 = vmatprep.mubr.f32.mxu0 0.0
        %450 = vmatmul.mubr.f32.gmra.mxu0 %v370
        %v451 = vpop.f32.mrf.mxu0
        %v452 = vadd.f32 0.0, %v451
        %v453 = vpop.f32.mrf.mxu0
        %v454 = vadd.f32 0.0, %v453
        %455 = vdwg.mxu0
        %vm456 = vcmp.ge.f32.partialorder %v446, 0.0
        %vm457 = vcmp.ge.f32.partialorder %v448, 0.0
        %vm458 = vcmp.ge.f32.partialorder %v452, 0.0
        %vm459 = vcmp.ge.f32.partialorder %v454, 0.0
        %v460 = vmul.f32 %v446, 0.1
        %v461 = vmul.f32 %v448, 0.1
        %v462 = vmul.f32 %v452, 0.1
        %v463 = vmul.f32 %v454, 0.1
        %v464 = vsel %vm456, %v446, %v460
        %v465 = vsel %vm457, %v448, %v461
        %v466 = vsel %vm458, %v452, %v462
        %v467 = vsel %vm459, %v454, %v463
        %468 = vxpose.xlu0.b32.start [1/16] %v464, 128
        %469 = vxpose.xlu0.b32.cont [2/16] %v466, 128
        %470 = vxpose.xlu0.b32.cont [3/16] 0.0, 128
        %471 = vxpose.xlu0.b32.cont [4/16] 0.0, 128
        %472 = vxpose.xlu0.b32.cont [5/16] 0.0, 128
        %473 = vxpose.xlu0.b32.cont [6/16] 0.0, 128
        %474 = vxpose.xlu0.b32.cont [7/16] 0.0, 128
        %475 = vxpose.xlu0.b32.cont [8/16] 0.0, 128
        %476 = vxpose.xlu0.b32.cont [9/16] 0.0, 128
        %477 = vxpose.xlu0.b32.cont [10/16] 0.0, 128
        %478 = vxpose.xlu0.b32.cont [11/16] 0.0, 128
        %479 = vxpose.xlu0.b32.cont [12/16] 0.0, 128
        %480 = vxpose.xlu0.b32.cont [13/16] 0.0, 128
        %481 = vxpose.xlu0.b32.cont [14/16] 0.0, 128
        %482 = vxpose.xlu0.b32.cont [15/16] 0.0, 128
        %483 = vxpose.xlu0.b32.end [16/16] 0.0, 128
        %v484 = vpop.trf.xlu0
        %v485 = vpop.trf.xlu0
        %v486 = vpop.trf.xlu0
        %v487 = vpop.trf.xlu0
        %v488 = vpop.trf.xlu0
        %v489 = vpop.trf.xlu0
        %v490 = vpop.trf.xlu0
        %v491 = vpop.trf.xlu0
        %v492 = vpop.trf.xlu0
        %v493 = vpop.trf.xlu0
        %v494 = vpop.trf.xlu0
        %v495 = vpop.trf.xlu0
        %v496 = vpop.trf.xlu0
        %v497 = vpop.trf.xlu0
        %v498 = vpop.trf.xlu0
        %v499 = vpop.trf.xlu0
        %500 = vxpose.xlu0.b32.start [1/16] %v465, 128
        %501 = vxpose.xlu0.b32.cont [2/16] %v467, 128
        %502 = vxpose.xlu0.b32.cont [3/16] 0.0, 128
        %503 = vxpose.xlu0.b32.cont [4/16] 0.0, 128
        %504 = vxpose.xlu0.b32.cont [5/16] 0.0, 128
        %505 = vxpose.xlu0.b32.cont [6/16] 0.0, 128
        %506 = vxpose.xlu0.b32.cont [7/16] 0.0, 128
        %507 = vxpose.xlu0.b32.cont [8/16] 0.0, 128
        %508 = vxpose.xlu0.b32.cont [9/16] 0.0, 128
        %509 = vxpose.xlu0.b32.cont [10/16] 0.0, 128
        %510 = vxpose.xlu0.b32.cont [11/16] 0.0, 128
        %511 = vxpose.xlu0.b32.cont [12/16] 0.0, 128
        %512 = vxpose.xlu0.b32.cont [13/16] 0.0, 128
        %513 = vxpose.xlu0.b32.cont [14/16] 0.0, 128
        %514 = vxpose.xlu0.b32.cont [15/16] 0.0, 128
        %515 = vxpose.xlu0.b32.end [16/16] 0.0, 128
        %v516 = vpop.trf.xlu0
        %v517 = vpop.trf.xlu0
        %v518 = vpop.trf.xlu0
        %v519 = vpop.trf.xlu0
        %v520 = vpop.trf.xlu0
        %v521 = vpop.trf.xlu0
        %v522 = vpop.trf.xlu0
        %v523 = vpop.trf.xlu0
        %v524 = vpop.trf.xlu0
        %v525 = vpop.trf.xlu0
        %v526 = vpop.trf.xlu0
        %v527 = vpop.trf.xlu0
        %v528 = vpop.trf.xlu0
        %v529 = vpop.trf.xlu0
        %v530 = vpop.trf.xlu0
        %v531 = vpop.trf.xlu0
        %v564 = vcombine.high %v484, %v484
        %v566 = vunpack.c.l.s4 1966171168
        %v567 = vunpack.c.0.s8 %v566
        %v568 = vlaneseq
        %v569 = vshrl.u32 %v568, 7
        %v570 = vsub.s32 %v567, %v569
        %v571 = vrot.slane %v484, %v570
        %v573 = vunpack.c.l.s4 1966171168
        %v574 = vunpack.c.0.s8 %v573
        %v575 = vlaneseq
        %v576 = vshrl.u32 %v575, 7
        %v577 = vsub.s32 %v574, %v576
        %v578 = vrot.slane %v564, %v577
        %v579 = vcombine.high %v571, %v571
        %v580 = vcombine.high %v578, %v578
        %v582 = vunpack.c.l.s4 1966171168
        %v583 = vunpack.c.0.s8 %v582
        %v584 = vlaneseq
        %v585 = vshrl.u32 %v584, 7
        %v586 = vsub.s32 %v583, %v585
        %v587 = vrot.slane %v571, %v586
        %v589 = vunpack.c.l.s4 1966171168
        %v590 = vunpack.c.0.s8 %v589
        %v591 = vlaneseq
        %v592 = vshrl.u32 %v591, 7
        %v593 = vsub.s32 %v590, %v592
        %v594 = vrot.slane %v578, %v593
        %v596 = vunpack.c.l.s4 1966171168
        %v597 = vunpack.c.0.s8 %v596
        %v598 = vlaneseq
        %v599 = vshrl.u32 %v598, 7
        %v600 = vsub.s32 %v597, %v599
        %v601 = vrot.slane %v579, %v600
        %v603 = vunpack.c.l.s4 1966171168
        %v604 = vunpack.c.0.s8 %v603
        %v605 = vlaneseq
        %v606 = vshrl.u32 %v605, 7
        %v607 = vsub.s32 %v604, %v606
        %v608 = vrot.slane %v580, %v607
        %v609 = vcombine.high %v587, %v587
        %v610 = vcombine.high %v594, %v594
        %v611 = vcombine.high %v601, %v601
        %v612 = vcombine.high %v608, %v608
        %v613 = vcombine.high %v485, %v485
        %v615 = vunpack.c.l.s4 1966171168
        %v616 = vunpack.c.0.s8 %v615
        %v617 = vlaneseq
        %v618 = vshrl.u32 %v617, 7
        %v619 = vsub.s32 %v616, %v618
        %v620 = vrot.slane %v485, %v619
        %v622 = vunpack.c.l.s4 1966171168
        %v623 = vunpack.c.0.s8 %v622
        %v624 = vlaneseq
        %v625 = vshrl.u32 %v624, 7
        %v626 = vsub.s32 %v623, %v625
        %v627 = vrot.slane %v613, %v626
        %v628 = vcombine.high %v620, %v620
        %v629 = vcombine.high %v627, %v627
        %v631 = vunpack.c.l.s4 1966171168
        %v632 = vunpack.c.0.s8 %v631
        %v633 = vlaneseq
        %v634 = vshrl.u32 %v633, 7
        %v635 = vsub.s32 %v632, %v634
        %v636 = vrot.slane %v620, %v635
        %v638 = vunpack.c.l.s4 1966171168
        %v639 = vunpack.c.0.s8 %v638
        %v640 = vlaneseq
        %v641 = vshrl.u32 %v640, 7
        %v642 = vsub.s32 %v639, %v641
        %v643 = vrot.slane %v627, %v642
        %v645 = vunpack.c.l.s4 1966171168
        %v646 = vunpack.c.0.s8 %v645
        %v647 = vlaneseq
        %v648 = vshrl.u32 %v647, 7
        %v649 = vsub.s32 %v646, %v648
        %v650 = vrot.slane %v628, %v649
        %v652 = vunpack.c.l.s4 1966171168
        %v653 = vunpack.c.0.s8 %v652
        %v654 = vlaneseq
        %v655 = vshrl.u32 %v654, 7
        %v656 = vsub.s32 %v653, %v655
        %v657 = vrot.slane %v629, %v656
        %v658 = vcombine.high %v636, %v636
        %v659 = vcombine.high %v643, %v643
        %v660 = vcombine.high %v650, %v650
        %v661 = vcombine.high %v657, %v657
        %v662 = vcombine.high %v486, %v486
        %v664 = vunpack.c.l.s4 1966171168
        %v665 = vunpack.c.0.s8 %v664
        %v666 = vlaneseq
        %v667 = vshrl.u32 %v666, 7
        %v668 = vsub.s32 %v665, %v667
        %v669 = vrot.slane %v486, %v668
        %v671 = vunpack.c.l.s4 1966171168
        %v672 = vunpack.c.0.s8 %v671
        %v673 = vlaneseq
        %v674 = vshrl.u32 %v673, 7
        %v675 = vsub.s32 %v672, %v674
        %v676 = vrot.slane %v662, %v675
        %v677 = vcombine.high %v669, %v669
        %v678 = vcombine.high %v676, %v676
        %v680 = vunpack.c.l.s4 1966171168
        %v681 = vunpack.c.0.s8 %v680
        %v682 = vlaneseq
        %v683 = vshrl.u32 %v682, 7
        %v684 = vsub.s32 %v681, %v683
        %v685 = vrot.slane %v669, %v684
        %v687 = vunpack.c.l.s4 1966171168
        %v688 = vunpack.c.0.s8 %v687
        %v689 = vlaneseq
        %v690 = vshrl.u32 %v689, 7
        %v691 = vsub.s32 %v688, %v690
        %v692 = vrot.slane %v676, %v691
        %v694 = vunpack.c.l.s4 1966171168
        %v695 = vunpack.c.0.s8 %v694
        %v696 = vlaneseq
        %v697 = vshrl.u32 %v696, 7
        %v698 = vsub.s32 %v695, %v697
        %v699 = vrot.slane %v677, %v698
        %v701 = vunpack.c.l.s4 1966171168
        %v702 = vunpack.c.0.s8 %v701
        %v703 = vlaneseq
        %v704 = vshrl.u32 %v703, 7
        %v705 = vsub.s32 %v702, %v704
        %v706 = vrot.slane %v678, %v705
        %v707 = vcombine.high %v685, %v685
        %v708 = vcombine.high %v692, %v692
        %v709 = vcombine.high %v699, %v699
        %v710 = vcombine.high %v706, %v706
        %v711 = vcombine.high %v487, %v487
        %v713 = vunpack.c.l.s4 1966171168
        %v714 = vunpack.c.0.s8 %v713
        %v715 = vlaneseq
        %v716 = vshrl.u32 %v715, 7
        %v717 = vsub.s32 %v714, %v716
        %v718 = vrot.slane %v487, %v717
        %v720 = vunpack.c.l.s4 1966171168
        %v721 = vunpack.c.0.s8 %v720
        %v722 = vlaneseq
        %v723 = vshrl.u32 %v722, 7
        %v724 = vsub.s32 %v721, %v723
        %v725 = vrot.slane %v711, %v724
        %v726 = vcombine.high %v718, %v718
        %v727 = vcombine.high %v725, %v725
        %v729 = vunpack.c.l.s4 1966171168
        %v730 = vunpack.c.0.s8 %v729
        %v731 = vlaneseq
        %v732 = vshrl.u32 %v731, 7
        %v733 = vsub.s32 %v730, %v732
        %v734 = vrot.slane %v718, %v733
        %v736 = vunpack.c.l.s4 1966171168
        %v737 = vunpack.c.0.s8 %v736
        %v738 = vlaneseq
        %v739 = vshrl.u32 %v738, 7
        %v740 = vsub.s32 %v737, %v739
        %v741 = vrot.slane %v725, %v740
        %v743 = vunpack.c.l.s4 1966171168
        %v744 = vunpack.c.0.s8 %v743
        %v745 = vlaneseq
        %v746 = vshrl.u32 %v745, 7
        %v747 = vsub.s32 %v744, %v746
        %v748 = vrot.slane %v726, %v747
        %v750 = vunpack.c.l.s4 1966171168
        %v751 = vunpack.c.0.s8 %v750
        %v752 = vlaneseq
        %v753 = vshrl.u32 %v752, 7
        %v754 = vsub.s32 %v751, %v753
        %v755 = vrot.slane %v727, %v754
        %v756 = vcombine.high %v734, %v734
        %v757 = vcombine.high %v741, %v741
        %v758 = vcombine.high %v748, %v748
        %v759 = vcombine.high %v755, %v755
        %v760 = vcombine.high %v488, %v488
        %v762 = vunpack.c.l.s4 1966171168
        %v763 = vunpack.c.0.s8 %v762
        %v764 = vlaneseq
        %v765 = vshrl.u32 %v764, 7
        %v766 = vsub.s32 %v763, %v765
        %v767 = vrot.slane %v488, %v766
        %v769 = vunpack.c.l.s4 1966171168
        %v770 = vunpack.c.0.s8 %v769
        %v771 = vlaneseq
        %v772 = vshrl.u32 %v771, 7
        %v773 = vsub.s32 %v770, %v772
        %v774 = vrot.slane %v760, %v773
        %v775 = vcombine.high %v767, %v767
        %v776 = vcombine.high %v774, %v774
        %v778 = vunpack.c.l.s4 1966171168
        %v779 = vunpack.c.0.s8 %v778
        %v780 = vlaneseq
        %v781 = vshrl.u32 %v780, 7
        %v782 = vsub.s32 %v779, %v781
        %v783 = vrot.slane %v767, %v782
        %v785 = vunpack.c.l.s4 1966171168
        %v786 = vunpack.c.0.s8 %v785
        %v787 = vlaneseq
        %v788 = vshrl.u32 %v787, 7
        %v789 = vsub.s32 %v786, %v788
        %v790 = vrot.slane %v774, %v789
        %v792 = vunpack.c.l.s4 1966171168
        %v793 = vunpack.c.0.s8 %v792
        %v794 = vlaneseq
        %v795 = vshrl.u32 %v794, 7
        %v796 = vsub.s32 %v793, %v795
        %v797 = vrot.slane %v775, %v796
        %v799 = vunpack.c.l.s4 1966171168
        %v800 = vunpack.c.0.s8 %v799
        %v801 = vlaneseq
        %v802 = vshrl.u32 %v801, 7
        %v803 = vsub.s32 %v800, %v802
        %v804 = vrot.slane %v776, %v803
        %v805 = vcombine.high %v783, %v783
        %v806 = vcombine.high %v790, %v790
        %v807 = vcombine.high %v797, %v797
        %v808 = vcombine.high %v804, %v804
        %v809 = vcombine.high %v489, %v489
        %v811 = vunpack.c.l.s4 1966171168
        %v812 = vunpack.c.0.s8 %v811
        %v813 = vlaneseq
        %v814 = vshrl.u32 %v813, 7
        %v815 = vsub.s32 %v812, %v814
        %v816 = vrot.slane %v489, %v815
        %v818 = vunpack.c.l.s4 1966171168
        %v819 = vunpack.c.0.s8 %v818
        %v820 = vlaneseq
        %v821 = vshrl.u32 %v820, 7
        %v822 = vsub.s32 %v819, %v821
        %v823 = vrot.slane %v809, %v822
        %v824 = vcombine.high %v816, %v816
        %v825 = vcombine.high %v823, %v823
        %v827 = vunpack.c.l.s4 1966171168
        %v828 = vunpack.c.0.s8 %v827
        %v829 = vlaneseq
        %v830 = vshrl.u32 %v829, 7
        %v831 = vsub.s32 %v828, %v830
        %v832 = vrot.slane %v816, %v831
        %v834 = vunpack.c.l.s4 1966171168
        %v835 = vunpack.c.0.s8 %v834
        %v836 = vlaneseq
        %v837 = vshrl.u32 %v836, 7
        %v838 = vsub.s32 %v835, %v837
        %v839 = vrot.slane %v823, %v838
        %v841 = vunpack.c.l.s4 1966171168
        %v842 = vunpack.c.0.s8 %v841
        %v843 = vlaneseq
        %v844 = vshrl.u32 %v843, 7
        %v845 = vsub.s32 %v842, %v844
        %v846 = vrot.slane %v824, %v845
        %v848 = vunpack.c.l.s4 1966171168
        %v849 = vunpack.c.0.s8 %v848
        %v850 = vlaneseq
        %v851 = vshrl.u32 %v850, 7
        %v852 = vsub.s32 %v849, %v851
        %v853 = vrot.slane %v825, %v852
        %v854 = vcombine.high %v832, %v832
        %v855 = vcombine.high %v839, %v839
        %v856 = vcombine.high %v846, %v846
        %v857 = vcombine.high %v853, %v853
        %v858 = vcombine.high %v490, %v490
        %v860 = vunpack.c.l.s4 1966171168
        %v861 = vunpack.c.0.s8 %v860
        %v862 = vlaneseq
        %v863 = vshrl.u32 %v862, 7
        %v864 = vsub.s32 %v861, %v863
        %v865 = vrot.slane %v490, %v864
        %v867 = vunpack.c.l.s4 1966171168
        %v868 = vunpack.c.0.s8 %v867
        %v869 = vlaneseq
        %v870 = vshrl.u32 %v869, 7
        %v871 = vsub.s32 %v868, %v870
        %v872 = vrot.slane %v858, %v871
        %v873 = vcombine.high %v865, %v865
        %v874 = vcombine.high %v872, %v872
        %v876 = vunpack.c.l.s4 1966171168
        %v877 = vunpack.c.0.s8 %v876
        %v878 = vlaneseq
        %v879 = vshrl.u32 %v878, 7
        %v880 = vsub.s32 %v877, %v879
        %v881 = vrot.slane %v865, %v880
        %v883 = vunpack.c.l.s4 1966171168
        %v884 = vunpack.c.0.s8 %v883
        %v885 = vlaneseq
        %v886 = vshrl.u32 %v885, 7
        %v887 = vsub.s32 %v884, %v886
        %v888 = vrot.slane %v872, %v887
        %v890 = vunpack.c.l.s4 1966171168
        %v891 = vunpack.c.0.s8 %v890
        %v892 = vlaneseq
        %v893 = vshrl.u32 %v892, 7
        %v894 = vsub.s32 %v891, %v893
        %v895 = vrot.slane %v873, %v894
        %v897 = vunpack.c.l.s4 1966171168
        %v898 = vunpack.c.0.s8 %v897
        %v899 = vlaneseq
        %v900 = vshrl.u32 %v899, 7
        %v901 = vsub.s32 %v898, %v900
        %v902 = vrot.slane %v874, %v901
        %v903 = vcombine.high %v881, %v881
        %v904 = vcombine.high %v888, %v888
        %v905 = vcombine.high %v895, %v895
        %v906 = vcombine.high %v902, %v902
        %v907 = vcombine.high %v491, %v491
        %v909 = vunpack.c.l.s4 1966171168
        %v910 = vunpack.c.0.s8 %v909
        %v911 = vlaneseq
        %v912 = vshrl.u32 %v911, 7
        %v913 = vsub.s32 %v910, %v912
        %v914 = vrot.slane %v491, %v913
        %v916 = vunpack.c.l.s4 1966171168
        %v917 = vunpack.c.0.s8 %v916
        %v918 = vlaneseq
        %v919 = vshrl.u32 %v918, 7
        %v920 = vsub.s32 %v917, %v919
        %v921 = vrot.slane %v907, %v920
        %v922 = vcombine.high %v914, %v914
        %v923 = vcombine.high %v921, %v921
        %v925 = vunpack.c.l.s4 1966171168
        %v926 = vunpack.c.0.s8 %v925
        %v927 = vlaneseq
        %v928 = vshrl.u32 %v927, 7
        %v929 = vsub.s32 %v926, %v928
        %v930 = vrot.slane %v914, %v929
        %v932 = vunpack.c.l.s4 1966171168
        %v933 = vunpack.c.0.s8 %v932
        %v934 = vlaneseq
        %v935 = vshrl.u32 %v934, 7
        %v936 = vsub.s32 %v933, %v935
        %v937 = vrot.slane %v921, %v936
        %v939 = vunpack.c.l.s4 1966171168
        %v940 = vunpack.c.0.s8 %v939
        %v941 = vlaneseq
        %v942 = vshrl.u32 %v941, 7
        %v943 = vsub.s32 %v940, %v942
        %v944 = vrot.slane %v922, %v943
        %v946 = vunpack.c.l.s4 1966171168
        %v947 = vunpack.c.0.s8 %v946
        %v948 = vlaneseq
        %v949 = vshrl.u32 %v948, 7
        %v950 = vsub.s32 %v947, %v949
        %v951 = vrot.slane %v923, %v950
        %v952 = vcombine.high %v930, %v930
        %v953 = vcombine.high %v937, %v937
        %v954 = vcombine.high %v944, %v944
        %v955 = vcombine.high %v951, %v951
        %v956 = vcombine.high %v492, %v492
        %v958 = vunpack.c.l.s4 1966171168
        %v959 = vunpack.c.0.s8 %v958
        %v960 = vlaneseq
        %v961 = vshrl.u32 %v960, 7
        %v962 = vsub.s32 %v959, %v961
        %v963 = vrot.slane %v492, %v962
        %v965 = vunpack.c.l.s4 1966171168
        %v966 = vunpack.c.0.s8 %v965
        %v967 = vlaneseq
        %v968 = vshrl.u32 %v967, 7
        %v969 = vsub.s32 %v966, %v968
        %v970 = vrot.slane %v956, %v969
        %v971 = vcombine.high %v963, %v963
        %v972 = vcombine.high %v970, %v970
        %v974 = vunpack.c.l.s4 1966171168
        %v975 = vunpack.c.0.s8 %v974
        %v976 = vlaneseq
        %v977 = vshrl.u32 %v976, 7
        %v978 = vsub.s32 %v975, %v977
        %v979 = vrot.slane %v963, %v978
        %v981 = vunpack.c.l.s4 1966171168
        %v982 = vunpack.c.0.s8 %v981
        %v983 = vlaneseq
        %v984 = vshrl.u32 %v983, 7
        %v985 = vsub.s32 %v982, %v984
        %v986 = vrot.slane %v970, %v985
        %v988 = vunpack.c.l.s4 1966171168
        %v989 = vunpack.c.0.s8 %v988
        %v990 = vlaneseq
        %v991 = vshrl.u32 %v990, 7
        %v992 = vsub.s32 %v989, %v991
        %v993 = vrot.slane %v971, %v992
        %v995 = vunpack.c.l.s4 1966171168
        %v996 = vunpack.c.0.s8 %v995
        %v997 = vlaneseq
        %v998 = vshrl.u32 %v997, 7
        %v999 = vsub.s32 %v996, %v998
        %v1000 = vrot.slane %v972, %v999
        %v1001 = vcombine.high %v979, %v979
        %v1002 = vcombine.high %v986, %v986
        %v1003 = vcombine.high %v993, %v993
        %v1004 = vcombine.high %v1000, %v1000
        %v1005 = vcombine.high %v493, %v493
        %v1007 = vunpack.c.l.s4 1966171168
        %v1008 = vunpack.c.0.s8 %v1007
        %v1009 = vlaneseq
        %v1010 = vshrl.u32 %v1009, 7
        %v1011 = vsub.s32 %v1008, %v1010
        %v1012 = vrot.slane %v493, %v1011
        %v1014 = vunpack.c.l.s4 1966171168
        %v1015 = vunpack.c.0.s8 %v1014
        %v1016 = vlaneseq
        %v1017 = vshrl.u32 %v1016, 7
        %v1018 = vsub.s32 %v1015, %v1017
        %v1019 = vrot.slane %v1005, %v1018
        %v1020 = vcombine.high %v1012, %v1012
        %v1021 = vcombine.high %v1019, %v1019
        %v1023 = vunpack.c.l.s4 1966171168
        %v1024 = vunpack.c.0.s8 %v1023
        %v1025 = vlaneseq
        %v1026 = vshrl.u32 %v1025, 7
        %v1027 = vsub.s32 %v1024, %v1026
        %v1028 = vrot.slane %v1012, %v1027
        %v1030 = vunpack.c.l.s4 1966171168
        %v1031 = vunpack.c.0.s8 %v1030
        %v1032 = vlaneseq
        %v1033 = vshrl.u32 %v1032, 7
        %v1034 = vsub.s32 %v1031, %v1033
        %v1035 = vrot.slane %v1019, %v1034
        %v1037 = vunpack.c.l.s4 1966171168
        %v1038 = vunpack.c.0.s8 %v1037
        %v1039 = vlaneseq
        %v1040 = vshrl.u32 %v1039, 7
        %v1041 = vsub.s32 %v1038, %v1040
        %v1042 = vrot.slane %v1020, %v1041
        %v1044 = vunpack.c.l.s4 1966171168
        %v1045 = vunpack.c.0.s8 %v1044
        %v1046 = vlaneseq
        %v1047 = vshrl.u32 %v1046, 7
        %v1048 = vsub.s32 %v1045, %v1047
        %v1049 = vrot.slane %v1021, %v1048
        %v1050 = vcombine.high %v1028, %v1028
        %v1051 = vcombine.high %v1035, %v1035
        %v1052 = vcombine.high %v1042, %v1042
        %v1053 = vcombine.high %v1049, %v1049
        %v1054 = vcombine.high %v494, %v494
        %v1056 = vunpack.c.l.s4 1966171168
        %v1057 = vunpack.c.0.s8 %v1056
        %v1058 = vlaneseq
        %v1059 = vshrl.u32 %v1058, 7
        %v1060 = vsub.s32 %v1057, %v1059
        %v1061 = vrot.slane %v494, %v1060
        %v1063 = vunpack.c.l.s4 1966171168
        %v1064 = vunpack.c.0.s8 %v1063
        %v1065 = vlaneseq
        %v1066 = vshrl.u32 %v1065, 7
        %v1067 = vsub.s32 %v1064, %v1066
        %v1068 = vrot.slane %v1054, %v1067
        %v1069 = vcombine.high %v1061, %v1061
        %v1070 = vcombine.high %v1068, %v1068
        %v1072 = vunpack.c.l.s4 1966171168
        %v1073 = vunpack.c.0.s8 %v1072
        %v1074 = vlaneseq
        %v1075 = vshrl.u32 %v1074, 7
        %v1076 = vsub.s32 %v1073, %v1075
        %v1077 = vrot.slane %v1061, %v1076
        %v1079 = vunpack.c.l.s4 1966171168
        %v1080 = vunpack.c.0.s8 %v1079
        %v1081 = vlaneseq
        %v1082 = vshrl.u32 %v1081, 7
        %v1083 = vsub.s32 %v1080, %v1082
        %v1084 = vrot.slane %v1068, %v1083
        %v1086 = vunpack.c.l.s4 1966171168
        %v1087 = vunpack.c.0.s8 %v1086
        %v1088 = vlaneseq
        %v1089 = vshrl.u32 %v1088, 7
        %v1090 = vsub.s32 %v1087, %v1089
        %v1091 = vrot.slane %v1069, %v1090
        %v1093 = vunpack.c.l.s4 1966171168
        %v1094 = vunpack.c.0.s8 %v1093
        %v1095 = vlaneseq
        %v1096 = vshrl.u32 %v1095, 7
        %v1097 = vsub.s32 %v1094, %v1096
        %v1098 = vrot.slane %v1070, %v1097
        %v1099 = vcombine.high %v1077, %v1077
        %v1100 = vcombine.high %v1084, %v1084
        %v1101 = vcombine.high %v1091, %v1091
        %v1102 = vcombine.high %v1098, %v1098
        %v1103 = vcombine.high %v495, %v495
        %v1105 = vunpack.c.l.s4 1966171168
        %v1106 = vunpack.c.0.s8 %v1105
        %v1107 = vlaneseq
        %v1108 = vshrl.u32 %v1107, 7
        %v1109 = vsub.s32 %v1106, %v1108
        %v1110 = vrot.slane %v495, %v1109
        %v1112 = vunpack.c.l.s4 1966171168
        %v1113 = vunpack.c.0.s8 %v1112
        %v1114 = vlaneseq
        %v1115 = vshrl.u32 %v1114, 7
        %v1116 = vsub.s32 %v1113, %v1115
        %v1117 = vrot.slane %v1103, %v1116
        %v1118 = vcombine.high %v1110, %v1110
        %v1119 = vcombine.high %v1117, %v1117
        %v1121 = vunpack.c.l.s4 1966171168
        %v1122 = vunpack.c.0.s8 %v1121
        %v1123 = vlaneseq
        %v1124 = vshrl.u32 %v1123, 7
        %v1125 = vsub.s32 %v1122, %v1124
        %v1126 = vrot.slane %v1110, %v1125
        %v1128 = vunpack.c.l.s4 1966171168
        %v1129 = vunpack.c.0.s8 %v1128
        %v1130 = vlaneseq
        %v1131 = vshrl.u32 %v1130, 7
        %v1132 = vsub.s32 %v1129, %v1131
        %v1133 = vrot.slane %v1117, %v1132
        %v1135 = vunpack.c.l.s4 1966171168
        %v1136 = vunpack.c.0.s8 %v1135
        %v1137 = vlaneseq
        %v1138 = vshrl.u32 %v1137, 7
        %v1139 = vsub.s32 %v1136, %v1138
        %v1140 = vrot.slane %v1118, %v1139
        %v1142 = vunpack.c.l.s4 1966171168
        %v1143 = vunpack.c.0.s8 %v1142
        %v1144 = vlaneseq
        %v1145 = vshrl.u32 %v1144, 7
        %v1146 = vsub.s32 %v1143, %v1145
        %v1147 = vrot.slane %v1119, %v1146
        %v1148 = vcombine.high %v1126, %v1126
        %v1149 = vcombine.high %v1133, %v1133
        %v1150 = vcombine.high %v1140, %v1140
        %v1151 = vcombine.high %v1147, %v1147
        %v1152 = vcombine.high %v496, %v496
        %v1154 = vunpack.c.l.s4 1966171168
        %v1155 = vunpack.c.0.s8 %v1154
        %v1156 = vlaneseq
        %v1157 = vshrl.u32 %v1156, 7
        %v1158 = vsub.s32 %v1155, %v1157
        %v1159 = vrot.slane %v496, %v1158
        %v1161 = vunpack.c.l.s4 1966171168
        %v1162 = vunpack.c.0.s8 %v1161
        %v1163 = vlaneseq
        %v1164 = vshrl.u32 %v1163, 7
        %v1165 = vsub.s32 %v1162, %v1164
        %v1166 = vrot.slane %v1152, %v1165
        %v1167 = vcombine.high %v1159, %v1159
        %v1168 = vcombine.high %v1166, %v1166
        %v1170 = vunpack.c.l.s4 1966171168
        %v1171 = vunpack.c.0.s8 %v1170
        %v1172 = vlaneseq
        %v1173 = vshrl.u32 %v1172, 7
        %v1174 = vsub.s32 %v1171, %v1173
        %v1175 = vrot.slane %v1159, %v1174
        %v1177 = vunpack.c.l.s4 1966171168
        %v1178 = vunpack.c.0.s8 %v1177
        %v1179 = vlaneseq
        %v1180 = vshrl.u32 %v1179, 7
        %v1181 = vsub.s32 %v1178, %v1180
        %v1182 = vrot.slane %v1166, %v1181
        %v1184 = vunpack.c.l.s4 1966171168
        %v1185 = vunpack.c.0.s8 %v1184
        %v1186 = vlaneseq
        %v1187 = vshrl.u32 %v1186, 7
        %v1188 = vsub.s32 %v1185, %v1187
        %v1189 = vrot.slane %v1167, %v1188
        %v1191 = vunpack.c.l.s4 1966171168
        %v1192 = vunpack.c.0.s8 %v1191
        %v1193 = vlaneseq
        %v1194 = vshrl.u32 %v1193, 7
        %v1195 = vsub.s32 %v1192, %v1194
        %v1196 = vrot.slane %v1168, %v1195
        %v1197 = vcombine.high %v1175, %v1175
        %v1198 = vcombine.high %v1182, %v1182
        %v1199 = vcombine.high %v1189, %v1189
        %v1200 = vcombine.high %v1196, %v1196
        %v1201 = vcombine.high %v497, %v497
        %v1203 = vunpack.c.l.s4 1966171168
        %v1204 = vunpack.c.0.s8 %v1203
        %v1205 = vlaneseq
        %v1206 = vshrl.u32 %v1205, 7
        %v1207 = vsub.s32 %v1204, %v1206
        %v1208 = vrot.slane %v497, %v1207
        %v1210 = vunpack.c.l.s4 1966171168
        %v1211 = vunpack.c.0.s8 %v1210
        %v1212 = vlaneseq
        %v1213 = vshrl.u32 %v1212, 7
        %v1214 = vsub.s32 %v1211, %v1213
        %v1215 = vrot.slane %v1201, %v1214
        %v1216 = vcombine.high %v1208, %v1208
        %v1217 = vcombine.high %v1215, %v1215
        %v1219 = vunpack.c.l.s4 1966171168
        %v1220 = vunpack.c.0.s8 %v1219
        %v1221 = vlaneseq
        %v1222 = vshrl.u32 %v1221, 7
        %v1223 = vsub.s32 %v1220, %v1222
        %v1224 = vrot.slane %v1208, %v1223
        %v1226 = vunpack.c.l.s4 1966171168
        %v1227 = vunpack.c.0.s8 %v1226
        %v1228 = vlaneseq
        %v1229 = vshrl.u32 %v1228, 7
        %v1230 = vsub.s32 %v1227, %v1229
        %v1231 = vrot.slane %v1215, %v1230
        %v1233 = vunpack.c.l.s4 1966171168
        %v1234 = vunpack.c.0.s8 %v1233
        %v1235 = vlaneseq
        %v1236 = vshrl.u32 %v1235, 7
        %v1237 = vsub.s32 %v1234, %v1236
        %v1238 = vrot.slane %v1216, %v1237
        %v1240 = vunpack.c.l.s4 1966171168
        %v1241 = vunpack.c.0.s8 %v1240
        %v1242 = vlaneseq
        %v1243 = vshrl.u32 %v1242, 7
        %v1244 = vsub.s32 %v1241, %v1243
        %v1245 = vrot.slane %v1217, %v1244
        %v1246 = vcombine.high %v1224, %v1224
        %v1247 = vcombine.high %v1231, %v1231
        %v1248 = vcombine.high %v1238, %v1238
        %v1249 = vcombine.high %v1245, %v1245
        %v1250 = vcombine.high %v498, %v498
        %v1252 = vunpack.c.l.s4 1966171168
        %v1253 = vunpack.c.0.s8 %v1252
        %v1254 = vlaneseq
        %v1255 = vshrl.u32 %v1254, 7
        %v1256 = vsub.s32 %v1253, %v1255
        %v1257 = vrot.slane %v498, %v1256
        %v1259 = vunpack.c.l.s4 1966171168
        %v1260 = vunpack.c.0.s8 %v1259
        %v1261 = vlaneseq
        %v1262 = vshrl.u32 %v1261, 7
        %v1263 = vsub.s32 %v1260, %v1262
        %v1264 = vrot.slane %v1250, %v1263
        %v1265 = vcombine.high %v1257, %v1257
        %v1266 = vcombine.high %v1264, %v1264
        %v1268 = vunpack.c.l.s4 1966171168
        %v1269 = vunpack.c.0.s8 %v1268
        %v1270 = vlaneseq
        %v1271 = vshrl.u32 %v1270, 7
        %v1272 = vsub.s32 %v1269, %v1271
        %v1273 = vrot.slane %v1257, %v1272
        %v1275 = vunpack.c.l.s4 1966171168
        %v1276 = vunpack.c.0.s8 %v1275
        %v1277 = vlaneseq
        %v1278 = vshrl.u32 %v1277, 7
        %v1279 = vsub.s32 %v1276, %v1278
        %v1280 = vrot.slane %v1264, %v1279
        %v1282 = vunpack.c.l.s4 1966171168
        %v1283 = vunpack.c.0.s8 %v1282
        %v1284 = vlaneseq
        %v1285 = vshrl.u32 %v1284, 7
        %v1286 = vsub.s32 %v1283, %v1285
        %v1287 = vrot.slane %v1265, %v1286
        %v1289 = vunpack.c.l.s4 1966171168
        %v1290 = vunpack.c.0.s8 %v1289
        %v1291 = vlaneseq
        %v1292 = vshrl.u32 %v1291, 7
        %v1293 = vsub.s32 %v1290, %v1292
        %v1294 = vrot.slane %v1266, %v1293
        %v1295 = vcombine.high %v1273, %v1273
        %v1296 = vcombine.high %v1280, %v1280
        %v1297 = vcombine.high %v1287, %v1287
        %v1298 = vcombine.high %v1294, %v1294
        %v1299 = vcombine.high %v499, %v499
        %v1301 = vunpack.c.l.s4 1966171168
        %v1302 = vunpack.c.0.s8 %v1301
        %v1303 = vlaneseq
        %v1304 = vshrl.u32 %v1303, 7
        %v1305 = vsub.s32 %v1302, %v1304
        %v1306 = vrot.slane %v499, %v1305
        %v1308 = vunpack.c.l.s4 1966171168
        %v1309 = vunpack.c.0.s8 %v1308
        %v1310 = vlaneseq
        %v1311 = vshrl.u32 %v1310, 7
        %v1312 = vsub.s32 %v1309, %v1311
        %v1313 = vrot.slane %v1299, %v1312
        %v1314 = vcombine.high %v1306, %v1306
        %v1315 = vcombine.high %v1313, %v1313
        %v1317 = vunpack.c.l.s4 1966171168
        %v1318 = vunpack.c.0.s8 %v1317
        %v1319 = vlaneseq
        %v1320 = vshrl.u32 %v1319, 7
        %v1321 = vsub.s32 %v1318, %v1320
        %v1322 = vrot.slane %v1306, %v1321
        %v1324 = vunpack.c.l.s4 1966171168
        %v1325 = vunpack.c.0.s8 %v1324
        %v1326 = vlaneseq
        %v1327 = vshrl.u32 %v1326, 7
        %v1328 = vsub.s32 %v1325, %v1327
        %v1329 = vrot.slane %v1313, %v1328
        %v1331 = vunpack.c.l.s4 1966171168
        %v1332 = vunpack.c.0.s8 %v1331
        %v1333 = vlaneseq
        %v1334 = vshrl.u32 %v1333, 7
        %v1335 = vsub.s32 %v1332, %v1334
        %v1336 = vrot.slane %v1314, %v1335
        %v1338 = vunpack.c.l.s4 1966171168
        %v1339 = vunpack.c.0.s8 %v1338
        %v1340 = vlaneseq
        %v1341 = vshrl.u32 %v1340, 7
        %v1342 = vsub.s32 %v1339, %v1341
        %v1343 = vrot.slane %v1315, %v1342
        %v1344 = vcombine.high %v1322, %v1322
        %v1345 = vcombine.high %v1329, %v1329
        %v1346 = vcombine.high %v1336, %v1336
        %v1347 = vcombine.high %v1343, %v1343
        %v1348 = vcombine.high %v516, %v516
        %v1350 = vunpack.c.l.s4 1966171168
        %v1351 = vunpack.c.0.s8 %v1350
        %v1352 = vlaneseq
        %v1353 = vshrl.u32 %v1352, 7
        %v1354 = vsub.s32 %v1351, %v1353
        %v1355 = vrot.slane %v516, %v1354
        %v1357 = vunpack.c.l.s4 1966171168
        %v1358 = vunpack.c.0.s8 %v1357
        %v1359 = vlaneseq
        %v1360 = vshrl.u32 %v1359, 7
        %v1361 = vsub.s32 %v1358, %v1360
        %v1362 = vrot.slane %v1348, %v1361
        %v1363 = vcombine.high %v1355, %v1355
        %v1364 = vcombine.high %v1362, %v1362
        %v1366 = vunpack.c.l.s4 1966171168
        %v1367 = vunpack.c.0.s8 %v1366
        %v1368 = vlaneseq
        %v1369 = vshrl.u32 %v1368, 7
        %v1370 = vsub.s32 %v1367, %v1369
        %v1371 = vrot.slane %v1355, %v1370
        %v1373 = vunpack.c.l.s4 1966171168
        %v1374 = vunpack.c.0.s8 %v1373
        %v1375 = vlaneseq
        %v1376 = vshrl.u32 %v1375, 7
        %v1377 = vsub.s32 %v1374, %v1376
        %v1378 = vrot.slane %v1362, %v1377
        %v1380 = vunpack.c.l.s4 1966171168
        %v1381 = vunpack.c.0.s8 %v1380
        %v1382 = vlaneseq
        %v1383 = vshrl.u32 %v1382, 7
        %v1384 = vsub.s32 %v1381, %v1383
        %v1385 = vrot.slane %v1363, %v1384
        %v1387 = vunpack.c.l.s4 1966171168
        %v1388 = vunpack.c.0.s8 %v1387
        %v1389 = vlaneseq
        %v1390 = vshrl.u32 %v1389, 7
        %v1391 = vsub.s32 %v1388, %v1390
        %v1392 = vrot.slane %v1364, %v1391
        %v1393 = vcombine.high %v1371, %v1371
        %v1394 = vcombine.high %v1378, %v1378
        %v1395 = vcombine.high %v1385, %v1385
        %v1396 = vcombine.high %v1392, %v1392
        %v1397 = vcombine.high %v517, %v517
        %v1399 = vunpack.c.l.s4 1966171168
        %v1400 = vunpack.c.0.s8 %v1399
        %v1401 = vlaneseq
        %v1402 = vshrl.u32 %v1401, 7
        %v1403 = vsub.s32 %v1400, %v1402
        %v1404 = vrot.slane %v517, %v1403
        %v1406 = vunpack.c.l.s4 1966171168
        %v1407 = vunpack.c.0.s8 %v1406
        %v1408 = vlaneseq
        %v1409 = vshrl.u32 %v1408, 7
        %v1410 = vsub.s32 %v1407, %v1409
        %v1411 = vrot.slane %v1397, %v1410
        %v1412 = vcombine.high %v1404, %v1404
        %v1413 = vcombine.high %v1411, %v1411
        %v1415 = vunpack.c.l.s4 1966171168
        %v1416 = vunpack.c.0.s8 %v1415
        %v1417 = vlaneseq
        %v1418 = vshrl.u32 %v1417, 7
        %v1419 = vsub.s32 %v1416, %v1418
        %v1420 = vrot.slane %v1404, %v1419
        %v1422 = vunpack.c.l.s4 1966171168
        %v1423 = vunpack.c.0.s8 %v1422
        %v1424 = vlaneseq
        %v1425 = vshrl.u32 %v1424, 7
        %v1426 = vsub.s32 %v1423, %v1425
        %v1427 = vrot.slane %v1411, %v1426
        %v1429 = vunpack.c.l.s4 1966171168
        %v1430 = vunpack.c.0.s8 %v1429
        %v1431 = vlaneseq
        %v1432 = vshrl.u32 %v1431, 7
        %v1433 = vsub.s32 %v1430, %v1432
        %v1434 = vrot.slane %v1412, %v1433
        %v1436 = vunpack.c.l.s4 1966171168
        %v1437 = vunpack.c.0.s8 %v1436
        %v1438 = vlaneseq
        %v1439 = vshrl.u32 %v1438, 7
        %v1440 = vsub.s32 %v1437, %v1439
        %v1441 = vrot.slane %v1413, %v1440
        %v1442 = vcombine.high %v1420, %v1420
        %v1443 = vcombine.high %v1427, %v1427
        %v1444 = vcombine.high %v1434, %v1434
        %v1445 = vcombine.high %v1441, %v1441
        %v1446 = vcombine.high %v518, %v518
        %v1448 = vunpack.c.l.s4 1966171168
        %v1449 = vunpack.c.0.s8 %v1448
        %v1450 = vlaneseq
        %v1451 = vshrl.u32 %v1450, 7
        %v1452 = vsub.s32 %v1449, %v1451
        %v1453 = vrot.slane %v518, %v1452
        %v1455 = vunpack.c.l.s4 1966171168
        %v1456 = vunpack.c.0.s8 %v1455
        %v1457 = vlaneseq
        %v1458 = vshrl.u32 %v1457, 7
        %v1459 = vsub.s32 %v1456, %v1458
        %v1460 = vrot.slane %v1446, %v1459
        %v1461 = vcombine.high %v1453, %v1453
        %v1462 = vcombine.high %v1460, %v1460
        %v1464 = vunpack.c.l.s4 1966171168
        %v1465 = vunpack.c.0.s8 %v1464
        %v1466 = vlaneseq
        %v1467 = vshrl.u32 %v1466, 7
        %v1468 = vsub.s32 %v1465, %v1467
        %v1469 = vrot.slane %v1453, %v1468
        %v1471 = vunpack.c.l.s4 1966171168
        %v1472 = vunpack.c.0.s8 %v1471
        %v1473 = vlaneseq
        %v1474 = vshrl.u32 %v1473, 7
        %v1475 = vsub.s32 %v1472, %v1474
        %v1476 = vrot.slane %v1460, %v1475
        %v1478 = vunpack.c.l.s4 1966171168
        %v1479 = vunpack.c.0.s8 %v1478
        %v1480 = vlaneseq
        %v1481 = vshrl.u32 %v1480, 7
        %v1482 = vsub.s32 %v1479, %v1481
        %v1483 = vrot.slane %v1461, %v1482
        %v1485 = vunpack.c.l.s4 1966171168
        %v1486 = vunpack.c.0.s8 %v1485
        %v1487 = vlaneseq
        %v1488 = vshrl.u32 %v1487, 7
        %v1489 = vsub.s32 %v1486, %v1488
        %v1490 = vrot.slane %v1462, %v1489
        %v1491 = vcombine.high %v1469, %v1469
        %v1492 = vcombine.high %v1476, %v1476
        %v1493 = vcombine.high %v1483, %v1483
        %v1494 = vcombine.high %v1490, %v1490
        %v1495 = vcombine.high %v519, %v519
        %v1497 = vunpack.c.l.s4 1966171168
        %v1498 = vunpack.c.0.s8 %v1497
        %v1499 = vlaneseq
        %v1500 = vshrl.u32 %v1499, 7
        %v1501 = vsub.s32 %v1498, %v1500
        %v1502 = vrot.slane %v519, %v1501
        %v1504 = vunpack.c.l.s4 1966171168
        %v1505 = vunpack.c.0.s8 %v1504
        %v1506 = vlaneseq
        %v1507 = vshrl.u32 %v1506, 7
        %v1508 = vsub.s32 %v1505, %v1507
        %v1509 = vrot.slane %v1495, %v1508
        %v1510 = vcombine.high %v1502, %v1502
        %v1511 = vcombine.high %v1509, %v1509
        %v1513 = vunpack.c.l.s4 1966171168
        %v1514 = vunpack.c.0.s8 %v1513
        %v1515 = vlaneseq
        %v1516 = vshrl.u32 %v1515, 7
        %v1517 = vsub.s32 %v1514, %v1516
        %v1518 = vrot.slane %v1502, %v1517
        %v1520 = vunpack.c.l.s4 1966171168
        %v1521 = vunpack.c.0.s8 %v1520
        %v1522 = vlaneseq
        %v1523 = vshrl.u32 %v1522, 7
        %v1524 = vsub.s32 %v1521, %v1523
        %v1525 = vrot.slane %v1509, %v1524
        %v1527 = vunpack.c.l.s4 1966171168
        %v1528 = vunpack.c.0.s8 %v1527
        %v1529 = vlaneseq
        %v1530 = vshrl.u32 %v1529, 7
        %v1531 = vsub.s32 %v1528, %v1530
        %v1532 = vrot.slane %v1510, %v1531
        %v1534 = vunpack.c.l.s4 1966171168
        %v1535 = vunpack.c.0.s8 %v1534
        %v1536 = vlaneseq
        %v1537 = vshrl.u32 %v1536, 7
        %v1538 = vsub.s32 %v1535, %v1537
        %v1539 = vrot.slane %v1511, %v1538
        %v1540 = vcombine.high %v1518, %v1518
        %v1541 = vcombine.high %v1525, %v1525
        %v1542 = vcombine.high %v1532, %v1532
        %v1543 = vcombine.high %v1539, %v1539
        %v1544 = vcombine.high %v520, %v520
        %v1546 = vunpack.c.l.s4 1966171168
        %v1547 = vunpack.c.0.s8 %v1546
        %v1548 = vlaneseq
        %v1549 = vshrl.u32 %v1548, 7
        %v1550 = vsub.s32 %v1547, %v1549
        %v1551 = vrot.slane %v520, %v1550
        %v1553 = vunpack.c.l.s4 1966171168
        %v1554 = vunpack.c.0.s8 %v1553
        %v1555 = vlaneseq
        %v1556 = vshrl.u32 %v1555, 7
        %v1557 = vsub.s32 %v1554, %v1556
        %v1558 = vrot.slane %v1544, %v1557
        %v1559 = vcombine.high %v1551, %v1551
        %v1560 = vcombine.high %v1558, %v1558
        %v1562 = vunpack.c.l.s4 1966171168
        %v1563 = vunpack.c.0.s8 %v1562
        %v1564 = vlaneseq
        %v1565 = vshrl.u32 %v1564, 7
        %v1566 = vsub.s32 %v1563, %v1565
        %v1567 = vrot.slane %v1551, %v1566
        %v1569 = vunpack.c.l.s4 1966171168
        %v1570 = vunpack.c.0.s8 %v1569
        %v1571 = vlaneseq
        %v1572 = vshrl.u32 %v1571, 7
        %v1573 = vsub.s32 %v1570, %v1572
        %v1574 = vrot.slane %v1558, %v1573
        %v1576 = vunpack.c.l.s4 1966171168
        %v1577 = vunpack.c.0.s8 %v1576
        %v1578 = vlaneseq
        %v1579 = vshrl.u32 %v1578, 7
        %v1580 = vsub.s32 %v1577, %v1579
        %v1581 = vrot.slane %v1559, %v1580
        %v1583 = vunpack.c.l.s4 1966171168
        %v1584 = vunpack.c.0.s8 %v1583
        %v1585 = vlaneseq
        %v1586 = vshrl.u32 %v1585, 7
        %v1587 = vsub.s32 %v1584, %v1586
        %v1588 = vrot.slane %v1560, %v1587
        %v1589 = vcombine.high %v1567, %v1567
        %v1590 = vcombine.high %v1574, %v1574
        %v1591 = vcombine.high %v1581, %v1581
        %v1592 = vcombine.high %v1588, %v1588
        %v1593 = vcombine.high %v521, %v521
        %v1595 = vunpack.c.l.s4 1966171168
        %v1596 = vunpack.c.0.s8 %v1595
        %v1597 = vlaneseq
        %v1598 = vshrl.u32 %v1597, 7
        %v1599 = vsub.s32 %v1596, %v1598
        %v1600 = vrot.slane %v521, %v1599
        %v1602 = vunpack.c.l.s4 1966171168
        %v1603 = vunpack.c.0.s8 %v1602
        %v1604 = vlaneseq
        %v1605 = vshrl.u32 %v1604, 7
        %v1606 = vsub.s32 %v1603, %v1605
        %v1607 = vrot.slane %v1593, %v1606
        %v1608 = vcombine.high %v1600, %v1600
        %v1609 = vcombine.high %v1607, %v1607
        %v1611 = vunpack.c.l.s4 1966171168
        %v1612 = vunpack.c.0.s8 %v1611
        %v1613 = vlaneseq
        %v1614 = vshrl.u32 %v1613, 7
        %v1615 = vsub.s32 %v1612, %v1614
        %v1616 = vrot.slane %v1600, %v1615
        %v1618 = vunpack.c.l.s4 1966171168
        %v1619 = vunpack.c.0.s8 %v1618
        %v1620 = vlaneseq
        %v1621 = vshrl.u32 %v1620, 7
        %v1622 = vsub.s32 %v1619, %v1621
        %v1623 = vrot.slane %v1607, %v1622
        %v1625 = vunpack.c.l.s4 1966171168
        %v1626 = vunpack.c.0.s8 %v1625
        %v1627 = vlaneseq
        %v1628 = vshrl.u32 %v1627, 7
        %v1629 = vsub.s32 %v1626, %v1628
        %v1630 = vrot.slane %v1608, %v1629
        %v1632 = vunpack.c.l.s4 1966171168
        %v1633 = vunpack.c.0.s8 %v1632
        %v1634 = vlaneseq
        %v1635 = vshrl.u32 %v1634, 7
        %v1636 = vsub.s32 %v1633, %v1635
        %v1637 = vrot.slane %v1609, %v1636
        %v1638 = vcombine.high %v1616, %v1616
        %v1639 = vcombine.high %v1623, %v1623
        %v1640 = vcombine.high %v1630, %v1630
        %v1641 = vcombine.high %v1637, %v1637
        %v1642 = vcombine.high %v522, %v522
        %v1644 = vunpack.c.l.s4 1966171168
        %v1645 = vunpack.c.0.s8 %v1644
        %v1646 = vlaneseq
        %v1647 = vshrl.u32 %v1646, 7
        %v1648 = vsub.s32 %v1645, %v1647
        %v1649 = vrot.slane %v522, %v1648
        %v1651 = vunpack.c.l.s4 1966171168
        %v1652 = vunpack.c.0.s8 %v1651
        %v1653 = vlaneseq
        %v1654 = vshrl.u32 %v1653, 7
        %v1655 = vsub.s32 %v1652, %v1654
        %v1656 = vrot.slane %v1642, %v1655
        %v1657 = vcombine.high %v1649, %v1649
        %v1658 = vcombine.high %v1656, %v1656
        %v1660 = vunpack.c.l.s4 1966171168
        %v1661 = vunpack.c.0.s8 %v1660
        %v1662 = vlaneseq
        %v1663 = vshrl.u32 %v1662, 7
        %v1664 = vsub.s32 %v1661, %v1663
        %v1665 = vrot.slane %v1649, %v1664
        %v1667 = vunpack.c.l.s4 1966171168
        %v1668 = vunpack.c.0.s8 %v1667
        %v1669 = vlaneseq
        %v1670 = vshrl.u32 %v1669, 7
        %v1671 = vsub.s32 %v1668, %v1670
        %v1672 = vrot.slane %v1656, %v1671
        %v1674 = vunpack.c.l.s4 1966171168
        %v1675 = vunpack.c.0.s8 %v1674
        %v1676 = vlaneseq
        %v1677 = vshrl.u32 %v1676, 7
        %v1678 = vsub.s32 %v1675, %v1677
        %v1679 = vrot.slane %v1657, %v1678
        %v1681 = vunpack.c.l.s4 1966171168
        %v1682 = vunpack.c.0.s8 %v1681
        %v1683 = vlaneseq
        %v1684 = vshrl.u32 %v1683, 7
        %v1685 = vsub.s32 %v1682, %v1684
        %v1686 = vrot.slane %v1658, %v1685
        %v1687 = vcombine.high %v1665, %v1665
        %v1688 = vcombine.high %v1672, %v1672
        %v1689 = vcombine.high %v1679, %v1679
        %v1690 = vcombine.high %v1686, %v1686
        %v1691 = vcombine.high %v523, %v523
        %v1693 = vunpack.c.l.s4 1966171168
        %v1694 = vunpack.c.0.s8 %v1693
        %v1695 = vlaneseq
        %v1696 = vshrl.u32 %v1695, 7
        %v1697 = vsub.s32 %v1694, %v1696
        %v1698 = vrot.slane %v523, %v1697
        %v1700 = vunpack.c.l.s4 1966171168
        %v1701 = vunpack.c.0.s8 %v1700
        %v1702 = vlaneseq
        %v1703 = vshrl.u32 %v1702, 7
        %v1704 = vsub.s32 %v1701, %v1703
        %v1705 = vrot.slane %v1691, %v1704
        %v1706 = vcombine.high %v1698, %v1698
        %v1707 = vcombine.high %v1705, %v1705
        %v1709 = vunpack.c.l.s4 1966171168
        %v1710 = vunpack.c.0.s8 %v1709
        %v1711 = vlaneseq
        %v1712 = vshrl.u32 %v1711, 7
        %v1713 = vsub.s32 %v1710, %v1712
        %v1714 = vrot.slane %v1698, %v1713
        %v1716 = vunpack.c.l.s4 1966171168
        %v1717 = vunpack.c.0.s8 %v1716
        %v1718 = vlaneseq
        %v1719 = vshrl.u32 %v1718, 7
        %v1720 = vsub.s32 %v1717, %v1719
        %v1721 = vrot.slane %v1705, %v1720
        %v1723 = vunpack.c.l.s4 1966171168
        %v1724 = vunpack.c.0.s8 %v1723
        %v1725 = vlaneseq
        %v1726 = vshrl.u32 %v1725, 7
        %v1727 = vsub.s32 %v1724, %v1726
        %v1728 = vrot.slane %v1706, %v1727
        %v1730 = vunpack.c.l.s4 1966171168
        %v1731 = vunpack.c.0.s8 %v1730
        %v1732 = vlaneseq
        %v1733 = vshrl.u32 %v1732, 7
        %v1734 = vsub.s32 %v1731, %v1733
        %v1735 = vrot.slane %v1707, %v1734
        %v1736 = vcombine.high %v1714, %v1714
        %v1737 = vcombine.high %v1721, %v1721
        %v1738 = vcombine.high %v1728, %v1728
        %v1739 = vcombine.high %v1735, %v1735
        %v1740 = vcombine.high %v524, %v524
        %v1742 = vunpack.c.l.s4 1966171168
        %v1743 = vunpack.c.0.s8 %v1742
        %v1744 = vlaneseq
        %v1745 = vshrl.u32 %v1744, 7
        %v1746 = vsub.s32 %v1743, %v1745
        %v1747 = vrot.slane %v524, %v1746
        %v1749 = vunpack.c.l.s4 1966171168
        %v1750 = vunpack.c.0.s8 %v1749
        %v1751 = vlaneseq
        %v1752 = vshrl.u32 %v1751, 7
        %v1753 = vsub.s32 %v1750, %v1752
        %v1754 = vrot.slane %v1740, %v1753
        %v1755 = vcombine.high %v1747, %v1747
        %v1756 = vcombine.high %v1754, %v1754
        %v1758 = vunpack.c.l.s4 1966171168
        %v1759 = vunpack.c.0.s8 %v1758
        %v1760 = vlaneseq
        %v1761 = vshrl.u32 %v1760, 7
        %v1762 = vsub.s32 %v1759, %v1761
        %v1763 = vrot.slane %v1747, %v1762
        %v1765 = vunpack.c.l.s4 1966171168
        %v1766 = vunpack.c.0.s8 %v1765
        %v1767 = vlaneseq
        %v1768 = vshrl.u32 %v1767, 7
        %v1769 = vsub.s32 %v1766, %v1768
        %v1770 = vrot.slane %v1754, %v1769
        %v1772 = vunpack.c.l.s4 1966171168
        %v1773 = vunpack.c.0.s8 %v1772
        %v1774 = vlaneseq
        %v1775 = vshrl.u32 %v1774, 7
        %v1776 = vsub.s32 %v1773, %v1775
        %v1777 = vrot.slane %v1755, %v1776
        %v1779 = vunpack.c.l.s4 1966171168
        %v1780 = vunpack.c.0.s8 %v1779
        %v1781 = vlaneseq
        %v1782 = vshrl.u32 %v1781, 7
        %v1783 = vsub.s32 %v1780, %v1782
        %v1784 = vrot.slane %v1756, %v1783
        %v1785 = vcombine.high %v1763, %v1763
        %v1786 = vcombine.high %v1770, %v1770
        %v1787 = vcombine.high %v1777, %v1777
        %v1788 = vcombine.high %v1784, %v1784
        %v1789 = vcombine.high %v525, %v525
        %v1791 = vunpack.c.l.s4 1966171168
        %v1792 = vunpack.c.0.s8 %v1791
        %v1793 = vlaneseq
        %v1794 = vshrl.u32 %v1793, 7
        %v1795 = vsub.s32 %v1792, %v1794
        %v1796 = vrot.slane %v525, %v1795
        %v1798 = vunpack.c.l.s4 1966171168
        %v1799 = vunpack.c.0.s8 %v1798
        %v1800 = vlaneseq
        %v1801 = vshrl.u32 %v1800, 7
        %v1802 = vsub.s32 %v1799, %v1801
        %v1803 = vrot.slane %v1789, %v1802
        %v1804 = vcombine.high %v1796, %v1796
        %v1805 = vcombine.high %v1803, %v1803
        %v1807 = vunpack.c.l.s4 1966171168
        %v1808 = vunpack.c.0.s8 %v1807
        %v1809 = vlaneseq
        %v1810 = vshrl.u32 %v1809, 7
        %v1811 = vsub.s32 %v1808, %v1810
        %v1812 = vrot.slane %v1796, %v1811
        %v1814 = vunpack.c.l.s4 1966171168
        %v1815 = vunpack.c.0.s8 %v1814
        %v1816 = vlaneseq
        %v1817 = vshrl.u32 %v1816, 7
        %v1818 = vsub.s32 %v1815, %v1817
        %v1819 = vrot.slane %v1803, %v1818
        %v1821 = vunpack.c.l.s4 1966171168
        %v1822 = vunpack.c.0.s8 %v1821
        %v1823 = vlaneseq
        %v1824 = vshrl.u32 %v1823, 7
        %v1825 = vsub.s32 %v1822, %v1824
        %v1826 = vrot.slane %v1804, %v1825
        %v1828 = vunpack.c.l.s4 1966171168
        %v1829 = vunpack.c.0.s8 %v1828
        %v1830 = vlaneseq
        %v1831 = vshrl.u32 %v1830, 7
        %v1832 = vsub.s32 %v1829, %v1831
        %v1833 = vrot.slane %v1805, %v1832
        %v1834 = vcombine.high %v1812, %v1812
        %v1835 = vcombine.high %v1819, %v1819
        %v1836 = vcombine.high %v1826, %v1826
        %v1837 = vcombine.high %v1833, %v1833
        %v1838 = vcombine.high %v526, %v526
        %v1840 = vunpack.c.l.s4 1966171168
        %v1841 = vunpack.c.0.s8 %v1840
        %v1842 = vlaneseq
        %v1843 = vshrl.u32 %v1842, 7
        %v1844 = vsub.s32 %v1841, %v1843
        %v1845 = vrot.slane %v526, %v1844
        %v1847 = vunpack.c.l.s4 1966171168
        %v1848 = vunpack.c.0.s8 %v1847
        %v1849 = vlaneseq
        %v1850 = vshrl.u32 %v1849, 7
        %v1851 = vsub.s32 %v1848, %v1850
        %v1852 = vrot.slane %v1838, %v1851
        %v1853 = vcombine.high %v1845, %v1845
        %v1854 = vcombine.high %v1852, %v1852
        %v1856 = vunpack.c.l.s4 1966171168
        %v1857 = vunpack.c.0.s8 %v1856
        %v1858 = vlaneseq
        %v1859 = vshrl.u32 %v1858, 7
        %v1860 = vsub.s32 %v1857, %v1859
        %v1861 = vrot.slane %v1845, %v1860
        %v1863 = vunpack.c.l.s4 1966171168
        %v1864 = vunpack.c.0.s8 %v1863
        %v1865 = vlaneseq
        %v1866 = vshrl.u32 %v1865, 7
        %v1867 = vsub.s32 %v1864, %v1866
        %v1868 = vrot.slane %v1852, %v1867
        %v1870 = vunpack.c.l.s4 1966171168
        %v1871 = vunpack.c.0.s8 %v1870
        %v1872 = vlaneseq
        %v1873 = vshrl.u32 %v1872, 7
        %v1874 = vsub.s32 %v1871, %v1873
        %v1875 = vrot.slane %v1853, %v1874
        %v1877 = vunpack.c.l.s4 1966171168
        %v1878 = vunpack.c.0.s8 %v1877
        %v1879 = vlaneseq
        %v1880 = vshrl.u32 %v1879, 7
        %v1881 = vsub.s32 %v1878, %v1880
        %v1882 = vrot.slane %v1854, %v1881
        %v1883 = vcombine.high %v1861, %v1861
        %v1884 = vcombine.high %v1868, %v1868
        %v1885 = vcombine.high %v1875, %v1875
        %v1886 = vcombine.high %v1882, %v1882
        %v1887 = vcombine.high %v527, %v527
        %v1889 = vunpack.c.l.s4 1966171168
        %v1890 = vunpack.c.0.s8 %v1889
        %v1891 = vlaneseq
        %v1892 = vshrl.u32 %v1891, 7
        %v1893 = vsub.s32 %v1890, %v1892
        %v1894 = vrot.slane %v527, %v1893
        %v1896 = vunpack.c.l.s4 1966171168
        %v1897 = vunpack.c.0.s8 %v1896
        %v1898 = vlaneseq
        %v1899 = vshrl.u32 %v1898, 7
        %v1900 = vsub.s32 %v1897, %v1899
        %v1901 = vrot.slane %v1887, %v1900
        %v1902 = vcombine.high %v1894, %v1894
        %v1903 = vcombine.high %v1901, %v1901
        %v1905 = vunpack.c.l.s4 1966171168
        %v1906 = vunpack.c.0.s8 %v1905
        %v1907 = vlaneseq
        %v1908 = vshrl.u32 %v1907, 7
        %v1909 = vsub.s32 %v1906, %v1908
        %v1910 = vrot.slane %v1894, %v1909
        %v1912 = vunpack.c.l.s4 1966171168
        %v1913 = vunpack.c.0.s8 %v1912
        %v1914 = vlaneseq
        %v1915 = vshrl.u32 %v1914, 7
        %v1916 = vsub.s32 %v1913, %v1915
        %v1917 = vrot.slane %v1901, %v1916
        %v1919 = vunpack.c.l.s4 1966171168
        %v1920 = vunpack.c.0.s8 %v1919
        %v1921 = vlaneseq
        %v1922 = vshrl.u32 %v1921, 7
        %v1923 = vsub.s32 %v1920, %v1922
        %v1924 = vrot.slane %v1902, %v1923
        %v1926 = vunpack.c.l.s4 1966171168
        %v1927 = vunpack.c.0.s8 %v1926
        %v1928 = vlaneseq
        %v1929 = vshrl.u32 %v1928, 7
        %v1930 = vsub.s32 %v1927, %v1929
        %v1931 = vrot.slane %v1903, %v1930
        %v1932 = vcombine.high %v1910, %v1910
        %v1933 = vcombine.high %v1917, %v1917
        %v1934 = vcombine.high %v1924, %v1924
        %v1935 = vcombine.high %v1931, %v1931
        %v1936 = vcombine.high %v528, %v528
        %v1938 = vunpack.c.l.s4 1966171168
        %v1939 = vunpack.c.0.s8 %v1938
        %v1940 = vlaneseq
        %v1941 = vshrl.u32 %v1940, 7
        %v1942 = vsub.s32 %v1939, %v1941
        %v1943 = vrot.slane %v528, %v1942
        %v1945 = vunpack.c.l.s4 1966171168
        %v1946 = vunpack.c.0.s8 %v1945
        %v1947 = vlaneseq
        %v1948 = vshrl.u32 %v1947, 7
        %v1949 = vsub.s32 %v1946, %v1948
        %v1950 = vrot.slane %v1936, %v1949
        %v1951 = vcombine.high %v1943, %v1943
        %v1952 = vcombine.high %v1950, %v1950
        %v1954 = vunpack.c.l.s4 1966171168
        %v1955 = vunpack.c.0.s8 %v1954
        %v1956 = vlaneseq
        %v1957 = vshrl.u32 %v1956, 7
        %v1958 = vsub.s32 %v1955, %v1957
        %v1959 = vrot.slane %v1943, %v1958
        %v1961 = vunpack.c.l.s4 1966171168
        %v1962 = vunpack.c.0.s8 %v1961
        %v1963 = vlaneseq
        %v1964 = vshrl.u32 %v1963, 7
        %v1965 = vsub.s32 %v1962, %v1964
        %v1966 = vrot.slane %v1950, %v1965
        %v1968 = vunpack.c.l.s4 1966171168
        %v1969 = vunpack.c.0.s8 %v1968
        %v1970 = vlaneseq
        %v1971 = vshrl.u32 %v1970, 7
        %v1972 = vsub.s32 %v1969, %v1971
        %v1973 = vrot.slane %v1951, %v1972
        %v1975 = vunpack.c.l.s4 1966171168
        %v1976 = vunpack.c.0.s8 %v1975
        %v1977 = vlaneseq
        %v1978 = vshrl.u32 %v1977, 7
        %v1979 = vsub.s32 %v1976, %v1978
        %v1980 = vrot.slane %v1952, %v1979
        %v1981 = vcombine.high %v1959, %v1959
        %v1982 = vcombine.high %v1966, %v1966
        %v1983 = vcombine.high %v1973, %v1973
        %v1984 = vcombine.high %v1980, %v1980
        %v1985 = vcombine.high %v529, %v529
        %v1987 = vunpack.c.l.s4 1966171168
        %v1988 = vunpack.c.0.s8 %v1987
        %v1989 = vlaneseq
        %v1990 = vshrl.u32 %v1989, 7
        %v1991 = vsub.s32 %v1988, %v1990
        %v1992 = vrot.slane %v529, %v1991
        %v1994 = vunpack.c.l.s4 1966171168
        %v1995 = vunpack.c.0.s8 %v1994
        %v1996 = vlaneseq
        %v1997 = vshrl.u32 %v1996, 7
        %v1998 = vsub.s32 %v1995, %v1997
        %v1999 = vrot.slane %v1985, %v1998
        %v2000 = vcombine.high %v1992, %v1992
        %v2001 = vcombine.high %v1999, %v1999
        %v2003 = vunpack.c.l.s4 1966171168
        %v2004 = vunpack.c.0.s8 %v2003
        %v2005 = vlaneseq
        %v2006 = vshrl.u32 %v2005, 7
        %v2007 = vsub.s32 %v2004, %v2006
        %v2008 = vrot.slane %v1992, %v2007
        %v2010 = vunpack.c.l.s4 1966171168
        %v2011 = vunpack.c.0.s8 %v2010
        %v2012 = vlaneseq
        %v2013 = vshrl.u32 %v2012, 7
        %v2014 = vsub.s32 %v2011, %v2013
        %v2015 = vrot.slane %v1999, %v2014
        %v2017 = vunpack.c.l.s4 1966171168
        %v2018 = vunpack.c.0.s8 %v2017
        %v2019 = vlaneseq
        %v2020 = vshrl.u32 %v2019, 7
        %v2021 = vsub.s32 %v2018, %v2020
        %v2022 = vrot.slane %v2000, %v2021
        %v2024 = vunpack.c.l.s4 1966171168
        %v2025 = vunpack.c.0.s8 %v2024
        %v2026 = vlaneseq
        %v2027 = vshrl.u32 %v2026, 7
        %v2028 = vsub.s32 %v2025, %v2027
        %v2029 = vrot.slane %v2001, %v2028
        %v2030 = vcombine.high %v2008, %v2008
        %v2031 = vcombine.high %v2015, %v2015
        %v2032 = vcombine.high %v2022, %v2022
        %v2033 = vcombine.high %v2029, %v2029
        %v2034 = vcombine.high %v530, %v530
        %v2036 = vunpack.c.l.s4 1966171168
        %v2037 = vunpack.c.0.s8 %v2036
        %v2038 = vlaneseq
        %v2039 = vshrl.u32 %v2038, 7
        %v2040 = vsub.s32 %v2037, %v2039
        %v2041 = vrot.slane %v530, %v2040
        %v2043 = vunpack.c.l.s4 1966171168
        %v2044 = vunpack.c.0.s8 %v2043
        %v2045 = vlaneseq
        %v2046 = vshrl.u32 %v2045, 7
        %v2047 = vsub.s32 %v2044, %v2046
        %v2048 = vrot.slane %v2034, %v2047
        %v2049 = vcombine.high %v2041, %v2041
        %v2050 = vcombine.high %v2048, %v2048
        %v2052 = vunpack.c.l.s4 1966171168
        %v2053 = vunpack.c.0.s8 %v2052
        %v2054 = vlaneseq
        %v2055 = vshrl.u32 %v2054, 7
        %v2056 = vsub.s32 %v2053, %v2055
        %v2057 = vrot.slane %v2041, %v2056
        %v2059 = vunpack.c.l.s4 1966171168
        %v2060 = vunpack.c.0.s8 %v2059
        %v2061 = vlaneseq
        %v2062 = vshrl.u32 %v2061, 7
        %v2063 = vsub.s32 %v2060, %v2062
        %v2064 = vrot.slane %v2048, %v2063
        %v2066 = vunpack.c.l.s4 1966171168
        %v2067 = vunpack.c.0.s8 %v2066
        %v2068 = vlaneseq
        %v2069 = vshrl.u32 %v2068, 7
        %v2070 = vsub.s32 %v2067, %v2069
        %v2071 = vrot.slane %v2049, %v2070
        %v2073 = vunpack.c.l.s4 1966171168
        %v2074 = vunpack.c.0.s8 %v2073
        %v2075 = vlaneseq
        %v2076 = vshrl.u32 %v2075, 7
        %v2077 = vsub.s32 %v2074, %v2076
        %v2078 = vrot.slane %v2050, %v2077
        %v2079 = vcombine.high %v2057, %v2057
        %v2080 = vcombine.high %v2064, %v2064
        %v2081 = vcombine.high %v2071, %v2071
        %v2082 = vcombine.high %v2078, %v2078
        %v2083 = vcombine.high %v531, %v531
        %v2085 = vunpack.c.l.s4 1966171168
        %v2086 = vunpack.c.0.s8 %v2085
        %v2087 = vlaneseq
        %v2088 = vshrl.u32 %v2087, 7
        %v2089 = vsub.s32 %v2086, %v2088
        %v2090 = vrot.slane %v531, %v2089
        %v2092 = vunpack.c.l.s4 1966171168
        %v2093 = vunpack.c.0.s8 %v2092
        %v2094 = vlaneseq
        %v2095 = vshrl.u32 %v2094, 7
        %v2096 = vsub.s32 %v2093, %v2095
        %v2097 = vrot.slane %v2083, %v2096
        %v2098 = vcombine.high %v2090, %v2090
        %v2099 = vcombine.high %v2097, %v2097
        %v2101 = vunpack.c.l.s4 1966171168
        %v2102 = vunpack.c.0.s8 %v2101
        %v2103 = vlaneseq
        %v2104 = vshrl.u32 %v2103, 7
        %v2105 = vsub.s32 %v2102, %v2104
        %v2106 = vrot.slane %v2090, %v2105
        %v2108 = vunpack.c.l.s4 1966171168
        %v2109 = vunpack.c.0.s8 %v2108
        %v2110 = vlaneseq
        %v2111 = vshrl.u32 %v2110, 7
        %v2112 = vsub.s32 %v2109, %v2111
        %v2113 = vrot.slane %v2097, %v2112
        %v2115 = vunpack.c.l.s4 1966171168
        %v2116 = vunpack.c.0.s8 %v2115
        %v2117 = vlaneseq
        %v2118 = vshrl.u32 %v2117, 7
        %v2119 = vsub.s32 %v2116, %v2118
        %v2120 = vrot.slane %v2098, %v2119
        %v2122 = vunpack.c.l.s4 1966171168
        %v2123 = vunpack.c.0.s8 %v2122
        %v2124 = vlaneseq
        %v2125 = vshrl.u32 %v2124, 7
        %v2126 = vsub.s32 %v2123, %v2125
        %v2127 = vrot.slane %v2099, %v2126
        %v2128 = vcombine.high %v2106, %v2106
        %v2129 = vcombine.high %v2113, %v2113
        %v2130 = vcombine.high %v2120, %v2120
        %v2131 = vcombine.high %v2127, %v2127
        %v2388 = vlaneseq
        %v2389 = vshrl.u32 %v2388, 7
        %v2390 = vsub.s32 0, %v2389
        %v2391 = vrot.slane %v587, %v2390
        %v2392 = vlaneseq
        %v2393 = vshrl.u32 %v2392, 7
        %v2394 = vsub.s32 0, %v2393
        %v2395 = vrot.slane %v601, %v2394
        %v2396 = vlaneseq
        %v2397 = vshrl.u32 %v2396, 7
        %v2398 = vsub.s32 0, %v2397
        %v2399 = vrot.slane %v609, %v2398
        %v2400 = vlaneseq
        %v2401 = vshrl.u32 %v2400, 7
        %v2402 = vsub.s32 0, %v2401
        %v2403 = vrot.slane %v611, %v2402
        %v2404 = vlaneseq
        %v2405 = vshrl.u32 %v2404, 7
        %v2406 = vsub.s32 0, %v2405
        %v2407 = vrot.slane %v594, %v2406
        %v2408 = vlaneseq
        %v2409 = vshrl.u32 %v2408, 7
        %v2410 = vsub.s32 0, %v2409
        %v2411 = vrot.slane %v608, %v2410
        %v2412 = vlaneseq
        %v2413 = vshrl.u32 %v2412, 7
        %v2414 = vsub.s32 0, %v2413
        %v2415 = vrot.slane %v610, %v2414
        %v2416 = vlaneseq
        %v2417 = vshrl.u32 %v2416, 7
        %v2418 = vsub.s32 0, %v2417
        %v2419 = vrot.slane %v612, %v2418
        %v2420 = vlaneseq
        %v2421 = vshrl.u32 %v2420, 7
        %v2422 = vsub.s32 0, %v2421
        %v2423 = vrot.slane %v636, %v2422
        %v2424 = vlaneseq
        %v2425 = vshrl.u32 %v2424, 7
        %v2426 = vsub.s32 0, %v2425
        %v2427 = vrot.slane %v650, %v2426
        %v2428 = vlaneseq
        %v2429 = vshrl.u32 %v2428, 7
        %v2430 = vsub.s32 0, %v2429
        %v2431 = vrot.slane %v658, %v2430
        %v2432 = vlaneseq
        %v2433 = vshrl.u32 %v2432, 7
        %v2434 = vsub.s32 0, %v2433
        %v2435 = vrot.slane %v660, %v2434
        %v2436 = vlaneseq
        %v2437 = vshrl.u32 %v2436, 7
        %v2438 = vsub.s32 0, %v2437
        %v2439 = vrot.slane %v643, %v2438
        %v2440 = vlaneseq
        %v2441 = vshrl.u32 %v2440, 7
        %v2442 = vsub.s32 0, %v2441
        %v2443 = vrot.slane %v657, %v2442
        %v2444 = vlaneseq
        %v2445 = vshrl.u32 %v2444, 7
        %v2446 = vsub.s32 0, %v2445
        %v2447 = vrot.slane %v659, %v2446
        %v2448 = vlaneseq
        %v2449 = vshrl.u32 %v2448, 7
        %v2450 = vsub.s32 0, %v2449
        %v2451 = vrot.slane %v661, %v2450
        %v2452 = vlaneseq
        %v2453 = vshrl.u32 %v2452, 7
        %v2454 = vsub.s32 0, %v2453
        %v2455 = vrot.slane %v685, %v2454
        %v2456 = vlaneseq
        %v2457 = vshrl.u32 %v2456, 7
        %v2458 = vsub.s32 0, %v2457
        %v2459 = vrot.slane %v699, %v2458
        %v2460 = vlaneseq
        %v2461 = vshrl.u32 %v2460, 7
        %v2462 = vsub.s32 0, %v2461
        %v2463 = vrot.slane %v707, %v2462
        %v2464 = vlaneseq
        %v2465 = vshrl.u32 %v2464, 7
        %v2466 = vsub.s32 0, %v2465
        %v2467 = vrot.slane %v709, %v2466
        %v2468 = vlaneseq
        %v2469 = vshrl.u32 %v2468, 7
        %v2470 = vsub.s32 0, %v2469
        %v2471 = vrot.slane %v692, %v2470
        %v2472 = vlaneseq
        %v2473 = vshrl.u32 %v2472, 7
        %v2474 = vsub.s32 0, %v2473
        %v2475 = vrot.slane %v706, %v2474
        %v2476 = vlaneseq
        %v2477 = vshrl.u32 %v2476, 7
        %v2478 = vsub.s32 0, %v2477
        %v2479 = vrot.slane %v708, %v2478
        %v2480 = vlaneseq
        %v2481 = vshrl.u32 %v2480, 7
        %v2482 = vsub.s32 0, %v2481
        %v2483 = vrot.slane %v710, %v2482
        %v2484 = vlaneseq
        %v2485 = vshrl.u32 %v2484, 7
        %v2486 = vsub.s32 0, %v2485
        %v2487 = vrot.slane %v734, %v2486
        %v2488 = vlaneseq
        %v2489 = vshrl.u32 %v2488, 7
        %v2490 = vsub.s32 0, %v2489
        %v2491 = vrot.slane %v748, %v2490
        %v2492 = vlaneseq
        %v2493 = vshrl.u32 %v2492, 7
        %v2494 = vsub.s32 0, %v2493
        %v2495 = vrot.slane %v756, %v2494
        %v2496 = vlaneseq
        %v2497 = vshrl.u32 %v2496, 7
        %v2498 = vsub.s32 0, %v2497
        %v2499 = vrot.slane %v758, %v2498
        %v2500 = vlaneseq
        %v2501 = vshrl.u32 %v2500, 7
        %v2502 = vsub.s32 0, %v2501
        %v2503 = vrot.slane %v741, %v2502
        %v2504 = vlaneseq
        %v2505 = vshrl.u32 %v2504, 7
        %v2506 = vsub.s32 0, %v2505
        %v2507 = vrot.slane %v755, %v2506
        %v2508 = vlaneseq
        %v2509 = vshrl.u32 %v2508, 7
        %v2510 = vsub.s32 0, %v2509
        %v2511 = vrot.slane %v757, %v2510
        %v2512 = vlaneseq
        %v2513 = vshrl.u32 %v2512, 7
        %v2514 = vsub.s32 0, %v2513
        %v2515 = vrot.slane %v759, %v2514
        %v2516 = vlaneseq
        %v2517 = vshrl.u32 %v2516, 7
        %v2518 = vsub.s32 0, %v2517
        %v2519 = vrot.slane %v783, %v2518
        %v2520 = vlaneseq
        %v2521 = vshrl.u32 %v2520, 7
        %v2522 = vsub.s32 0, %v2521
        %v2523 = vrot.slane %v797, %v2522
        %v2524 = vlaneseq
        %v2525 = vshrl.u32 %v2524, 7
        %v2526 = vsub.s32 0, %v2525
        %v2527 = vrot.slane %v805, %v2526
        %v2528 = vlaneseq
        %v2529 = vshrl.u32 %v2528, 7
        %v2530 = vsub.s32 0, %v2529
        %v2531 = vrot.slane %v807, %v2530
        %v2532 = vlaneseq
        %v2533 = vshrl.u32 %v2532, 7
        %v2534 = vsub.s32 0, %v2533
        %v2535 = vrot.slane %v790, %v2534
        %v2536 = vlaneseq
        %v2537 = vshrl.u32 %v2536, 7
        %v2538 = vsub.s32 0, %v2537
        %v2539 = vrot.slane %v804, %v2538
        %v2540 = vlaneseq
        %v2541 = vshrl.u32 %v2540, 7
        %v2542 = vsub.s32 0, %v2541
        %v2543 = vrot.slane %v806, %v2542
        %v2544 = vlaneseq
        %v2545 = vshrl.u32 %v2544, 7
        %v2546 = vsub.s32 0, %v2545
        %v2547 = vrot.slane %v808, %v2546
        %v2548 = vlaneseq
        %v2549 = vshrl.u32 %v2548, 7
        %v2550 = vsub.s32 0, %v2549
        %v2551 = vrot.slane %v832, %v2550
        %v2552 = vlaneseq
        %v2553 = vshrl.u32 %v2552, 7
        %v2554 = vsub.s32 0, %v2553
        %v2555 = vrot.slane %v846, %v2554
        %v2556 = vlaneseq
        %v2557 = vshrl.u32 %v2556, 7
        %v2558 = vsub.s32 0, %v2557
        %v2559 = vrot.slane %v854, %v2558
        %v2560 = vlaneseq
        %v2561 = vshrl.u32 %v2560, 7
        %v2562 = vsub.s32 0, %v2561
        %v2563 = vrot.slane %v856, %v2562
        %v2564 = vlaneseq
        %v2565 = vshrl.u32 %v2564, 7
        %v2566 = vsub.s32 0, %v2565
        %v2567 = vrot.slane %v839, %v2566
        %v2568 = vlaneseq
        %v2569 = vshrl.u32 %v2568, 7
        %v2570 = vsub.s32 0, %v2569
        %v2571 = vrot.slane %v853, %v2570
        %v2572 = vlaneseq
        %v2573 = vshrl.u32 %v2572, 7
        %v2574 = vsub.s32 0, %v2573
        %v2575 = vrot.slane %v855, %v2574
        %v2576 = vlaneseq
        %v2577 = vshrl.u32 %v2576, 7
        %v2578 = vsub.s32 0, %v2577
        %v2579 = vrot.slane %v857, %v2578
        %v2580 = vlaneseq
        %v2581 = vshrl.u32 %v2580, 7
        %v2582 = vsub.s32 0, %v2581
        %v2583 = vrot.slane %v881, %v2582
        %v2584 = vlaneseq
        %v2585 = vshrl.u32 %v2584, 7
        %v2586 = vsub.s32 0, %v2585
        %v2587 = vrot.slane %v895, %v2586
        %v2588 = vlaneseq
        %v2589 = vshrl.u32 %v2588, 7
        %v2590 = vsub.s32 0, %v2589
        %v2591 = vrot.slane %v903, %v2590
        %v2592 = vlaneseq
        %v2593 = vshrl.u32 %v2592, 7
        %v2594 = vsub.s32 0, %v2593
        %v2595 = vrot.slane %v905, %v2594
        %v2596 = vlaneseq
        %v2597 = vshrl.u32 %v2596, 7
        %v2598 = vsub.s32 0, %v2597
        %v2599 = vrot.slane %v888, %v2598
        %v2600 = vlaneseq
        %v2601 = vshrl.u32 %v2600, 7
        %v2602 = vsub.s32 0, %v2601
        %v2603 = vrot.slane %v902, %v2602
        %v2604 = vlaneseq
        %v2605 = vshrl.u32 %v2604, 7
        %v2606 = vsub.s32 0, %v2605
        %v2607 = vrot.slane %v904, %v2606
        %v2608 = vlaneseq
        %v2609 = vshrl.u32 %v2608, 7
        %v2610 = vsub.s32 0, %v2609
        %v2611 = vrot.slane %v906, %v2610
        %v2612 = vlaneseq
        %v2613 = vshrl.u32 %v2612, 7
        %v2614 = vsub.s32 0, %v2613
        %v2615 = vrot.slane %v930, %v2614
        %v2616 = vlaneseq
        %v2617 = vshrl.u32 %v2616, 7
        %v2618 = vsub.s32 0, %v2617
        %v2619 = vrot.slane %v944, %v2618
        %v2620 = vlaneseq
        %v2621 = vshrl.u32 %v2620, 7
        %v2622 = vsub.s32 0, %v2621
        %v2623 = vrot.slane %v952, %v2622
        %v2624 = vlaneseq
        %v2625 = vshrl.u32 %v2624, 7
        %v2626 = vsub.s32 0, %v2625
        %v2627 = vrot.slane %v954, %v2626
        %v2628 = vlaneseq
        %v2629 = vshrl.u32 %v2628, 7
        %v2630 = vsub.s32 0, %v2629
        %v2631 = vrot.slane %v937, %v2630
        %v2632 = vlaneseq
        %v2633 = vshrl.u32 %v2632, 7
        %v2634 = vsub.s32 0, %v2633
        %v2635 = vrot.slane %v951, %v2634
        %v2636 = vlaneseq
        %v2637 = vshrl.u32 %v2636, 7
        %v2638 = vsub.s32 0, %v2637
        %v2639 = vrot.slane %v953, %v2638
        %v2640 = vlaneseq
        %v2641 = vshrl.u32 %v2640, 7
        %v2642 = vsub.s32 0, %v2641
        %v2643 = vrot.slane %v955, %v2642
        %v2644 = vlaneseq
        %v2645 = vshrl.u32 %v2644, 7
        %v2646 = vsub.s32 0, %v2645
        %v2647 = vrot.slane %v979, %v2646
        %v2648 = vlaneseq
        %v2649 = vshrl.u32 %v2648, 7
        %v2650 = vsub.s32 0, %v2649
        %v2651 = vrot.slane %v993, %v2650
        %v2652 = vlaneseq
        %v2653 = vshrl.u32 %v2652, 7
        %v2654 = vsub.s32 0, %v2653
        %v2655 = vrot.slane %v1001, %v2654
        %v2656 = vlaneseq
        %v2657 = vshrl.u32 %v2656, 7
        %v2658 = vsub.s32 0, %v2657
        %v2659 = vrot.slane %v1003, %v2658
        %v2660 = vlaneseq
        %v2661 = vshrl.u32 %v2660, 7
        %v2662 = vsub.s32 0, %v2661
        %v2663 = vrot.slane %v986, %v2662
        %v2664 = vlaneseq
        %v2665 = vshrl.u32 %v2664, 7
        %v2666 = vsub.s32 0, %v2665
        %v2667 = vrot.slane %v1000, %v2666
        %v2668 = vlaneseq
        %v2669 = vshrl.u32 %v2668, 7
        %v2670 = vsub.s32 0, %v2669
        %v2671 = vrot.slane %v1002, %v2670
        %v2672 = vlaneseq
        %v2673 = vshrl.u32 %v2672, 7
        %v2674 = vsub.s32 0, %v2673
        %v2675 = vrot.slane %v1004, %v2674
        %v2676 = vlaneseq
        %v2677 = vshrl.u32 %v2676, 7
        %v2678 = vsub.s32 0, %v2677
        %v2679 = vrot.slane %v1028, %v2678
        %v2680 = vlaneseq
        %v2681 = vshrl.u32 %v2680, 7
        %v2682 = vsub.s32 0, %v2681
        %v2683 = vrot.slane %v1042, %v2682
        %v2684 = vlaneseq
        %v2685 = vshrl.u32 %v2684, 7
        %v2686 = vsub.s32 0, %v2685
        %v2687 = vrot.slane %v1050, %v2686
        %v2688 = vlaneseq
        %v2689 = vshrl.u32 %v2688, 7
        %v2690 = vsub.s32 0, %v2689
        %v2691 = vrot.slane %v1052, %v2690
        %v2692 = vlaneseq
        %v2693 = vshrl.u32 %v2692, 7
        %v2694 = vsub.s32 0, %v2693
        %v2695 = vrot.slane %v1035, %v2694
        %v2696 = vlaneseq
        %v2697 = vshrl.u32 %v2696, 7
        %v2698 = vsub.s32 0, %v2697
        %v2699 = vrot.slane %v1049, %v2698
        %v2700 = vlaneseq
        %v2701 = vshrl.u32 %v2700, 7
        %v2702 = vsub.s32 0, %v2701
        %v2703 = vrot.slane %v1051, %v2702
        %v2704 = vlaneseq
        %v2705 = vshrl.u32 %v2704, 7
        %v2706 = vsub.s32 0, %v2705
        %v2707 = vrot.slane %v1053, %v2706
        %v2708 = vlaneseq
        %v2709 = vshrl.u32 %v2708, 7
        %v2710 = vsub.s32 0, %v2709
        %v2711 = vrot.slane %v1077, %v2710
        %v2712 = vlaneseq
        %v2713 = vshrl.u32 %v2712, 7
        %v2714 = vsub.s32 0, %v2713
        %v2715 = vrot.slane %v1091, %v2714
        %v2716 = vlaneseq
        %v2717 = vshrl.u32 %v2716, 7
        %v2718 = vsub.s32 0, %v2717
        %v2719 = vrot.slane %v1099, %v2718
        %v2720 = vlaneseq
        %v2721 = vshrl.u32 %v2720, 7
        %v2722 = vsub.s32 0, %v2721
        %v2723 = vrot.slane %v1101, %v2722
        %v2724 = vlaneseq
        %v2725 = vshrl.u32 %v2724, 7
        %v2726 = vsub.s32 0, %v2725
        %v2727 = vrot.slane %v1084, %v2726
        %v2728 = vlaneseq
        %v2729 = vshrl.u32 %v2728, 7
        %v2730 = vsub.s32 0, %v2729
        %v2731 = vrot.slane %v1098, %v2730
        %v2732 = vlaneseq
        %v2733 = vshrl.u32 %v2732, 7
        %v2734 = vsub.s32 0, %v2733
        %v2735 = vrot.slane %v1100, %v2734
        %v2736 = vlaneseq
        %v2737 = vshrl.u32 %v2736, 7
        %v2738 = vsub.s32 0, %v2737
        %v2739 = vrot.slane %v1102, %v2738
        %v2740 = vlaneseq
        %v2741 = vshrl.u32 %v2740, 7
        %v2742 = vsub.s32 0, %v2741
        %v2743 = vrot.slane %v1126, %v2742
        %v2744 = vlaneseq
        %v2745 = vshrl.u32 %v2744, 7
        %v2746 = vsub.s32 0, %v2745
        %v2747 = vrot.slane %v1140, %v2746
        %v2748 = vlaneseq
        %v2749 = vshrl.u32 %v2748, 7
        %v2750 = vsub.s32 0, %v2749
        %v2751 = vrot.slane %v1148, %v2750
        %v2752 = vlaneseq
        %v2753 = vshrl.u32 %v2752, 7
        %v2754 = vsub.s32 0, %v2753
        %v2755 = vrot.slane %v1150, %v2754
        %v2756 = vlaneseq
        %v2757 = vshrl.u32 %v2756, 7
        %v2758 = vsub.s32 0, %v2757
        %v2759 = vrot.slane %v1133, %v2758
        %v2760 = vlaneseq
        %v2761 = vshrl.u32 %v2760, 7
        %v2762 = vsub.s32 0, %v2761
        %v2763 = vrot.slane %v1147, %v2762
        %v2764 = vlaneseq
        %v2765 = vshrl.u32 %v2764, 7
        %v2766 = vsub.s32 0, %v2765
        %v2767 = vrot.slane %v1149, %v2766
        %v2768 = vlaneseq
        %v2769 = vshrl.u32 %v2768, 7
        %v2770 = vsub.s32 0, %v2769
        %v2771 = vrot.slane %v1151, %v2770
        %v2772 = vlaneseq
        %v2773 = vshrl.u32 %v2772, 7
        %v2774 = vsub.s32 0, %v2773
        %v2775 = vrot.slane %v1175, %v2774
        %v2776 = vlaneseq
        %v2777 = vshrl.u32 %v2776, 7
        %v2778 = vsub.s32 0, %v2777
        %v2779 = vrot.slane %v1189, %v2778
        %v2780 = vlaneseq
        %v2781 = vshrl.u32 %v2780, 7
        %v2782 = vsub.s32 0, %v2781
        %v2783 = vrot.slane %v1197, %v2782
        %v2784 = vlaneseq
        %v2785 = vshrl.u32 %v2784, 7
        %v2786 = vsub.s32 0, %v2785
        %v2787 = vrot.slane %v1199, %v2786
        %v2788 = vlaneseq
        %v2789 = vshrl.u32 %v2788, 7
        %v2790 = vsub.s32 0, %v2789
        %v2791 = vrot.slane %v1182, %v2790
        %v2792 = vlaneseq
        %v2793 = vshrl.u32 %v2792, 7
        %v2794 = vsub.s32 0, %v2793
        %v2795 = vrot.slane %v1196, %v2794
        %v2796 = vlaneseq
        %v2797 = vshrl.u32 %v2796, 7
        %v2798 = vsub.s32 0, %v2797
        %v2799 = vrot.slane %v1198, %v2798
        %v2800 = vlaneseq
        %v2801 = vshrl.u32 %v2800, 7
        %v2802 = vsub.s32 0, %v2801
        %v2803 = vrot.slane %v1200, %v2802
        %v2804 = vlaneseq
        %v2805 = vshrl.u32 %v2804, 7
        %v2806 = vsub.s32 0, %v2805
        %v2807 = vrot.slane %v1224, %v2806
        %v2808 = vlaneseq
        %v2809 = vshrl.u32 %v2808, 7
        %v2810 = vsub.s32 0, %v2809
        %v2811 = vrot.slane %v1238, %v2810
        %v2812 = vlaneseq
        %v2813 = vshrl.u32 %v2812, 7
        %v2814 = vsub.s32 0, %v2813
        %v2815 = vrot.slane %v1246, %v2814
        %v2816 = vlaneseq
        %v2817 = vshrl.u32 %v2816, 7
        %v2818 = vsub.s32 0, %v2817
        %v2819 = vrot.slane %v1248, %v2818
        %v2820 = vlaneseq
        %v2821 = vshrl.u32 %v2820, 7
        %v2822 = vsub.s32 0, %v2821
        %v2823 = vrot.slane %v1231, %v2822
        %v2824 = vlaneseq
        %v2825 = vshrl.u32 %v2824, 7
        %v2826 = vsub.s32 0, %v2825
        %v2827 = vrot.slane %v1245, %v2826
        %v2828 = vlaneseq
        %v2829 = vshrl.u32 %v2828, 7
        %v2830 = vsub.s32 0, %v2829
        %v2831 = vrot.slane %v1247, %v2830
        %v2832 = vlaneseq
        %v2833 = vshrl.u32 %v2832, 7
        %v2834 = vsub.s32 0, %v2833
        %v2835 = vrot.slane %v1249, %v2834
        %v2836 = vlaneseq
        %v2837 = vshrl.u32 %v2836, 7
        %v2838 = vsub.s32 0, %v2837
        %v2839 = vrot.slane %v1273, %v2838
        %v2840 = vlaneseq
        %v2841 = vshrl.u32 %v2840, 7
        %v2842 = vsub.s32 0, %v2841
        %v2843 = vrot.slane %v1287, %v2842
        %v2844 = vlaneseq
        %v2845 = vshrl.u32 %v2844, 7
        %v2846 = vsub.s32 0, %v2845
        %v2847 = vrot.slane %v1295, %v2846
        %v2848 = vlaneseq
        %v2849 = vshrl.u32 %v2848, 7
        %v2850 = vsub.s32 0, %v2849
        %v2851 = vrot.slane %v1297, %v2850
        %v2852 = vlaneseq
        %v2853 = vshrl.u32 %v2852, 7
        %v2854 = vsub.s32 0, %v2853
        %v2855 = vrot.slane %v1280, %v2854
        %v2856 = vlaneseq
        %v2857 = vshrl.u32 %v2856, 7
        %v2858 = vsub.s32 0, %v2857
        %v2859 = vrot.slane %v1294, %v2858
        %v2860 = vlaneseq
        %v2861 = vshrl.u32 %v2860, 7
        %v2862 = vsub.s32 0, %v2861
        %v2863 = vrot.slane %v1296, %v2862
        %v2864 = vlaneseq
        %v2865 = vshrl.u32 %v2864, 7
        %v2866 = vsub.s32 0, %v2865
        %v2867 = vrot.slane %v1298, %v2866
        %v2868 = vlaneseq
        %v2869 = vshrl.u32 %v2868, 7
        %v2870 = vsub.s32 0, %v2869
        %v2871 = vrot.slane %v1322, %v2870
        %v2872 = vlaneseq
        %v2873 = vshrl.u32 %v2872, 7
        %v2874 = vsub.s32 0, %v2873
        %v2875 = vrot.slane %v1336, %v2874
        %v2876 = vlaneseq
        %v2877 = vshrl.u32 %v2876, 7
        %v2878 = vsub.s32 0, %v2877
        %v2879 = vrot.slane %v1344, %v2878
        %v2880 = vlaneseq
        %v2881 = vshrl.u32 %v2880, 7
        %v2882 = vsub.s32 0, %v2881
        %v2883 = vrot.slane %v1346, %v2882
        %v2884 = vlaneseq
        %v2885 = vshrl.u32 %v2884, 7
        %v2886 = vsub.s32 0, %v2885
        %v2887 = vrot.slane %v1329, %v2886
        %v2888 = vlaneseq
        %v2889 = vshrl.u32 %v2888, 7
        %v2890 = vsub.s32 0, %v2889
        %v2891 = vrot.slane %v1343, %v2890
        %v2892 = vlaneseq
        %v2893 = vshrl.u32 %v2892, 7
        %v2894 = vsub.s32 0, %v2893
        %v2895 = vrot.slane %v1345, %v2894
        %v2896 = vlaneseq
        %v2897 = vshrl.u32 %v2896, 7
        %v2898 = vsub.s32 0, %v2897
        %v2899 = vrot.slane %v1347, %v2898
        %v2900 = vlaneseq
        %v2901 = vshrl.u32 %v2900, 7
        %v2902 = vsub.s32 0, %v2901
        %v2903 = vrot.slane %v1371, %v2902
        %v2904 = vlaneseq
        %v2905 = vshrl.u32 %v2904, 7
        %v2906 = vsub.s32 0, %v2905
        %v2907 = vrot.slane %v1385, %v2906
        %v2908 = vlaneseq
        %v2909 = vshrl.u32 %v2908, 7
        %v2910 = vsub.s32 0, %v2909
        %v2911 = vrot.slane %v1393, %v2910
        %v2912 = vlaneseq
        %v2913 = vshrl.u32 %v2912, 7
        %v2914 = vsub.s32 0, %v2913
        %v2915 = vrot.slane %v1395, %v2914
        %v2916 = vlaneseq
        %v2917 = vshrl.u32 %v2916, 7
        %v2918 = vsub.s32 0, %v2917
        %v2919 = vrot.slane %v1378, %v2918
        %v2920 = vlaneseq
        %v2921 = vshrl.u32 %v2920, 7
        %v2922 = vsub.s32 0, %v2921
        %v2923 = vrot.slane %v1392, %v2922
        %v2924 = vlaneseq
        %v2925 = vshrl.u32 %v2924, 7
        %v2926 = vsub.s32 0, %v2925
        %v2927 = vrot.slane %v1394, %v2926
        %v2928 = vlaneseq
        %v2929 = vshrl.u32 %v2928, 7
        %v2930 = vsub.s32 0, %v2929
        %v2931 = vrot.slane %v1396, %v2930
        %v2932 = vlaneseq
        %v2933 = vshrl.u32 %v2932, 7
        %v2934 = vsub.s32 0, %v2933
        %v2935 = vrot.slane %v1420, %v2934
        %v2936 = vlaneseq
        %v2937 = vshrl.u32 %v2936, 7
        %v2938 = vsub.s32 0, %v2937
        %v2939 = vrot.slane %v1434, %v2938
        %v2940 = vlaneseq
        %v2941 = vshrl.u32 %v2940, 7
        %v2942 = vsub.s32 0, %v2941
        %v2943 = vrot.slane %v1442, %v2942
        %v2944 = vlaneseq
        %v2945 = vshrl.u32 %v2944, 7
        %v2946 = vsub.s32 0, %v2945
        %v2947 = vrot.slane %v1444, %v2946
        %v2948 = vlaneseq
        %v2949 = vshrl.u32 %v2948, 7
        %v2950 = vsub.s32 0, %v2949
        %v2951 = vrot.slane %v1427, %v2950
        %v2952 = vlaneseq
        %v2953 = vshrl.u32 %v2952, 7
        %v2954 = vsub.s32 0, %v2953
        %v2955 = vrot.slane %v1441, %v2954
        %v2956 = vlaneseq
        %v2957 = vshrl.u32 %v2956, 7
        %v2958 = vsub.s32 0, %v2957
        %v2959 = vrot.slane %v1443, %v2958
        %v2960 = vlaneseq
        %v2961 = vshrl.u32 %v2960, 7
        %v2962 = vsub.s32 0, %v2961
        %v2963 = vrot.slane %v1445, %v2962
        %v2964 = vlaneseq
        %v2965 = vshrl.u32 %v2964, 7
        %v2966 = vsub.s32 0, %v2965
        %v2967 = vrot.slane %v1469, %v2966
        %v2968 = vlaneseq
        %v2969 = vshrl.u32 %v2968, 7
        %v2970 = vsub.s32 0, %v2969
        %v2971 = vrot.slane %v1483, %v2970
        %v2972 = vlaneseq
        %v2973 = vshrl.u32 %v2972, 7
        %v2974 = vsub.s32 0, %v2973
        %v2975 = vrot.slane %v1491, %v2974
        %v2976 = vlaneseq
        %v2977 = vshrl.u32 %v2976, 7
        %v2978 = vsub.s32 0, %v2977
        %v2979 = vrot.slane %v1493, %v2978
        %v2980 = vlaneseq
        %v2981 = vshrl.u32 %v2980, 7
        %v2982 = vsub.s32 0, %v2981
        %v2983 = vrot.slane %v1476, %v2982
        %v2984 = vlaneseq
        %v2985 = vshrl.u32 %v2984, 7
        %v2986 = vsub.s32 0, %v2985
        %v2987 = vrot.slane %v1490, %v2986
        %v2988 = vlaneseq
        %v2989 = vshrl.u32 %v2988, 7
        %v2990 = vsub.s32 0, %v2989
        %v2991 = vrot.slane %v1492, %v2990
        %v2992 = vlaneseq
        %v2993 = vshrl.u32 %v2992, 7
        %v2994 = vsub.s32 0, %v2993
        %v2995 = vrot.slane %v1494, %v2994
        %v2996 = vlaneseq
        %v2997 = vshrl.u32 %v2996, 7
        %v2998 = vsub.s32 0, %v2997
        %v2999 = vrot.slane %v1518, %v2998
        %v3000 = vlaneseq
        %v3001 = vshrl.u32 %v3000, 7
        %v3002 = vsub.s32 0, %v3001
        %v3003 = vrot.slane %v1532, %v3002
        %v3004 = vlaneseq
        %v3005 = vshrl.u32 %v3004, 7
        %v3006 = vsub.s32 0, %v3005
        %v3007 = vrot.slane %v1540, %v3006
        %v3008 = vlaneseq
        %v3009 = vshrl.u32 %v3008, 7
        %v3010 = vsub.s32 0, %v3009
        %v3011 = vrot.slane %v1542, %v3010
        %v3012 = vlaneseq
        %v3013 = vshrl.u32 %v3012, 7
        %v3014 = vsub.s32 0, %v3013
        %v3015 = vrot.slane %v1525, %v3014
        %v3016 = vlaneseq
        %v3017 = vshrl.u32 %v3016, 7
        %v3018 = vsub.s32 0, %v3017
        %v3019 = vrot.slane %v1539, %v3018
        %v3020 = vlaneseq
        %v3021 = vshrl.u32 %v3020, 7
        %v3022 = vsub.s32 0, %v3021
        %v3023 = vrot.slane %v1541, %v3022
        %v3024 = vlaneseq
        %v3025 = vshrl.u32 %v3024, 7
        %v3026 = vsub.s32 0, %v3025
        %v3027 = vrot.slane %v1543, %v3026
        %v3028 = vlaneseq
        %v3029 = vshrl.u32 %v3028, 7
        %v3030 = vsub.s32 0, %v3029
        %v3031 = vrot.slane %v1567, %v3030
        %v3032 = vlaneseq
        %v3033 = vshrl.u32 %v3032, 7
        %v3034 = vsub.s32 0, %v3033
        %v3035 = vrot.slane %v1581, %v3034
        %v3036 = vlaneseq
        %v3037 = vshrl.u32 %v3036, 7
        %v3038 = vsub.s32 0, %v3037
        %v3039 = vrot.slane %v1589, %v3038
        %v3040 = vlaneseq
        %v3041 = vshrl.u32 %v3040, 7
        %v3042 = vsub.s32 0, %v3041
        %v3043 = vrot.slane %v1591, %v3042
        %v3044 = vlaneseq
        %v3045 = vshrl.u32 %v3044, 7
        %v3046 = vsub.s32 0, %v3045
        %v3047 = vrot.slane %v1574, %v3046
        %v3048 = vlaneseq
        %v3049 = vshrl.u32 %v3048, 7
        %v3050 = vsub.s32 0, %v3049
        %v3051 = vrot.slane %v1588, %v3050
        %v3052 = vlaneseq
        %v3053 = vshrl.u32 %v3052, 7
        %v3054 = vsub.s32 0, %v3053
        %v3055 = vrot.slane %v1590, %v3054
        %v3056 = vlaneseq
        %v3057 = vshrl.u32 %v3056, 7
        %v3058 = vsub.s32 0, %v3057
        %v3059 = vrot.slane %v1592, %v3058
        %v3060 = vlaneseq
        %v3061 = vshrl.u32 %v3060, 7
        %v3062 = vsub.s32 0, %v3061
        %v3063 = vrot.slane %v1616, %v3062
        %v3064 = vlaneseq
        %v3065 = vshrl.u32 %v3064, 7
        %v3066 = vsub.s32 0, %v3065
        %v3067 = vrot.slane %v1630, %v3066
        %v3068 = vlaneseq
        %v3069 = vshrl.u32 %v3068, 7
        %v3070 = vsub.s32 0, %v3069
        %v3071 = vrot.slane %v1638, %v3070
        %v3072 = vlaneseq
        %v3073 = vshrl.u32 %v3072, 7
        %v3074 = vsub.s32 0, %v3073
        %v3075 = vrot.slane %v1640, %v3074
        %v3076 = vlaneseq
        %v3077 = vshrl.u32 %v3076, 7
        %v3078 = vsub.s32 0, %v3077
        %v3079 = vrot.slane %v1623, %v3078
        %v3080 = vlaneseq
        %v3081 = vshrl.u32 %v3080, 7
        %v3082 = vsub.s32 0, %v3081
        %v3083 = vrot.slane %v1637, %v3082
        %v3084 = vlaneseq
        %v3085 = vshrl.u32 %v3084, 7
        %v3086 = vsub.s32 0, %v3085
        %v3087 = vrot.slane %v1639, %v3086
        %v3088 = vlaneseq
        %v3089 = vshrl.u32 %v3088, 7
        %v3090 = vsub.s32 0, %v3089
        %v3091 = vrot.slane %v1641, %v3090
        %v3092 = vlaneseq
        %v3093 = vshrl.u32 %v3092, 7
        %v3094 = vsub.s32 0, %v3093
        %v3095 = vrot.slane %v1665, %v3094
        %v3096 = vlaneseq
        %v3097 = vshrl.u32 %v3096, 7
        %v3098 = vsub.s32 0, %v3097
        %v3099 = vrot.slane %v1679, %v3098
        %v3100 = vlaneseq
        %v3101 = vshrl.u32 %v3100, 7
        %v3102 = vsub.s32 0, %v3101
        %v3103 = vrot.slane %v1687, %v3102
        %v3104 = vlaneseq
        %v3105 = vshrl.u32 %v3104, 7
        %v3106 = vsub.s32 0, %v3105
        %v3107 = vrot.slane %v1689, %v3106
        %v3108 = vlaneseq
        %v3109 = vshrl.u32 %v3108, 7
        %v3110 = vsub.s32 0, %v3109
        %v3111 = vrot.slane %v1672, %v3110
        %v3112 = vlaneseq
        %v3113 = vshrl.u32 %v3112, 7
        %v3114 = vsub.s32 0, %v3113
        %v3115 = vrot.slane %v1686, %v3114
        %v3116 = vlaneseq
        %v3117 = vshrl.u32 %v3116, 7
        %v3118 = vsub.s32 0, %v3117
        %v3119 = vrot.slane %v1688, %v3118
        %v3120 = vlaneseq
        %v3121 = vshrl.u32 %v3120, 7
        %v3122 = vsub.s32 0, %v3121
        %v3123 = vrot.slane %v1690, %v3122
        %v3124 = vlaneseq
        %v3125 = vshrl.u32 %v3124, 7
        %v3126 = vsub.s32 0, %v3125
        %v3127 = vrot.slane %v1714, %v3126
        %v3128 = vlaneseq
        %v3129 = vshrl.u32 %v3128, 7
        %v3130 = vsub.s32 0, %v3129
        %v3131 = vrot.slane %v1728, %v3130
        %v3132 = vlaneseq
        %v3133 = vshrl.u32 %v3132, 7
        %v3134 = vsub.s32 0, %v3133
        %v3135 = vrot.slane %v1736, %v3134
        %v3136 = vlaneseq
        %v3137 = vshrl.u32 %v3136, 7
        %v3138 = vsub.s32 0, %v3137
        %v3139 = vrot.slane %v1738, %v3138
        %v3140 = vlaneseq
        %v3141 = vshrl.u32 %v3140, 7
        %v3142 = vsub.s32 0, %v3141
        %v3143 = vrot.slane %v1721, %v3142
        %v3144 = vlaneseq
        %v3145 = vshrl.u32 %v3144, 7
        %v3146 = vsub.s32 0, %v3145
        %v3147 = vrot.slane %v1735, %v3146
        %v3148 = vlaneseq
        %v3149 = vshrl.u32 %v3148, 7
        %v3150 = vsub.s32 0, %v3149
        %v3151 = vrot.slane %v1737, %v3150
        %v3152 = vlaneseq
        %v3153 = vshrl.u32 %v3152, 7
        %v3154 = vsub.s32 0, %v3153
        %v3155 = vrot.slane %v1739, %v3154
        %v3156 = vlaneseq
        %v3157 = vshrl.u32 %v3156, 7
        %v3158 = vsub.s32 0, %v3157
        %v3159 = vrot.slane %v1763, %v3158
        %v3160 = vlaneseq
        %v3161 = vshrl.u32 %v3160, 7
        %v3162 = vsub.s32 0, %v3161
        %v3163 = vrot.slane %v1777, %v3162
        %v3164 = vlaneseq
        %v3165 = vshrl.u32 %v3164, 7
        %v3166 = vsub.s32 0, %v3165
        %v3167 = vrot.slane %v1785, %v3166
        %v3168 = vlaneseq
        %v3169 = vshrl.u32 %v3168, 7
        %v3170 = vsub.s32 0, %v3169
        %v3171 = vrot.slane %v1787, %v3170
        %v3172 = vlaneseq
        %v3173 = vshrl.u32 %v3172, 7
        %v3174 = vsub.s32 0, %v3173
        %v3175 = vrot.slane %v1770, %v3174
        %v3176 = vlaneseq
        %v3177 = vshrl.u32 %v3176, 7
        %v3178 = vsub.s32 0, %v3177
        %v3179 = vrot.slane %v1784, %v3178
        %v3180 = vlaneseq
        %v3181 = vshrl.u32 %v3180, 7
        %v3182 = vsub.s32 0, %v3181
        %v3183 = vrot.slane %v1786, %v3182
        %v3184 = vlaneseq
        %v3185 = vshrl.u32 %v3184, 7
        %v3186 = vsub.s32 0, %v3185
        %v3187 = vrot.slane %v1788, %v3186
        %v3188 = vlaneseq
        %v3189 = vshrl.u32 %v3188, 7
        %v3190 = vsub.s32 0, %v3189
        %v3191 = vrot.slane %v1812, %v3190
        %v3192 = vlaneseq
        %v3193 = vshrl.u32 %v3192, 7
        %v3194 = vsub.s32 0, %v3193
        %v3195 = vrot.slane %v1826, %v3194
        %v3196 = vlaneseq
        %v3197 = vshrl.u32 %v3196, 7
        %v3198 = vsub.s32 0, %v3197
        %v3199 = vrot.slane %v1834, %v3198
        %v3200 = vlaneseq
        %v3201 = vshrl.u32 %v3200, 7
        %v3202 = vsub.s32 0, %v3201
        %v3203 = vrot.slane %v1836, %v3202
        %v3204 = vlaneseq
        %v3205 = vshrl.u32 %v3204, 7
        %v3206 = vsub.s32 0, %v3205
        %v3207 = vrot.slane %v1819, %v3206
        %v3208 = vlaneseq
        %v3209 = vshrl.u32 %v3208, 7
        %v3210 = vsub.s32 0, %v3209
        %v3211 = vrot.slane %v1833, %v3210
        %v3212 = vlaneseq
        %v3213 = vshrl.u32 %v3212, 7
        %v3214 = vsub.s32 0, %v3213
        %v3215 = vrot.slane %v1835, %v3214
        %v3216 = vlaneseq
        %v3217 = vshrl.u32 %v3216, 7
        %v3218 = vsub.s32 0, %v3217
        %v3219 = vrot.slane %v1837, %v3218
        %v3220 = vlaneseq
        %v3221 = vshrl.u32 %v3220, 7
        %v3222 = vsub.s32 0, %v3221
        %v3223 = vrot.slane %v1861, %v3222
        %v3224 = vlaneseq
        %v3225 = vshrl.u32 %v3224, 7
        %v3226 = vsub.s32 0, %v3225
        %v3227 = vrot.slane %v1875, %v3226
        %v3228 = vlaneseq
        %v3229 = vshrl.u32 %v3228, 7
        %v3230 = vsub.s32 0, %v3229
        %v3231 = vrot.slane %v1883, %v3230
        %v3232 = vlaneseq
        %v3233 = vshrl.u32 %v3232, 7
        %v3234 = vsub.s32 0, %v3233
        %v3235 = vrot.slane %v1885, %v3234
        %v3236 = vlaneseq
        %v3237 = vshrl.u32 %v3236, 7
        %v3238 = vsub.s32 0, %v3237
        %v3239 = vrot.slane %v1868, %v3238
        %v3240 = vlaneseq
        %v3241 = vshrl.u32 %v3240, 7
        %v3242 = vsub.s32 0, %v3241
        %v3243 = vrot.slane %v1882, %v3242
        %v3244 = vlaneseq
        %v3245 = vshrl.u32 %v3244, 7
        %v3246 = vsub.s32 0, %v3245
        %v3247 = vrot.slane %v1884, %v3246
        %v3248 = vlaneseq
        %v3249 = vshrl.u32 %v3248, 7
        %v3250 = vsub.s32 0, %v3249
        %v3251 = vrot.slane %v1886, %v3250
        %v3252 = vlaneseq
        %v3253 = vshrl.u32 %v3252, 7
        %v3254 = vsub.s32 0, %v3253
        %v3255 = vrot.slane %v1910, %v3254
        %v3256 = vlaneseq
        %v3257 = vshrl.u32 %v3256, 7
        %v3258 = vsub.s32 0, %v3257
        %v3259 = vrot.slane %v1924, %v3258
        %v3260 = vlaneseq
        %v3261 = vshrl.u32 %v3260, 7
        %v3262 = vsub.s32 0, %v3261
        %v3263 = vrot.slane %v1932, %v3262
        %v3264 = vlaneseq
        %v3265 = vshrl.u32 %v3264, 7
        %v3266 = vsub.s32 0, %v3265
        %v3267 = vrot.slane %v1934, %v3266
        %v3268 = vlaneseq
        %v3269 = vshrl.u32 %v3268, 7
        %v3270 = vsub.s32 0, %v3269
        %v3271 = vrot.slane %v1917, %v3270
        %v3272 = vlaneseq
        %v3273 = vshrl.u32 %v3272, 7
        %v3274 = vsub.s32 0, %v3273
        %v3275 = vrot.slane %v1931, %v3274
        %v3276 = vlaneseq
        %v3277 = vshrl.u32 %v3276, 7
        %v3278 = vsub.s32 0, %v3277
        %v3279 = vrot.slane %v1933, %v3278
        %v3280 = vlaneseq
        %v3281 = vshrl.u32 %v3280, 7
        %v3282 = vsub.s32 0, %v3281
        %v3283 = vrot.slane %v1935, %v3282
        %v3284 = vlaneseq
        %v3285 = vshrl.u32 %v3284, 7
        %v3286 = vsub.s32 0, %v3285
        %v3287 = vrot.slane %v1959, %v3286
        %v3288 = vlaneseq
        %v3289 = vshrl.u32 %v3288, 7
        %v3290 = vsub.s32 0, %v3289
        %v3291 = vrot.slane %v1973, %v3290
        %v3292 = vlaneseq
        %v3293 = vshrl.u32 %v3292, 7
        %v3294 = vsub.s32 0, %v3293
        %v3295 = vrot.slane %v1981, %v3294
        %v3296 = vlaneseq
        %v3297 = vshrl.u32 %v3296, 7
        %v3298 = vsub.s32 0, %v3297
        %v3299 = vrot.slane %v1983, %v3298
        %v3300 = vlaneseq
        %v3301 = vshrl.u32 %v3300, 7
        %v3302 = vsub.s32 0, %v3301
        %v3303 = vrot.slane %v1966, %v3302
        %v3304 = vlaneseq
        %v3305 = vshrl.u32 %v3304, 7
        %v3306 = vsub.s32 0, %v3305
        %v3307 = vrot.slane %v1980, %v3306
        %v3308 = vlaneseq
        %v3309 = vshrl.u32 %v3308, 7
        %v3310 = vsub.s32 0, %v3309
        %v3311 = vrot.slane %v1982, %v3310
        %v3312 = vlaneseq
        %v3313 = vshrl.u32 %v3312, 7
        %v3314 = vsub.s32 0, %v3313
        %v3315 = vrot.slane %v1984, %v3314
        %v3316 = vlaneseq
        %v3317 = vshrl.u32 %v3316, 7
        %v3318 = vsub.s32 0, %v3317
        %v3319 = vrot.slane %v2008, %v3318
        %v3320 = vlaneseq
        %v3321 = vshrl.u32 %v3320, 7
        %v3322 = vsub.s32 0, %v3321
        %v3323 = vrot.slane %v2022, %v3322
        %v3324 = vlaneseq
        %v3325 = vshrl.u32 %v3324, 7
        %v3326 = vsub.s32 0, %v3325
        %v3327 = vrot.slane %v2030, %v3326
        %v3328 = vlaneseq
        %v3329 = vshrl.u32 %v3328, 7
        %v3330 = vsub.s32 0, %v3329
        %v3331 = vrot.slane %v2032, %v3330
        %v3332 = vlaneseq
        %v3333 = vshrl.u32 %v3332, 7
        %v3334 = vsub.s32 0, %v3333
        %v3335 = vrot.slane %v2015, %v3334
        %v3336 = vlaneseq
        %v3337 = vshrl.u32 %v3336, 7
        %v3338 = vsub.s32 0, %v3337
        %v3339 = vrot.slane %v2029, %v3338
        %v3340 = vlaneseq
        %v3341 = vshrl.u32 %v3340, 7
        %v3342 = vsub.s32 0, %v3341
        %v3343 = vrot.slane %v2031, %v3342
        %v3344 = vlaneseq
        %v3345 = vshrl.u32 %v3344, 7
        %v3346 = vsub.s32 0, %v3345
        %v3347 = vrot.slane %v2033, %v3346
        %v3348 = vlaneseq
        %v3349 = vshrl.u32 %v3348, 7
        %v3350 = vsub.s32 0, %v3349
        %v3351 = vrot.slane %v2057, %v3350
        %v3352 = vlaneseq
        %v3353 = vshrl.u32 %v3352, 7
        %v3354 = vsub.s32 0, %v3353
        %v3355 = vrot.slane %v2071, %v3354
        %v3356 = vlaneseq
        %v3357 = vshrl.u32 %v3356, 7
        %v3358 = vsub.s32 0, %v3357
        %v3359 = vrot.slane %v2079, %v3358
        %v3360 = vlaneseq
        %v3361 = vshrl.u32 %v3360, 7
        %v3362 = vsub.s32 0, %v3361
        %v3363 = vrot.slane %v2081, %v3362
        %v3364 = vlaneseq
        %v3365 = vshrl.u32 %v3364, 7
        %v3366 = vsub.s32 0, %v3365
        %v3367 = vrot.slane %v2064, %v3366
        %v3368 = vlaneseq
        %v3369 = vshrl.u32 %v3368, 7
        %v3370 = vsub.s32 0, %v3369
        %v3371 = vrot.slane %v2078, %v3370
        %v3372 = vlaneseq
        %v3373 = vshrl.u32 %v3372, 7
        %v3374 = vsub.s32 0, %v3373
        %v3375 = vrot.slane %v2080, %v3374
        %v3376 = vlaneseq
        %v3377 = vshrl.u32 %v3376, 7
        %v3378 = vsub.s32 0, %v3377
        %v3379 = vrot.slane %v2082, %v3378
        %v3380 = vlaneseq
        %v3381 = vshrl.u32 %v3380, 7
        %v3382 = vsub.s32 0, %v3381
        %v3383 = vrot.slane %v2106, %v3382
        %v3384 = vlaneseq
        %v3385 = vshrl.u32 %v3384, 7
        %v3386 = vsub.s32 0, %v3385
        %v3387 = vrot.slane %v2120, %v3386
        %v3388 = vlaneseq
        %v3389 = vshrl.u32 %v3388, 7
        %v3390 = vsub.s32 0, %v3389
        %v3391 = vrot.slane %v2128, %v3390
        %v3392 = vlaneseq
        %v3393 = vshrl.u32 %v3392, 7
        %v3394 = vsub.s32 0, %v3393
        %v3395 = vrot.slane %v2130, %v3394
        %v3396 = vlaneseq
        %v3397 = vshrl.u32 %v3396, 7
        %v3398 = vsub.s32 0, %v3397
        %v3399 = vrot.slane %v2113, %v3398
        %v3400 = vlaneseq
        %v3401 = vshrl.u32 %v3400, 7
        %v3402 = vsub.s32 0, %v3401
        %v3403 = vrot.slane %v2127, %v3402
        %v3404 = vlaneseq
        %v3405 = vshrl.u32 %v3404, 7
        %v3406 = vsub.s32 0, %v3405
        %v3407 = vrot.slane %v2129, %v3406
        %v3408 = vlaneseq
        %v3409 = vshrl.u32 %v3408, 7
        %v3410 = vsub.s32 0, %v3409
        %v3411 = vrot.slane %v2131, %v3410
        %3412 = vrot.lane.b32.xlu0 %v2391, 124
        %v3413 = vpop.permute.xlu0 %3412
        %3414 = vrot.lane.b32.xlu0 %v2395, 124
        %v3415 = vpop.permute.xlu0 %3414
        %3416 = vrot.lane.b32.xlu0 %v2399, 124
        %v3417 = vpop.permute.xlu0 %3416
        %3418 = vrot.lane.b32.xlu0 %v2403, 124
        %v3419 = vpop.permute.xlu0 %3418
        %3420 = vrot.lane.b32.xlu0 %v2407, 124
        %v3421 = vpop.permute.xlu0 %3420
        %3422 = vrot.lane.b32.xlu0 %v2411, 124
        %v3423 = vpop.permute.xlu0 %3422
        %3424 = vrot.lane.b32.xlu0 %v2415, 124
        %v3425 = vpop.permute.xlu0 %3424
        %3426 = vrot.lane.b32.xlu0 %v2419, 124
        %v3427 = vpop.permute.xlu0 %3426
        %3428 = vrot.lane.b32.xlu0 %v2423, 124
        %v3429 = vpop.permute.xlu0 %3428
        %3430 = vrot.lane.b32.xlu0 %v2427, 124
        %v3431 = vpop.permute.xlu0 %3430
        %3432 = vrot.lane.b32.xlu0 %v2431, 124
        %v3433 = vpop.permute.xlu0 %3432
        %3434 = vrot.lane.b32.xlu0 %v2435, 124
        %v3435 = vpop.permute.xlu0 %3434
        %3436 = vrot.lane.b32.xlu0 %v2439, 124
        %v3437 = vpop.permute.xlu0 %3436
        %3438 = vrot.lane.b32.xlu0 %v2443, 124
        %v3439 = vpop.permute.xlu0 %3438
        %3440 = vrot.lane.b32.xlu0 %v2447, 124
        %v3441 = vpop.permute.xlu0 %3440
        %3442 = vrot.lane.b32.xlu0 %v2451, 124
        %v3443 = vpop.permute.xlu0 %3442
        %3444 = vrot.lane.b32.xlu0 %v2455, 124
        %v3445 = vpop.permute.xlu0 %3444
        %3446 = vrot.lane.b32.xlu0 %v2459, 124
        %v3447 = vpop.permute.xlu0 %3446
        %3448 = vrot.lane.b32.xlu0 %v2463, 124
        %v3449 = vpop.permute.xlu0 %3448
        %3450 = vrot.lane.b32.xlu0 %v2467, 124
        %v3451 = vpop.permute.xlu0 %3450
        %3452 = vrot.lane.b32.xlu0 %v2471, 124
        %v3453 = vpop.permute.xlu0 %3452
        %3454 = vrot.lane.b32.xlu0 %v2475, 124
        %v3455 = vpop.permute.xlu0 %3454
        %3456 = vrot.lane.b32.xlu0 %v2479, 124
        %v3457 = vpop.permute.xlu0 %3456
        %3458 = vrot.lane.b32.xlu0 %v2483, 124
        %v3459 = vpop.permute.xlu0 %3458
        %3460 = vrot.lane.b32.xlu0 %v2487, 124
        %v3461 = vpop.permute.xlu0 %3460
        %3462 = vrot.lane.b32.xlu0 %v2491, 124
        %v3463 = vpop.permute.xlu0 %3462
        %3464 = vrot.lane.b32.xlu0 %v2495, 124
        %v3465 = vpop.permute.xlu0 %3464
        %3466 = vrot.lane.b32.xlu0 %v2499, 124
        %v3467 = vpop.permute.xlu0 %3466
        %3468 = vrot.lane.b32.xlu0 %v2503, 124
        %v3469 = vpop.permute.xlu0 %3468
        %3470 = vrot.lane.b32.xlu0 %v2507, 124
        %v3471 = vpop.permute.xlu0 %3470
        %3472 = vrot.lane.b32.xlu0 %v2511, 124
        %v3473 = vpop.permute.xlu0 %3472
        %3474 = vrot.lane.b32.xlu0 %v2515, 124
        %v3475 = vpop.permute.xlu0 %3474
        %3476 = vrot.lane.b32.xlu0 %v2519, 124
        %v3477 = vpop.permute.xlu0 %3476
        %3478 = vrot.lane.b32.xlu0 %v2523, 124
        %v3479 = vpop.permute.xlu0 %3478
        %3480 = vrot.lane.b32.xlu0 %v2527, 124
        %v3481 = vpop.permute.xlu0 %3480
        %3482 = vrot.lane.b32.xlu0 %v2531, 124
        %v3483 = vpop.permute.xlu0 %3482
        %3484 = vrot.lane.b32.xlu0 %v2535, 124
        %v3485 = vpop.permute.xlu0 %3484
        %3486 = vrot.lane.b32.xlu0 %v2539, 124
        %v3487 = vpop.permute.xlu0 %3486
        %3488 = vrot.lane.b32.xlu0 %v2543, 124
        %v3489 = vpop.permute.xlu0 %3488
        %3490 = vrot.lane.b32.xlu0 %v2547, 124
        %v3491 = vpop.permute.xlu0 %3490
        %3492 = vrot.lane.b32.xlu0 %v2551, 124
        %v3493 = vpop.permute.xlu0 %3492
        %3494 = vrot.lane.b32.xlu0 %v2555, 124
        %v3495 = vpop.permute.xlu0 %3494
        %3496 = vrot.lane.b32.xlu0 %v2559, 124
        %v3497 = vpop.permute.xlu0 %3496
        %3498 = vrot.lane.b32.xlu0 %v2563, 124
        %v3499 = vpop.permute.xlu0 %3498
        %3500 = vrot.lane.b32.xlu0 %v2567, 124
        %v3501 = vpop.permute.xlu0 %3500
        %3502 = vrot.lane.b32.xlu0 %v2571, 124
        %v3503 = vpop.permute.xlu0 %3502
        %3504 = vrot.lane.b32.xlu0 %v2575, 124
        %v3505 = vpop.permute.xlu0 %3504
        %3506 = vrot.lane.b32.xlu0 %v2579, 124
        %v3507 = vpop.permute.xlu0 %3506
        %3508 = vrot.lane.b32.xlu0 %v2583, 124
        %v3509 = vpop.permute.xlu0 %3508
        %3510 = vrot.lane.b32.xlu0 %v2587, 124
        %v3511 = vpop.permute.xlu0 %3510
        %3512 = vrot.lane.b32.xlu0 %v2591, 124
        %v3513 = vpop.permute.xlu0 %3512
        %3514 = vrot.lane.b32.xlu0 %v2595, 124
        %v3515 = vpop.permute.xlu0 %3514
        %3516 = vrot.lane.b32.xlu0 %v2599, 124
        %v3517 = vpop.permute.xlu0 %3516
        %3518 = vrot.lane.b32.xlu0 %v2603, 124
        %v3519 = vpop.permute.xlu0 %3518
        %3520 = vrot.lane.b32.xlu0 %v2607, 124
        %v3521 = vpop.permute.xlu0 %3520
        %3522 = vrot.lane.b32.xlu0 %v2611, 124
        %v3523 = vpop.permute.xlu0 %3522
        %3524 = vrot.lane.b32.xlu0 %v2615, 124
        %v3525 = vpop.permute.xlu0 %3524
        %3526 = vrot.lane.b32.xlu0 %v2619, 124
        %v3527 = vpop.permute.xlu0 %3526
        %3528 = vrot.lane.b32.xlu0 %v2623, 124
        %v3529 = vpop.permute.xlu0 %3528
        %3530 = vrot.lane.b32.xlu0 %v2627, 124
        %v3531 = vpop.permute.xlu0 %3530
        %3532 = vrot.lane.b32.xlu0 %v2631, 124
        %v3533 = vpop.permute.xlu0 %3532
        %3534 = vrot.lane.b32.xlu0 %v2635, 124
        %v3535 = vpop.permute.xlu0 %3534
        %3536 = vrot.lane.b32.xlu0 %v2639, 124
        %v3537 = vpop.permute.xlu0 %3536
        %3538 = vrot.lane.b32.xlu0 %v2643, 124
        %v3539 = vpop.permute.xlu0 %3538
        %3540 = vrot.lane.b32.xlu0 %v2647, 124
        %v3541 = vpop.permute.xlu0 %3540
        %3542 = vrot.lane.b32.xlu0 %v2651, 124
        %v3543 = vpop.permute.xlu0 %3542
        %3544 = vrot.lane.b32.xlu0 %v2655, 124
        %v3545 = vpop.permute.xlu0 %3544
        %3546 = vrot.lane.b32.xlu0 %v2659, 124
        %v3547 = vpop.permute.xlu0 %3546
        %3548 = vrot.lane.b32.xlu0 %v2663, 124
        %v3549 = vpop.permute.xlu0 %3548
        %3550 = vrot.lane.b32.xlu0 %v2667, 124
        %v3551 = vpop.permute.xlu0 %3550
        %3552 = vrot.lane.b32.xlu0 %v2671, 124
        %v3553 = vpop.permute.xlu0 %3552
        %3554 = vrot.lane.b32.xlu0 %v2675, 124
        %v3555 = vpop.permute.xlu0 %3554
        %3556 = vrot.lane.b32.xlu0 %v2679, 124
        %v3557 = vpop.permute.xlu0 %3556
        %3558 = vrot.lane.b32.xlu0 %v2683, 124
        %v3559 = vpop.permute.xlu0 %3558
        %3560 = vrot.lane.b32.xlu0 %v2687, 124
        %v3561 = vpop.permute.xlu0 %3560
        %3562 = vrot.lane.b32.xlu0 %v2691, 124
        %v3563 = vpop.permute.xlu0 %3562
        %3564 = vrot.lane.b32.xlu0 %v2695, 124
        %v3565 = vpop.permute.xlu0 %3564
        %3566 = vrot.lane.b32.xlu0 %v2699, 124
        %v3567 = vpop.permute.xlu0 %3566
        %3568 = vrot.lane.b32.xlu0 %v2703, 124
        %v3569 = vpop.permute.xlu0 %3568
        %3570 = vrot.lane.b32.xlu0 %v2707, 124
        %v3571 = vpop.permute.xlu0 %3570
        %3572 = vrot.lane.b32.xlu0 %v2711, 124
        %v3573 = vpop.permute.xlu0 %3572
        %3574 = vrot.lane.b32.xlu0 %v2715, 124
        %v3575 = vpop.permute.xlu0 %3574
        %3576 = vrot.lane.b32.xlu0 %v2719, 124
        %v3577 = vpop.permute.xlu0 %3576
        %3578 = vrot.lane.b32.xlu0 %v2723, 124
        %v3579 = vpop.permute.xlu0 %3578
        %3580 = vrot.lane.b32.xlu0 %v2727, 124
        %v3581 = vpop.permute.xlu0 %3580
        %3582 = vrot.lane.b32.xlu0 %v2731, 124
        %v3583 = vpop.permute.xlu0 %3582
        %3584 = vrot.lane.b32.xlu0 %v2735, 124
        %v3585 = vpop.permute.xlu0 %3584
        %3586 = vrot.lane.b32.xlu0 %v2739, 124
        %v3587 = vpop.permute.xlu0 %3586
        %3588 = vrot.lane.b32.xlu0 %v2743, 124
        %v3589 = vpop.permute.xlu0 %3588
        %3590 = vrot.lane.b32.xlu0 %v2747, 124
        %v3591 = vpop.permute.xlu0 %3590
        %3592 = vrot.lane.b32.xlu0 %v2751, 124
        %v3593 = vpop.permute.xlu0 %3592
        %3594 = vrot.lane.b32.xlu0 %v2755, 124
        %v3595 = vpop.permute.xlu0 %3594
        %3596 = vrot.lane.b32.xlu0 %v2759, 124
        %v3597 = vpop.permute.xlu0 %3596
        %3598 = vrot.lane.b32.xlu0 %v2763, 124
        %v3599 = vpop.permute.xlu0 %3598
        %3600 = vrot.lane.b32.xlu0 %v2767, 124
        %v3601 = vpop.permute.xlu0 %3600
        %3602 = vrot.lane.b32.xlu0 %v2771, 124
        %v3603 = vpop.permute.xlu0 %3602
        %3604 = vrot.lane.b32.xlu0 %v2775, 124
        %v3605 = vpop.permute.xlu0 %3604
        %3606 = vrot.lane.b32.xlu0 %v2779, 124
        %v3607 = vpop.permute.xlu0 %3606
        %3608 = vrot.lane.b32.xlu0 %v2783, 124
        %v3609 = vpop.permute.xlu0 %3608
        %3610 = vrot.lane.b32.xlu0 %v2787, 124
        %v3611 = vpop.permute.xlu0 %3610
        %3612 = vrot.lane.b32.xlu0 %v2791, 124
        %v3613 = vpop.permute.xlu0 %3612
        %3614 = vrot.lane.b32.xlu0 %v2795, 124
        %v3615 = vpop.permute.xlu0 %3614
        %3616 = vrot.lane.b32.xlu0 %v2799, 124
        %v3617 = vpop.permute.xlu0 %3616
        %3618 = vrot.lane.b32.xlu0 %v2803, 124
        %v3619 = vpop.permute.xlu0 %3618
        %3620 = vrot.lane.b32.xlu0 %v2807, 124
        %v3621 = vpop.permute.xlu0 %3620
        %3622 = vrot.lane.b32.xlu0 %v2811, 124
        %v3623 = vpop.permute.xlu0 %3622
        %3624 = vrot.lane.b32.xlu0 %v2815, 124
        %v3625 = vpop.permute.xlu0 %3624
        %3626 = vrot.lane.b32.xlu0 %v2819, 124
        %v3627 = vpop.permute.xlu0 %3626
        %3628 = vrot.lane.b32.xlu0 %v2823, 124
        %v3629 = vpop.permute.xlu0 %3628
        %3630 = vrot.lane.b32.xlu0 %v2827, 124
        %v3631 = vpop.permute.xlu0 %3630
        %3632 = vrot.lane.b32.xlu0 %v2831, 124
        %v3633 = vpop.permute.xlu0 %3632
        %3634 = vrot.lane.b32.xlu0 %v2835, 124
        %v3635 = vpop.permute.xlu0 %3634
        %3636 = vrot.lane.b32.xlu0 %v2839, 124
        %v3637 = vpop.permute.xlu0 %3636
        %3638 = vrot.lane.b32.xlu0 %v2843, 124
        %v3639 = vpop.permute.xlu0 %3638
        %3640 = vrot.lane.b32.xlu0 %v2847, 124
        %v3641 = vpop.permute.xlu0 %3640
        %3642 = vrot.lane.b32.xlu0 %v2851, 124
        %v3643 = vpop.permute.xlu0 %3642
        %3644 = vrot.lane.b32.xlu0 %v2855, 124
        %v3645 = vpop.permute.xlu0 %3644
        %3646 = vrot.lane.b32.xlu0 %v2859, 124
        %v3647 = vpop.permute.xlu0 %3646
        %3648 = vrot.lane.b32.xlu0 %v2863, 124
        %v3649 = vpop.permute.xlu0 %3648
        %3650 = vrot.lane.b32.xlu0 %v2867, 124
        %v3651 = vpop.permute.xlu0 %3650
        %3652 = vrot.lane.b32.xlu0 %v2871, 124
        %v3653 = vpop.permute.xlu0 %3652
        %3654 = vrot.lane.b32.xlu0 %v2875, 124
        %v3655 = vpop.permute.xlu0 %3654
        %3656 = vrot.lane.b32.xlu0 %v2879, 124
        %v3657 = vpop.permute.xlu0 %3656
        %3658 = vrot.lane.b32.xlu0 %v2883, 124
        %v3659 = vpop.permute.xlu0 %3658
        %3660 = vrot.lane.b32.xlu0 %v2887, 124
        %v3661 = vpop.permute.xlu0 %3660
        %3662 = vrot.lane.b32.xlu0 %v2891, 124
        %v3663 = vpop.permute.xlu0 %3662
        %3664 = vrot.lane.b32.xlu0 %v2895, 124
        %v3665 = vpop.permute.xlu0 %3664
        %3666 = vrot.lane.b32.xlu0 %v2899, 124
        %v3667 = vpop.permute.xlu0 %3666
        %3668 = vrot.lane.b32.xlu0 %v2903, 124
        %v3669 = vpop.permute.xlu0 %3668
        %3670 = vrot.lane.b32.xlu0 %v2907, 124
        %v3671 = vpop.permute.xlu0 %3670
        %3672 = vrot.lane.b32.xlu0 %v2911, 124
        %v3673 = vpop.permute.xlu0 %3672
        %3674 = vrot.lane.b32.xlu0 %v2915, 124
        %v3675 = vpop.permute.xlu0 %3674
        %3676 = vrot.lane.b32.xlu0 %v2919, 124
        %v3677 = vpop.permute.xlu0 %3676
        %3678 = vrot.lane.b32.xlu0 %v2923, 124
        %v3679 = vpop.permute.xlu0 %3678
        %3680 = vrot.lane.b32.xlu0 %v2927, 124
        %v3681 = vpop.permute.xlu0 %3680
        %3682 = vrot.lane.b32.xlu0 %v2931, 124
        %v3683 = vpop.permute.xlu0 %3682
        %3684 = vrot.lane.b32.xlu0 %v2935, 124
        %v3685 = vpop.permute.xlu0 %3684
        %3686 = vrot.lane.b32.xlu0 %v2939, 124
        %v3687 = vpop.permute.xlu0 %3686
        %3688 = vrot.lane.b32.xlu0 %v2943, 124
        %v3689 = vpop.permute.xlu0 %3688
        %3690 = vrot.lane.b32.xlu0 %v2947, 124
        %v3691 = vpop.permute.xlu0 %3690
        %3692 = vrot.lane.b32.xlu0 %v2951, 124
        %v3693 = vpop.permute.xlu0 %3692
        %3694 = vrot.lane.b32.xlu0 %v2955, 124
        %v3695 = vpop.permute.xlu0 %3694
        %3696 = vrot.lane.b32.xlu0 %v2959, 124
        %v3697 = vpop.permute.xlu0 %3696
        %3698 = vrot.lane.b32.xlu0 %v2963, 124
        %v3699 = vpop.permute.xlu0 %3698
        %3700 = vrot.lane.b32.xlu0 %v2967, 124
        %v3701 = vpop.permute.xlu0 %3700
        %3702 = vrot.lane.b32.xlu0 %v2971, 124
        %v3703 = vpop.permute.xlu0 %3702
        %3704 = vrot.lane.b32.xlu0 %v2975, 124
        %v3705 = vpop.permute.xlu0 %3704
        %3706 = vrot.lane.b32.xlu0 %v2979, 124
        %v3707 = vpop.permute.xlu0 %3706
        %3708 = vrot.lane.b32.xlu0 %v2983, 124
        %v3709 = vpop.permute.xlu0 %3708
        %3710 = vrot.lane.b32.xlu0 %v2987, 124
        %v3711 = vpop.permute.xlu0 %3710
        %3712 = vrot.lane.b32.xlu0 %v2991, 124
        %v3713 = vpop.permute.xlu0 %3712
        %3714 = vrot.lane.b32.xlu0 %v2995, 124
        %v3715 = vpop.permute.xlu0 %3714
        %3716 = vrot.lane.b32.xlu0 %v2999, 124
        %v3717 = vpop.permute.xlu0 %3716
        %3718 = vrot.lane.b32.xlu0 %v3003, 124
        %v3719 = vpop.permute.xlu0 %3718
        %3720 = vrot.lane.b32.xlu0 %v3007, 124
        %v3721 = vpop.permute.xlu0 %3720
        %3722 = vrot.lane.b32.xlu0 %v3011, 124
        %v3723 = vpop.permute.xlu0 %3722
        %3724 = vrot.lane.b32.xlu0 %v3015, 124
        %v3725 = vpop.permute.xlu0 %3724
        %3726 = vrot.lane.b32.xlu0 %v3019, 124
        %v3727 = vpop.permute.xlu0 %3726
        %3728 = vrot.lane.b32.xlu0 %v3023, 124
        %v3729 = vpop.permute.xlu0 %3728
        %3730 = vrot.lane.b32.xlu0 %v3027, 124
        %v3731 = vpop.permute.xlu0 %3730
        %3732 = vrot.lane.b32.xlu0 %v3031, 124
        %v3733 = vpop.permute.xlu0 %3732
        %3734 = vrot.lane.b32.xlu0 %v3035, 124
        %v3735 = vpop.permute.xlu0 %3734
        %3736 = vrot.lane.b32.xlu0 %v3039, 124
        %v3737 = vpop.permute.xlu0 %3736
        %3738 = vrot.lane.b32.xlu0 %v3043, 124
        %v3739 = vpop.permute.xlu0 %3738
        %3740 = vrot.lane.b32.xlu0 %v3047, 124
        %v3741 = vpop.permute.xlu0 %3740
        %3742 = vrot.lane.b32.xlu0 %v3051, 124
        %v3743 = vpop.permute.xlu0 %3742
        %3744 = vrot.lane.b32.xlu0 %v3055, 124
        %v3745 = vpop.permute.xlu0 %3744
        %3746 = vrot.lane.b32.xlu0 %v3059, 124
        %v3747 = vpop.permute.xlu0 %3746
        %3748 = vrot.lane.b32.xlu0 %v3063, 124
        %v3749 = vpop.permute.xlu0 %3748
        %3750 = vrot.lane.b32.xlu0 %v3067, 124
        %v3751 = vpop.permute.xlu0 %3750
        %3752 = vrot.lane.b32.xlu0 %v3071, 124
        %v3753 = vpop.permute.xlu0 %3752
        %3754 = vrot.lane.b32.xlu0 %v3075, 124
        %v3755 = vpop.permute.xlu0 %3754
        %3756 = vrot.lane.b32.xlu0 %v3079, 124
        %v3757 = vpop.permute.xlu0 %3756
        %3758 = vrot.lane.b32.xlu0 %v3083, 124
        %v3759 = vpop.permute.xlu0 %3758
        %3760 = vrot.lane.b32.xlu0 %v3087, 124
        %v3761 = vpop.permute.xlu0 %3760
        %3762 = vrot.lane.b32.xlu0 %v3091, 124
        %v3763 = vpop.permute.xlu0 %3762
        %3764 = vrot.lane.b32.xlu0 %v3095, 124
        %v3765 = vpop.permute.xlu0 %3764
        %3766 = vrot.lane.b32.xlu0 %v3099, 124
        %v3767 = vpop.permute.xlu0 %3766
        %3768 = vrot.lane.b32.xlu0 %v3103, 124
        %v3769 = vpop.permute.xlu0 %3768
        %3770 = vrot.lane.b32.xlu0 %v3107, 124
        %v3771 = vpop.permute.xlu0 %3770
        %3772 = vrot.lane.b32.xlu0 %v3111, 124
        %v3773 = vpop.permute.xlu0 %3772
        %3774 = vrot.lane.b32.xlu0 %v3115, 124
        %v3775 = vpop.permute.xlu0 %3774
        %3776 = vrot.lane.b32.xlu0 %v3119, 124
        %v3777 = vpop.permute.xlu0 %3776
        %3778 = vrot.lane.b32.xlu0 %v3123, 124
        %v3779 = vpop.permute.xlu0 %3778
        %3780 = vrot.lane.b32.xlu0 %v3127, 124
        %v3781 = vpop.permute.xlu0 %3780
        %3782 = vrot.lane.b32.xlu0 %v3131, 124
        %v3783 = vpop.permute.xlu0 %3782
        %3784 = vrot.lane.b32.xlu0 %v3135, 124
        %v3785 = vpop.permute.xlu0 %3784
        %3786 = vrot.lane.b32.xlu0 %v3139, 124
        %v3787 = vpop.permute.xlu0 %3786
        %3788 = vrot.lane.b32.xlu0 %v3143, 124
        %v3789 = vpop.permute.xlu0 %3788
        %3790 = vrot.lane.b32.xlu0 %v3147, 124
        %v3791 = vpop.permute.xlu0 %3790
        %3792 = vrot.lane.b32.xlu0 %v3151, 124
        %v3793 = vpop.permute.xlu0 %3792
        %3794 = vrot.lane.b32.xlu0 %v3155, 124
        %v3795 = vpop.permute.xlu0 %3794
        %3796 = vrot.lane.b32.xlu0 %v3159, 124
        %v3797 = vpop.permute.xlu0 %3796
        %3798 = vrot.lane.b32.xlu0 %v3163, 124
        %v3799 = vpop.permute.xlu0 %3798
        %3800 = vrot.lane.b32.xlu0 %v3167, 124
        %v3801 = vpop.permute.xlu0 %3800
        %3802 = vrot.lane.b32.xlu0 %v3171, 124
        %v3803 = vpop.permute.xlu0 %3802
        %3804 = vrot.lane.b32.xlu0 %v3175, 124
        %v3805 = vpop.permute.xlu0 %3804
        %3806 = vrot.lane.b32.xlu0 %v3179, 124
        %v3807 = vpop.permute.xlu0 %3806
        %3808 = vrot.lane.b32.xlu0 %v3183, 124
        %v3809 = vpop.permute.xlu0 %3808
        %3810 = vrot.lane.b32.xlu0 %v3187, 124
        %v3811 = vpop.permute.xlu0 %3810
        %3812 = vrot.lane.b32.xlu0 %v3191, 124
        %v3813 = vpop.permute.xlu0 %3812
        %3814 = vrot.lane.b32.xlu0 %v3195, 124
        %v3815 = vpop.permute.xlu0 %3814
        %3816 = vrot.lane.b32.xlu0 %v3199, 124
        %v3817 = vpop.permute.xlu0 %3816
        %3818 = vrot.lane.b32.xlu0 %v3203, 124
        %v3819 = vpop.permute.xlu0 %3818
        %3820 = vrot.lane.b32.xlu0 %v3207, 124
        %v3821 = vpop.permute.xlu0 %3820
        %3822 = vrot.lane.b32.xlu0 %v3211, 124
        %v3823 = vpop.permute.xlu0 %3822
        %3824 = vrot.lane.b32.xlu0 %v3215, 124
        %v3825 = vpop.permute.xlu0 %3824
        %3826 = vrot.lane.b32.xlu0 %v3219, 124
        %v3827 = vpop.permute.xlu0 %3826
        %3828 = vrot.lane.b32.xlu0 %v3223, 124
        %v3829 = vpop.permute.xlu0 %3828
        %3830 = vrot.lane.b32.xlu0 %v3227, 124
        %v3831 = vpop.permute.xlu0 %3830
        %3832 = vrot.lane.b32.xlu0 %v3231, 124
        %v3833 = vpop.permute.xlu0 %3832
        %3834 = vrot.lane.b32.xlu0 %v3235, 124
        %v3835 = vpop.permute.xlu0 %3834
        %3836 = vrot.lane.b32.xlu0 %v3239, 124
        %v3837 = vpop.permute.xlu0 %3836
        %3838 = vrot.lane.b32.xlu0 %v3243, 124
        %v3839 = vpop.permute.xlu0 %3838
        %3840 = vrot.lane.b32.xlu0 %v3247, 124
        %v3841 = vpop.permute.xlu0 %3840
        %3842 = vrot.lane.b32.xlu0 %v3251, 124
        %v3843 = vpop.permute.xlu0 %3842
        %3844 = vrot.lane.b32.xlu0 %v3255, 124
        %v3845 = vpop.permute.xlu0 %3844
        %3846 = vrot.lane.b32.xlu0 %v3259, 124
        %v3847 = vpop.permute.xlu0 %3846
        %3848 = vrot.lane.b32.xlu0 %v3263, 124
        %v3849 = vpop.permute.xlu0 %3848
        %3850 = vrot.lane.b32.xlu0 %v3267, 124
        %v3851 = vpop.permute.xlu0 %3850
        %3852 = vrot.lane.b32.xlu0 %v3271, 124
        %v3853 = vpop.permute.xlu0 %3852
        %3854 = vrot.lane.b32.xlu0 %v3275, 124
        %v3855 = vpop.permute.xlu0 %3854
        %3856 = vrot.lane.b32.xlu0 %v3279, 124
        %v3857 = vpop.permute.xlu0 %3856
        %3858 = vrot.lane.b32.xlu0 %v3283, 124
        %v3859 = vpop.permute.xlu0 %3858
        %3860 = vrot.lane.b32.xlu0 %v3287, 124
        %v3861 = vpop.permute.xlu0 %3860
        %3862 = vrot.lane.b32.xlu0 %v3291, 124
        %v3863 = vpop.permute.xlu0 %3862
        %3864 = vrot.lane.b32.xlu0 %v3295, 124
        %v3865 = vpop.permute.xlu0 %3864
        %3866 = vrot.lane.b32.xlu0 %v3299, 124
        %v3867 = vpop.permute.xlu0 %3866
        %3868 = vrot.lane.b32.xlu0 %v3303, 124
        %v3869 = vpop.permute.xlu0 %3868
        %3870 = vrot.lane.b32.xlu0 %v3307, 124
        %v3871 = vpop.permute.xlu0 %3870
        %3872 = vrot.lane.b32.xlu0 %v3311, 124
        %v3873 = vpop.permute.xlu0 %3872
        %3874 = vrot.lane.b32.xlu0 %v3315, 124
        %v3875 = vpop.permute.xlu0 %3874
        %3876 = vrot.lane.b32.xlu0 %v3319, 124
        %v3877 = vpop.permute.xlu0 %3876
        %3878 = vrot.lane.b32.xlu0 %v3323, 124
        %v3879 = vpop.permute.xlu0 %3878
        %3880 = vrot.lane.b32.xlu0 %v3327, 124
        %v3881 = vpop.permute.xlu0 %3880
        %3882 = vrot.lane.b32.xlu0 %v3331, 124
        %v3883 = vpop.permute.xlu0 %3882
        %3884 = vrot.lane.b32.xlu0 %v3335, 124
        %v3885 = vpop.permute.xlu0 %3884
        %3886 = vrot.lane.b32.xlu0 %v3339, 124
        %v3887 = vpop.permute.xlu0 %3886
        %3888 = vrot.lane.b32.xlu0 %v3343, 124
        %v3889 = vpop.permute.xlu0 %3888
        %3890 = vrot.lane.b32.xlu0 %v3347, 124
        %v3891 = vpop.permute.xlu0 %3890
        %3892 = vrot.lane.b32.xlu0 %v3351, 124
        %v3893 = vpop.permute.xlu0 %3892
        %3894 = vrot.lane.b32.xlu0 %v3355, 124
        %v3895 = vpop.permute.xlu0 %3894
        %3896 = vrot.lane.b32.xlu0 %v3359, 124
        %v3897 = vpop.permute.xlu0 %3896
        %3898 = vrot.lane.b32.xlu0 %v3363, 124
        %v3899 = vpop.permute.xlu0 %3898
        %3900 = vrot.lane.b32.xlu0 %v3367, 124
        %v3901 = vpop.permute.xlu0 %3900
        %3902 = vrot.lane.b32.xlu0 %v3371, 124
        %v3903 = vpop.permute.xlu0 %3902
        %3904 = vrot.lane.b32.xlu0 %v3375, 124
        %v3905 = vpop.permute.xlu0 %3904
        %3906 = vrot.lane.b32.xlu0 %v3379, 124
        %v3907 = vpop.permute.xlu0 %3906
        %3908 = vrot.lane.b32.xlu0 %v3383, 124
        %v3909 = vpop.permute.xlu0 %3908
        %3910 = vrot.lane.b32.xlu0 %v3387, 124
        %v3911 = vpop.permute.xlu0 %3910
        %3912 = vrot.lane.b32.xlu0 %v3391, 124
        %v3913 = vpop.permute.xlu0 %3912
        %3914 = vrot.lane.b32.xlu0 %v3395, 124
        %v3915 = vpop.permute.xlu0 %3914
        %3916 = vrot.lane.b32.xlu0 %v3399, 124
        %v3917 = vpop.permute.xlu0 %3916
        %3918 = vrot.lane.b32.xlu0 %v3403, 124
        %v3919 = vpop.permute.xlu0 %3918
        %3920 = vrot.lane.b32.xlu0 %v3407, 124
        %v3921 = vpop.permute.xlu0 %3920
        %3922 = vrot.lane.b32.xlu0 %v3411, 124
        %v3923 = vpop.permute.xlu0 %3922
        %vm4180 = vcmask 1040384
        %v4181 = vsel %vm4180, %v587, %v3413
        %v4182 = vsel %vm4180, %v601, %v3415
        %v4183 = vsel %vm4180, %v609, %v3417
        %v4184 = vsel %vm4180, %v611, %v3419
        %v4185 = vsel %vm4180, %v594, %v3421
        %v4186 = vsel %vm4180, %v608, %v3423
        %v4187 = vsel %vm4180, %v610, %v3425
        %v4188 = vsel %vm4180, %v612, %v3427
        %v4189 = vsel %vm4180, %v636, %v3429
        %v4190 = vsel %vm4180, %v650, %v3431
        %v4191 = vsel %vm4180, %v658, %v3433
        %v4192 = vsel %vm4180, %v660, %v3435
        %v4193 = vsel %vm4180, %v643, %v3437
        %v4194 = vsel %vm4180, %v657, %v3439
        %v4195 = vsel %vm4180, %v659, %v3441
        %v4196 = vsel %vm4180, %v661, %v3443
        %v4197 = vsel %vm4180, %v685, %v3445
        %v4198 = vsel %vm4180, %v699, %v3447
        %v4199 = vsel %vm4180, %v707, %v3449
        %v4200 = vsel %vm4180, %v709, %v3451
        %v4201 = vsel %vm4180, %v692, %v3453
        %v4202 = vsel %vm4180, %v706, %v3455
        %v4203 = vsel %vm4180, %v708, %v3457
        %v4204 = vsel %vm4180, %v710, %v3459
        %v4205 = vsel %vm4180, %v734, %v3461
        %v4206 = vsel %vm4180, %v748, %v3463
        %v4207 = vsel %vm4180, %v756, %v3465
        %v4208 = vsel %vm4180, %v758, %v3467
        %v4209 = vsel %vm4180, %v741, %v3469
        %v4210 = vsel %vm4180, %v755, %v3471
        %v4211 = vsel %vm4180, %v757, %v3473
        %v4212 = vsel %vm4180, %v759, %v3475
        %v4213 = vsel %vm4180, %v783, %v3477
        %v4214 = vsel %vm4180, %v797, %v3479
        %v4215 = vsel %vm4180, %v805, %v3481
        %v4216 = vsel %vm4180, %v807, %v3483
        %v4217 = vsel %vm4180, %v790, %v3485
        %v4218 = vsel %vm4180, %v804, %v3487
        %v4219 = vsel %vm4180, %v806, %v3489
        %v4220 = vsel %vm4180, %v808, %v3491
        %v4221 = vsel %vm4180, %v832, %v3493
        %v4222 = vsel %vm4180, %v846, %v3495
        %v4223 = vsel %vm4180, %v854, %v3497
        %v4224 = vsel %vm4180, %v856, %v3499
        %v4225 = vsel %vm4180, %v839, %v3501
        %v4226 = vsel %vm4180, %v853, %v3503
        %v4227 = vsel %vm4180, %v855, %v3505
        %v4228 = vsel %vm4180, %v857, %v3507
        %v4229 = vsel %vm4180, %v881, %v3509
        %v4230 = vsel %vm4180, %v895, %v3511
        %v4231 = vsel %vm4180, %v903, %v3513
        %v4232 = vsel %vm4180, %v905, %v3515
        %v4233 = vsel %vm4180, %v888, %v3517
        %v4234 = vsel %vm4180, %v902, %v3519
        %v4235 = vsel %vm4180, %v904, %v3521
        %v4236 = vsel %vm4180, %v906, %v3523
        %v4237 = vsel %vm4180, %v930, %v3525
        %v4238 = vsel %vm4180, %v944, %v3527
        %v4239 = vsel %vm4180, %v952, %v3529
        %v4240 = vsel %vm4180, %v954, %v3531
        %v4241 = vsel %vm4180, %v937, %v3533
        %v4242 = vsel %vm4180, %v951, %v3535
        %v4243 = vsel %vm4180, %v953, %v3537
        %v4244 = vsel %vm4180, %v955, %v3539
        %v4245 = vsel %vm4180, %v979, %v3541
        %v4246 = vsel %vm4180, %v993, %v3543
        %v4247 = vsel %vm4180, %v1001, %v3545
        %v4248 = vsel %vm4180, %v1003, %v3547
        %v4249 = vsel %vm4180, %v986, %v3549
        %v4250 = vsel %vm4180, %v1000, %v3551
        %v4251 = vsel %vm4180, %v1002, %v3553
        %v4252 = vsel %vm4180, %v1004, %v3555
        %v4253 = vsel %vm4180, %v1028, %v3557
        %v4254 = vsel %vm4180, %v1042, %v3559
        %v4255 = vsel %vm4180, %v1050, %v3561
        %v4256 = vsel %vm4180, %v1052, %v3563
        %v4257 = vsel %vm4180, %v1035, %v3565
        %v4258 = vsel %vm4180, %v1049, %v3567
        %v4259 = vsel %vm4180, %v1051, %v3569
        %v4260 = vsel %vm4180, %v1053, %v3571
        %v4261 = vsel %vm4180, %v1077, %v3573
        %v4262 = vsel %vm4180, %v1091, %v3575
        %v4263 = vsel %vm4180, %v1099, %v3577
        %v4264 = vsel %vm4180, %v1101, %v3579
        %v4265 = vsel %vm4180, %v1084, %v3581
        %v4266 = vsel %vm4180, %v1098, %v3583
        %v4267 = vsel %vm4180, %v1100, %v3585
        %v4268 = vsel %vm4180, %v1102, %v3587
        %v4269 = vsel %vm4180, %v1126, %v3589
        %v4270 = vsel %vm4180, %v1140, %v3591
        %v4271 = vsel %vm4180, %v1148, %v3593
        %v4272 = vsel %vm4180, %v1150, %v3595
        %v4273 = vsel %vm4180, %v1133, %v3597
        %v4274 = vsel %vm4180, %v1147, %v3599
        %v4275 = vsel %vm4180, %v1149, %v3601
        %v4276 = vsel %vm4180, %v1151, %v3603
        %v4277 = vsel %vm4180, %v1175, %v3605
        %v4278 = vsel %vm4180, %v1189, %v3607
        %v4279 = vsel %vm4180, %v1197, %v3609
        %v4280 = vsel %vm4180, %v1199, %v3611
        %v4281 = vsel %vm4180, %v1182, %v3613
        %v4282 = vsel %vm4180, %v1196, %v3615
        %v4283 = vsel %vm4180, %v1198, %v3617
        %v4284 = vsel %vm4180, %v1200, %v3619
        %v4285 = vsel %vm4180, %v1224, %v3621
        %v4286 = vsel %vm4180, %v1238, %v3623
        %v4287 = vsel %vm4180, %v1246, %v3625
        %v4288 = vsel %vm4180, %v1248, %v3627
        %v4289 = vsel %vm4180, %v1231, %v3629
        %v4290 = vsel %vm4180, %v1245, %v3631
        %v4291 = vsel %vm4180, %v1247, %v3633
        %v4292 = vsel %vm4180, %v1249, %v3635
        %v4293 = vsel %vm4180, %v1273, %v3637
        %v4294 = vsel %vm4180, %v1287, %v3639
        %v4295 = vsel %vm4180, %v1295, %v3641
        %v4296 = vsel %vm4180, %v1297, %v3643
        %v4297 = vsel %vm4180, %v1280, %v3645
        %v4298 = vsel %vm4180, %v1294, %v3647
        %v4299 = vsel %vm4180, %v1296, %v3649
        %v4300 = vsel %vm4180, %v1298, %v3651
        %v4301 = vsel %vm4180, %v1322, %v3653
        %v4302 = vsel %vm4180, %v1336, %v3655
        %v4303 = vsel %vm4180, %v1344, %v3657
        %v4304 = vsel %vm4180, %v1346, %v3659
        %v4305 = vsel %vm4180, %v1329, %v3661
        %v4306 = vsel %vm4180, %v1343, %v3663
        %v4307 = vsel %vm4180, %v1345, %v3665
        %v4308 = vsel %vm4180, %v1347, %v3667
        %v4309 = vsel %vm4180, %v1371, %v3669
        %v4310 = vsel %vm4180, %v1385, %v3671
        %v4311 = vsel %vm4180, %v1393, %v3673
        %v4312 = vsel %vm4180, %v1395, %v3675
        %v4313 = vsel %vm4180, %v1378, %v3677
        %v4314 = vsel %vm4180, %v1392, %v3679
        %v4315 = vsel %vm4180, %v1394, %v3681
        %v4316 = vsel %vm4180, %v1396, %v3683
        %v4317 = vsel %vm4180, %v1420, %v3685
        %v4318 = vsel %vm4180, %v1434, %v3687
        %v4319 = vsel %vm4180, %v1442, %v3689
        %v4320 = vsel %vm4180, %v1444, %v3691
        %v4321 = vsel %vm4180, %v1427, %v3693
        %v4322 = vsel %vm4180, %v1441, %v3695
        %v4323 = vsel %vm4180, %v1443, %v3697
        %v4324 = vsel %vm4180, %v1445, %v3699
        %v4325 = vsel %vm4180, %v1469, %v3701
        %v4326 = vsel %vm4180, %v1483, %v3703
        %v4327 = vsel %vm4180, %v1491, %v3705
        %v4328 = vsel %vm4180, %v1493, %v3707
        %v4329 = vsel %vm4180, %v1476, %v3709
        %v4330 = vsel %vm4180, %v1490, %v3711
        %v4331 = vsel %vm4180, %v1492, %v3713
        %v4332 = vsel %vm4180, %v1494, %v3715
        %v4333 = vsel %vm4180, %v1518, %v3717
        %v4334 = vsel %vm4180, %v1532, %v3719
        %v4335 = vsel %vm4180, %v1540, %v3721
        %v4336 = vsel %vm4180, %v1542, %v3723
        %v4337 = vsel %vm4180, %v1525, %v3725
        %v4338 = vsel %vm4180, %v1539, %v3727
        %v4339 = vsel %vm4180, %v1541, %v3729
        %v4340 = vsel %vm4180, %v1543, %v3731
        %v4341 = vsel %vm4180, %v1567, %v3733
        %v4342 = vsel %vm4180, %v1581, %v3735
        %v4343 = vsel %vm4180, %v1589, %v3737
        %v4344 = vsel %vm4180, %v1591, %v3739
        %v4345 = vsel %vm4180, %v1574, %v3741
        %v4346 = vsel %vm4180, %v1588, %v3743
        %v4347 = vsel %vm4180, %v1590, %v3745
        %v4348 = vsel %vm4180, %v1592, %v3747
        %v4349 = vsel %vm4180, %v1616, %v3749
        %v4350 = vsel %vm4180, %v1630, %v3751
        %v4351 = vsel %vm4180, %v1638, %v3753
        %v4352 = vsel %vm4180, %v1640, %v3755
        %v4353 = vsel %vm4180, %v1623, %v3757
        %v4354 = vsel %vm4180, %v1637, %v3759
        %v4355 = vsel %vm4180, %v1639, %v3761
        %v4356 = vsel %vm4180, %v1641, %v3763
        %v4357 = vsel %vm4180, %v1665, %v3765
        %v4358 = vsel %vm4180, %v1679, %v3767
        %v4359 = vsel %vm4180, %v1687, %v3769
        %v4360 = vsel %vm4180, %v1689, %v3771
        %v4361 = vsel %vm4180, %v1672, %v3773
        %v4362 = vsel %vm4180, %v1686, %v3775
        %v4363 = vsel %vm4180, %v1688, %v3777
        %v4364 = vsel %vm4180, %v1690, %v3779
        %v4365 = vsel %vm4180, %v1714, %v3781
        %v4366 = vsel %vm4180, %v1728, %v3783
        %v4367 = vsel %vm4180, %v1736, %v3785
        %v4368 = vsel %vm4180, %v1738, %v3787
        %v4369 = vsel %vm4180, %v1721, %v3789
        %v4370 = vsel %vm4180, %v1735, %v3791
        %v4371 = vsel %vm4180, %v1737, %v3793
        %v4372 = vsel %vm4180, %v1739, %v3795
        %v4373 = vsel %vm4180, %v1763, %v3797
        %v4374 = vsel %vm4180, %v1777, %v3799
        %v4375 = vsel %vm4180, %v1785, %v3801
        %v4376 = vsel %vm4180, %v1787, %v3803
        %v4377 = vsel %vm4180, %v1770, %v3805
        %v4378 = vsel %vm4180, %v1784, %v3807
        %v4379 = vsel %vm4180, %v1786, %v3809
        %v4380 = vsel %vm4180, %v1788, %v3811
        %v4381 = vsel %vm4180, %v1812, %v3813
        %v4382 = vsel %vm4180, %v1826, %v3815
        %v4383 = vsel %vm4180, %v1834, %v3817
        %v4384 = vsel %vm4180, %v1836, %v3819
        %v4385 = vsel %vm4180, %v1819, %v3821
        %v4386 = vsel %vm4180, %v1833, %v3823
        %v4387 = vsel %vm4180, %v1835, %v3825
        %v4388 = vsel %vm4180, %v1837, %v3827
        %v4389 = vsel %vm4180, %v1861, %v3829
        %v4390 = vsel %vm4180, %v1875, %v3831
        %v4391 = vsel %vm4180, %v1883, %v3833
        %v4392 = vsel %vm4180, %v1885, %v3835
        %v4393 = vsel %vm4180, %v1868, %v3837
        %v4394 = vsel %vm4180, %v1882, %v3839
        %v4395 = vsel %vm4180, %v1884, %v3841
        %v4396 = vsel %vm4180, %v1886, %v3843
        %v4397 = vsel %vm4180, %v1910, %v3845
        %v4398 = vsel %vm4180, %v1924, %v3847
        %v4399 = vsel %vm4180, %v1932, %v3849
        %v4400 = vsel %vm4180, %v1934, %v3851
        %v4401 = vsel %vm4180, %v1917, %v3853
        %v4402 = vsel %vm4180, %v1931, %v3855
        %v4403 = vsel %vm4180, %v1933, %v3857
        %v4404 = vsel %vm4180, %v1935, %v3859
        %v4405 = vsel %vm4180, %v1959, %v3861
        %v4406 = vsel %vm4180, %v1973, %v3863
        %v4407 = vsel %vm4180, %v1981, %v3865
        %v4408 = vsel %vm4180, %v1983, %v3867
        %v4409 = vsel %vm4180, %v1966, %v3869
        %v4410 = vsel %vm4180, %v1980, %v3871
        %v4411 = vsel %vm4180, %v1982, %v3873
        %v4412 = vsel %vm4180, %v1984, %v3875
        %v4413 = vsel %vm4180, %v2008, %v3877
        %v4414 = vsel %vm4180, %v2022, %v3879
        %v4415 = vsel %vm4180, %v2030, %v3881
        %v4416 = vsel %vm4180, %v2032, %v3883
        %v4417 = vsel %vm4180, %v2015, %v3885
        %v4418 = vsel %vm4180, %v2029, %v3887
        %v4419 = vsel %vm4180, %v2031, %v3889
        %v4420 = vsel %vm4180, %v2033, %v3891
        %v4421 = vsel %vm4180, %v2057, %v3893
        %v4422 = vsel %vm4180, %v2071, %v3895
        %v4423 = vsel %vm4180, %v2079, %v3897
        %v4424 = vsel %vm4180, %v2081, %v3899
        %v4425 = vsel %vm4180, %v2064, %v3901
        %v4426 = vsel %vm4180, %v2078, %v3903
        %v4427 = vsel %vm4180, %v2080, %v3905
        %v4428 = vsel %vm4180, %v2082, %v3907
        %v4429 = vsel %vm4180, %v2106, %v3909
        %v4430 = vsel %vm4180, %v2120, %v3911
        %v4431 = vsel %vm4180, %v2128, %v3913
        %v4432 = vsel %vm4180, %v2130, %v3915
        %v4433 = vsel %vm4180, %v2113, %v3917
        %v4434 = vsel %vm4180, %v2127, %v3919
        %v4435 = vsel %vm4180, %v2129, %v3921
        %v4436 = vsel %vm4180, %v2131, %v3923
        %4693 = vrot.lane.b32.xlu0 %v4181, 120
        %v4694 = vpop.permute.xlu0 %4693
        %4695 = vrot.lane.b32.xlu0 %v4182, 120
        %v4696 = vpop.permute.xlu0 %4695
        %4697 = vrot.lane.b32.xlu0 %v4183, 120
        %v4698 = vpop.permute.xlu0 %4697
        %4699 = vrot.lane.b32.xlu0 %v4184, 120
        %v4700 = vpop.permute.xlu0 %4699
        %4701 = vrot.lane.b32.xlu0 %v4185, 120
        %v4702 = vpop.permute.xlu0 %4701
        %4703 = vrot.lane.b32.xlu0 %v4186, 120
        %v4704 = vpop.permute.xlu0 %4703
        %4705 = vrot.lane.b32.xlu0 %v4187, 120
        %v4706 = vpop.permute.xlu0 %4705
        %4707 = vrot.lane.b32.xlu0 %v4188, 120
        %v4708 = vpop.permute.xlu0 %4707
        %4709 = vrot.lane.b32.xlu0 %v4189, 120
        %v4710 = vpop.permute.xlu0 %4709
        %4711 = vrot.lane.b32.xlu0 %v4190, 120
        %v4712 = vpop.permute.xlu0 %4711
        %4713 = vrot.lane.b32.xlu0 %v4191, 120
        %v4714 = vpop.permute.xlu0 %4713
        %4715 = vrot.lane.b32.xlu0 %v4192, 120
        %v4716 = vpop.permute.xlu0 %4715
        %4717 = vrot.lane.b32.xlu0 %v4193, 120
        %v4718 = vpop.permute.xlu0 %4717
        %4719 = vrot.lane.b32.xlu0 %v4194, 120
        %v4720 = vpop.permute.xlu0 %4719
        %4721 = vrot.lane.b32.xlu0 %v4195, 120
        %v4722 = vpop.permute.xlu0 %4721
        %4723 = vrot.lane.b32.xlu0 %v4196, 120
        %v4724 = vpop.permute.xlu0 %4723
        %4725 = vrot.lane.b32.xlu0 %v4197, 120
        %v4726 = vpop.permute.xlu0 %4725
        %4727 = vrot.lane.b32.xlu0 %v4198, 120
        %v4728 = vpop.permute.xlu0 %4727
        %4729 = vrot.lane.b32.xlu0 %v4199, 120
        %v4730 = vpop.permute.xlu0 %4729
        %4731 = vrot.lane.b32.xlu0 %v4200, 120
        %v4732 = vpop.permute.xlu0 %4731
        %4733 = vrot.lane.b32.xlu0 %v4201, 120
        %v4734 = vpop.permute.xlu0 %4733
        %4735 = vrot.lane.b32.xlu0 %v4202, 120
        %v4736 = vpop.permute.xlu0 %4735
        %4737 = vrot.lane.b32.xlu0 %v4203, 120
        %v4738 = vpop.permute.xlu0 %4737
        %4739 = vrot.lane.b32.xlu0 %v4204, 120
        %v4740 = vpop.permute.xlu0 %4739
        %4741 = vrot.lane.b32.xlu0 %v4205, 120
        %v4742 = vpop.permute.xlu0 %4741
        %4743 = vrot.lane.b32.xlu0 %v4206, 120
        %v4744 = vpop.permute.xlu0 %4743
        %4745 = vrot.lane.b32.xlu0 %v4207, 120
        %v4746 = vpop.permute.xlu0 %4745
        %4747 = vrot.lane.b32.xlu0 %v4208, 120
        %v4748 = vpop.permute.xlu0 %4747
        %4749 = vrot.lane.b32.xlu0 %v4209, 120
        %v4750 = vpop.permute.xlu0 %4749
        %4751 = vrot.lane.b32.xlu0 %v4210, 120
        %v4752 = vpop.permute.xlu0 %4751
        %4753 = vrot.lane.b32.xlu0 %v4211, 120
        %v4754 = vpop.permute.xlu0 %4753
        %4755 = vrot.lane.b32.xlu0 %v4212, 120
        %v4756 = vpop.permute.xlu0 %4755
        %4757 = vrot.lane.b32.xlu0 %v4213, 120
        %v4758 = vpop.permute.xlu0 %4757
        %4759 = vrot.lane.b32.xlu0 %v4214, 120
        %v4760 = vpop.permute.xlu0 %4759
        %4761 = vrot.lane.b32.xlu0 %v4215, 120
        %v4762 = vpop.permute.xlu0 %4761
        %4763 = vrot.lane.b32.xlu0 %v4216, 120
        %v4764 = vpop.permute.xlu0 %4763
        %4765 = vrot.lane.b32.xlu0 %v4217, 120
        %v4766 = vpop.permute.xlu0 %4765
        %4767 = vrot.lane.b32.xlu0 %v4218, 120
        %v4768 = vpop.permute.xlu0 %4767
        %4769 = vrot.lane.b32.xlu0 %v4219, 120
        %v4770 = vpop.permute.xlu0 %4769
        %4771 = vrot.lane.b32.xlu0 %v4220, 120
        %v4772 = vpop.permute.xlu0 %4771
        %4773 = vrot.lane.b32.xlu0 %v4221, 120
        %v4774 = vpop.permute.xlu0 %4773
        %4775 = vrot.lane.b32.xlu0 %v4222, 120
        %v4776 = vpop.permute.xlu0 %4775
        %4777 = vrot.lane.b32.xlu0 %v4223, 120
        %v4778 = vpop.permute.xlu0 %4777
        %4779 = vrot.lane.b32.xlu0 %v4224, 120
        %v4780 = vpop.permute.xlu0 %4779
        %4781 = vrot.lane.b32.xlu0 %v4225, 120
        %v4782 = vpop.permute.xlu0 %4781
        %4783 = vrot.lane.b32.xlu0 %v4226, 120
        %v4784 = vpop.permute.xlu0 %4783
        %4785 = vrot.lane.b32.xlu0 %v4227, 120
        %v4786 = vpop.permute.xlu0 %4785
        %4787 = vrot.lane.b32.xlu0 %v4228, 120
        %v4788 = vpop.permute.xlu0 %4787
        %4789 = vrot.lane.b32.xlu0 %v4229, 120
        %v4790 = vpop.permute.xlu0 %4789
        %4791 = vrot.lane.b32.xlu0 %v4230, 120
        %v4792 = vpop.permute.xlu0 %4791
        %4793 = vrot.lane.b32.xlu0 %v4231, 120
        %v4794 = vpop.permute.xlu0 %4793
        %4795 = vrot.lane.b32.xlu0 %v4232, 120
        %v4796 = vpop.permute.xlu0 %4795
        %4797 = vrot.lane.b32.xlu0 %v4233, 120
        %v4798 = vpop.permute.xlu0 %4797
        %4799 = vrot.lane.b32.xlu0 %v4234, 120
        %v4800 = vpop.permute.xlu0 %4799
        %4801 = vrot.lane.b32.xlu0 %v4235, 120
        %v4802 = vpop.permute.xlu0 %4801
        %4803 = vrot.lane.b32.xlu0 %v4236, 120
        %v4804 = vpop.permute.xlu0 %4803
        %4805 = vrot.lane.b32.xlu0 %v4237, 120
        %v4806 = vpop.permute.xlu0 %4805
        %4807 = vrot.lane.b32.xlu0 %v4238, 120
        %v4808 = vpop.permute.xlu0 %4807
        %4809 = vrot.lane.b32.xlu0 %v4239, 120
        %v4810 = vpop.permute.xlu0 %4809
        %4811 = vrot.lane.b32.xlu0 %v4240, 120
        %v4812 = vpop.permute.xlu0 %4811
        %4813 = vrot.lane.b32.xlu0 %v4241, 120
        %v4814 = vpop.permute.xlu0 %4813
        %4815 = vrot.lane.b32.xlu0 %v4242, 120
        %v4816 = vpop.permute.xlu0 %4815
        %4817 = vrot.lane.b32.xlu0 %v4243, 120
        %v4818 = vpop.permute.xlu0 %4817
        %4819 = vrot.lane.b32.xlu0 %v4244, 120
        %v4820 = vpop.permute.xlu0 %4819
        %4821 = vrot.lane.b32.xlu0 %v4245, 120
        %v4822 = vpop.permute.xlu0 %4821
        %4823 = vrot.lane.b32.xlu0 %v4246, 120
        %v4824 = vpop.permute.xlu0 %4823
        %4825 = vrot.lane.b32.xlu0 %v4247, 120
        %v4826 = vpop.permute.xlu0 %4825
        %4827 = vrot.lane.b32.xlu0 %v4248, 120
        %v4828 = vpop.permute.xlu0 %4827
        %4829 = vrot.lane.b32.xlu0 %v4249, 120
        %v4830 = vpop.permute.xlu0 %4829
        %4831 = vrot.lane.b32.xlu0 %v4250, 120
        %v4832 = vpop.permute.xlu0 %4831
        %4833 = vrot.lane.b32.xlu0 %v4251, 120
        %v4834 = vpop.permute.xlu0 %4833
        %4835 = vrot.lane.b32.xlu0 %v4252, 120
        %v4836 = vpop.permute.xlu0 %4835
        %4837 = vrot.lane.b32.xlu0 %v4253, 120
        %v4838 = vpop.permute.xlu0 %4837
        %4839 = vrot.lane.b32.xlu0 %v4254, 120
        %v4840 = vpop.permute.xlu0 %4839
        %4841 = vrot.lane.b32.xlu0 %v4255, 120
        %v4842 = vpop.permute.xlu0 %4841
        %4843 = vrot.lane.b32.xlu0 %v4256, 120
        %v4844 = vpop.permute.xlu0 %4843
        %4845 = vrot.lane.b32.xlu0 %v4257, 120
        %v4846 = vpop.permute.xlu0 %4845
        %4847 = vrot.lane.b32.xlu0 %v4258, 120
        %v4848 = vpop.permute.xlu0 %4847
        %4849 = vrot.lane.b32.xlu0 %v4259, 120
        %v4850 = vpop.permute.xlu0 %4849
        %4851 = vrot.lane.b32.xlu0 %v4260, 120
        %v4852 = vpop.permute.xlu0 %4851
        %4853 = vrot.lane.b32.xlu0 %v4261, 120
        %v4854 = vpop.permute.xlu0 %4853
        %4855 = vrot.lane.b32.xlu0 %v4262, 120
        %v4856 = vpop.permute.xlu0 %4855
        %4857 = vrot.lane.b32.xlu0 %v4263, 120
        %v4858 = vpop.permute.xlu0 %4857
        %4859 = vrot.lane.b32.xlu0 %v4264, 120
        %v4860 = vpop.permute.xlu0 %4859
        %4861 = vrot.lane.b32.xlu0 %v4265, 120
        %v4862 = vpop.permute.xlu0 %4861
        %4863 = vrot.lane.b32.xlu0 %v4266, 120
        %v4864 = vpop.permute.xlu0 %4863
        %4865 = vrot.lane.b32.xlu0 %v4267, 120
        %v4866 = vpop.permute.xlu0 %4865
        %4867 = vrot.lane.b32.xlu0 %v4268, 120
        %v4868 = vpop.permute.xlu0 %4867
        %4869 = vrot.lane.b32.xlu0 %v4269, 120
        %v4870 = vpop.permute.xlu0 %4869
        %4871 = vrot.lane.b32.xlu0 %v4270, 120
        %v4872 = vpop.permute.xlu0 %4871
        %4873 = vrot.lane.b32.xlu0 %v4271, 120
        %v4874 = vpop.permute.xlu0 %4873
        %4875 = vrot.lane.b32.xlu0 %v4272, 120
        %v4876 = vpop.permute.xlu0 %4875
        %4877 = vrot.lane.b32.xlu0 %v4273, 120
        %v4878 = vpop.permute.xlu0 %4877
        %4879 = vrot.lane.b32.xlu0 %v4274, 120
        %v4880 = vpop.permute.xlu0 %4879
        %4881 = vrot.lane.b32.xlu0 %v4275, 120
        %v4882 = vpop.permute.xlu0 %4881
        %4883 = vrot.lane.b32.xlu0 %v4276, 120
        %v4884 = vpop.permute.xlu0 %4883
        %4885 = vrot.lane.b32.xlu0 %v4277, 120
        %v4886 = vpop.permute.xlu0 %4885
        %4887 = vrot.lane.b32.xlu0 %v4278, 120
        %v4888 = vpop.permute.xlu0 %4887
        %4889 = vrot.lane.b32.xlu0 %v4279, 120
        %v4890 = vpop.permute.xlu0 %4889
        %4891 = vrot.lane.b32.xlu0 %v4280, 120
        %v4892 = vpop.permute.xlu0 %4891
        %4893 = vrot.lane.b32.xlu0 %v4281, 120
        %v4894 = vpop.permute.xlu0 %4893
        %4895 = vrot.lane.b32.xlu0 %v4282, 120
        %v4896 = vpop.permute.xlu0 %4895
        %4897 = vrot.lane.b32.xlu0 %v4283, 120
        %v4898 = vpop.permute.xlu0 %4897
        %4899 = vrot.lane.b32.xlu0 %v4284, 120
        %v4900 = vpop.permute.xlu0 %4899
        %4901 = vrot.lane.b32.xlu0 %v4285, 120
        %v4902 = vpop.permute.xlu0 %4901
        %4903 = vrot.lane.b32.xlu0 %v4286, 120
        %v4904 = vpop.permute.xlu0 %4903
        %4905 = vrot.lane.b32.xlu0 %v4287, 120
        %v4906 = vpop.permute.xlu0 %4905
        %4907 = vrot.lane.b32.xlu0 %v4288, 120
        %v4908 = vpop.permute.xlu0 %4907
        %4909 = vrot.lane.b32.xlu0 %v4289, 120
        %v4910 = vpop.permute.xlu0 %4909
        %4911 = vrot.lane.b32.xlu0 %v4290, 120
        %v4912 = vpop.permute.xlu0 %4911
        %4913 = vrot.lane.b32.xlu0 %v4291, 120
        %v4914 = vpop.permute.xlu0 %4913
        %4915 = vrot.lane.b32.xlu0 %v4292, 120
        %v4916 = vpop.permute.xlu0 %4915
        %4917 = vrot.lane.b32.xlu0 %v4293, 120
        %v4918 = vpop.permute.xlu0 %4917
        %4919 = vrot.lane.b32.xlu0 %v4294, 120
        %v4920 = vpop.permute.xlu0 %4919
        %4921 = vrot.lane.b32.xlu0 %v4295, 120
        %v4922 = vpop.permute.xlu0 %4921
        %4923 = vrot.lane.b32.xlu0 %v4296, 120
        %v4924 = vpop.permute.xlu0 %4923
        %4925 = vrot.lane.b32.xlu0 %v4297, 120
        %v4926 = vpop.permute.xlu0 %4925
        %4927 = vrot.lane.b32.xlu0 %v4298, 120
        %v4928 = vpop.permute.xlu0 %4927
        %4929 = vrot.lane.b32.xlu0 %v4299, 120
        %v4930 = vpop.permute.xlu0 %4929
        %4931 = vrot.lane.b32.xlu0 %v4300, 120
        %v4932 = vpop.permute.xlu0 %4931
        %4933 = vrot.lane.b32.xlu0 %v4301, 120
        %v4934 = vpop.permute.xlu0 %4933
        %4935 = vrot.lane.b32.xlu0 %v4302, 120
        %v4936 = vpop.permute.xlu0 %4935
        %4937 = vrot.lane.b32.xlu0 %v4303, 120
        %v4938 = vpop.permute.xlu0 %4937
        %4939 = vrot.lane.b32.xlu0 %v4304, 120
        %v4940 = vpop.permute.xlu0 %4939
        %4941 = vrot.lane.b32.xlu0 %v4305, 120
        %v4942 = vpop.permute.xlu0 %4941
        %4943 = vrot.lane.b32.xlu0 %v4306, 120
        %v4944 = vpop.permute.xlu0 %4943
        %4945 = vrot.lane.b32.xlu0 %v4307, 120
        %v4946 = vpop.permute.xlu0 %4945
        %4947 = vrot.lane.b32.xlu0 %v4308, 120
        %v4948 = vpop.permute.xlu0 %4947
        %4949 = vrot.lane.b32.xlu0 %v4309, 120
        %v4950 = vpop.permute.xlu0 %4949
        %4951 = vrot.lane.b32.xlu0 %v4310, 120
        %v4952 = vpop.permute.xlu0 %4951
        %4953 = vrot.lane.b32.xlu0 %v4311, 120
        %v4954 = vpop.permute.xlu0 %4953
        %4955 = vrot.lane.b32.xlu0 %v4312, 120
        %v4956 = vpop.permute.xlu0 %4955
        %4957 = vrot.lane.b32.xlu0 %v4313, 120
        %v4958 = vpop.permute.xlu0 %4957
        %4959 = vrot.lane.b32.xlu0 %v4314, 120
        %v4960 = vpop.permute.xlu0 %4959
        %4961 = vrot.lane.b32.xlu0 %v4315, 120
        %v4962 = vpop.permute.xlu0 %4961
        %4963 = vrot.lane.b32.xlu0 %v4316, 120
        %v4964 = vpop.permute.xlu0 %4963
        %4965 = vrot.lane.b32.xlu0 %v4317, 120
        %v4966 = vpop.permute.xlu0 %4965
        %4967 = vrot.lane.b32.xlu0 %v4318, 120
        %v4968 = vpop.permute.xlu0 %4967
        %4969 = vrot.lane.b32.xlu0 %v4319, 120
        %v4970 = vpop.permute.xlu0 %4969
        %4971 = vrot.lane.b32.xlu0 %v4320, 120
        %v4972 = vpop.permute.xlu0 %4971
        %4973 = vrot.lane.b32.xlu0 %v4321, 120
        %v4974 = vpop.permute.xlu0 %4973
        %4975 = vrot.lane.b32.xlu0 %v4322, 120
        %v4976 = vpop.permute.xlu0 %4975
        %4977 = vrot.lane.b32.xlu0 %v4323, 120
        %v4978 = vpop.permute.xlu0 %4977
        %4979 = vrot.lane.b32.xlu0 %v4324, 120
        %v4980 = vpop.permute.xlu0 %4979
        %4981 = vrot.lane.b32.xlu0 %v4325, 120
        %v4982 = vpop.permute.xlu0 %4981
        %4983 = vrot.lane.b32.xlu0 %v4326, 120
        %v4984 = vpop.permute.xlu0 %4983
        %4985 = vrot.lane.b32.xlu0 %v4327, 120
        %v4986 = vpop.permute.xlu0 %4985
        %4987 = vrot.lane.b32.xlu0 %v4328, 120
        %v4988 = vpop.permute.xlu0 %4987
        %4989 = vrot.lane.b32.xlu0 %v4329, 120
        %v4990 = vpop.permute.xlu0 %4989
        %4991 = vrot.lane.b32.xlu0 %v4330, 120
        %v4992 = vpop.permute.xlu0 %4991
        %4993 = vrot.lane.b32.xlu0 %v4331, 120
        %v4994 = vpop.permute.xlu0 %4993
        %4995 = vrot.lane.b32.xlu0 %v4332, 120
        %v4996 = vpop.permute.xlu0 %4995
        %4997 = vrot.lane.b32.xlu0 %v4333, 120
        %v4998 = vpop.permute.xlu0 %4997
        %4999 = vrot.lane.b32.xlu0 %v4334, 120
        %v5000 = vpop.permute.xlu0 %4999
        %5001 = vrot.lane.b32.xlu0 %v4335, 120
        %v5002 = vpop.permute.xlu0 %5001
        %5003 = vrot.lane.b32.xlu0 %v4336, 120
        %v5004 = vpop.permute.xlu0 %5003
        %5005 = vrot.lane.b32.xlu0 %v4337, 120
        %v5006 = vpop.permute.xlu0 %5005
        %5007 = vrot.lane.b32.xlu0 %v4338, 120
        %v5008 = vpop.permute.xlu0 %5007
        %5009 = vrot.lane.b32.xlu0 %v4339, 120
        %v5010 = vpop.permute.xlu0 %5009
        %5011 = vrot.lane.b32.xlu0 %v4340, 120
        %v5012 = vpop.permute.xlu0 %5011
        %5013 = vrot.lane.b32.xlu0 %v4341, 120
        %v5014 = vpop.permute.xlu0 %5013
        %5015 = vrot.lane.b32.xlu0 %v4342, 120
        %v5016 = vpop.permute.xlu0 %5015
        %5017 = vrot.lane.b32.xlu0 %v4343, 120
        %v5018 = vpop.permute.xlu0 %5017
        %5019 = vrot.lane.b32.xlu0 %v4344, 120
        %v5020 = vpop.permute.xlu0 %5019
        %5021 = vrot.lane.b32.xlu0 %v4345, 120
        %v5022 = vpop.permute.xlu0 %5021
        %5023 = vrot.lane.b32.xlu0 %v4346, 120
        %v5024 = vpop.permute.xlu0 %5023
        %5025 = vrot.lane.b32.xlu0 %v4347, 120
        %v5026 = vpop.permute.xlu0 %5025
        %5027 = vrot.lane.b32.xlu0 %v4348, 120
        %v5028 = vpop.permute.xlu0 %5027
        %5029 = vrot.lane.b32.xlu0 %v4349, 120
        %v5030 = vpop.permute.xlu0 %5029
        %5031 = vrot.lane.b32.xlu0 %v4350, 120
        %v5032 = vpop.permute.xlu0 %5031
        %5033 = vrot.lane.b32.xlu0 %v4351, 120
        %v5034 = vpop.permute.xlu0 %5033
        %5035 = vrot.lane.b32.xlu0 %v4352, 120
        %v5036 = vpop.permute.xlu0 %5035
        %5037 = vrot.lane.b32.xlu0 %v4353, 120
        %v5038 = vpop.permute.xlu0 %5037
        %5039 = vrot.lane.b32.xlu0 %v4354, 120
        %v5040 = vpop.permute.xlu0 %5039
        %5041 = vrot.lane.b32.xlu0 %v4355, 120
        %v5042 = vpop.permute.xlu0 %5041
        %5043 = vrot.lane.b32.xlu0 %v4356, 120
        %v5044 = vpop.permute.xlu0 %5043
        %5045 = vrot.lane.b32.xlu0 %v4357, 120
        %v5046 = vpop.permute.xlu0 %5045
        %5047 = vrot.lane.b32.xlu0 %v4358, 120
        %v5048 = vpop.permute.xlu0 %5047
        %5049 = vrot.lane.b32.xlu0 %v4359, 120
        %v5050 = vpop.permute.xlu0 %5049
        %5051 = vrot.lane.b32.xlu0 %v4360, 120
        %v5052 = vpop.permute.xlu0 %5051
        %5053 = vrot.lane.b32.xlu0 %v4361, 120
        %v5054 = vpop.permute.xlu0 %5053
        %5055 = vrot.lane.b32.xlu0 %v4362, 120
        %v5056 = vpop.permute.xlu0 %5055
        %5057 = vrot.lane.b32.xlu0 %v4363, 120
        %v5058 = vpop.permute.xlu0 %5057
        %5059 = vrot.lane.b32.xlu0 %v4364, 120
        %v5060 = vpop.permute.xlu0 %5059
        %5061 = vrot.lane.b32.xlu0 %v4365, 120
        %v5062 = vpop.permute.xlu0 %5061
        %5063 = vrot.lane.b32.xlu0 %v4366, 120
        %v5064 = vpop.permute.xlu0 %5063
        %5065 = vrot.lane.b32.xlu0 %v4367, 120
        %v5066 = vpop.permute.xlu0 %5065
        %5067 = vrot.lane.b32.xlu0 %v4368, 120
        %v5068 = vpop.permute.xlu0 %5067
        %5069 = vrot.lane.b32.xlu0 %v4369, 120
        %v5070 = vpop.permute.xlu0 %5069
        %5071 = vrot.lane.b32.xlu0 %v4370, 120
        %v5072 = vpop.permute.xlu0 %5071
        %5073 = vrot.lane.b32.xlu0 %v4371, 120
        %v5074 = vpop.permute.xlu0 %5073
        %5075 = vrot.lane.b32.xlu0 %v4372, 120
        %v5076 = vpop.permute.xlu0 %5075
        %5077 = vrot.lane.b32.xlu0 %v4373, 120
        %v5078 = vpop.permute.xlu0 %5077
        %5079 = vrot.lane.b32.xlu0 %v4374, 120
        %v5080 = vpop.permute.xlu0 %5079
        %5081 = vrot.lane.b32.xlu0 %v4375, 120
        %v5082 = vpop.permute.xlu0 %5081
        %5083 = vrot.lane.b32.xlu0 %v4376, 120
        %v5084 = vpop.permute.xlu0 %5083
        %5085 = vrot.lane.b32.xlu0 %v4377, 120
        %v5086 = vpop.permute.xlu0 %5085
        %5087 = vrot.lane.b32.xlu0 %v4378, 120
        %v5088 = vpop.permute.xlu0 %5087
        %5089 = vrot.lane.b32.xlu0 %v4379, 120
        %v5090 = vpop.permute.xlu0 %5089
        %5091 = vrot.lane.b32.xlu0 %v4380, 120
        %v5092 = vpop.permute.xlu0 %5091
        %5093 = vrot.lane.b32.xlu0 %v4381, 120
        %v5094 = vpop.permute.xlu0 %5093
        %5095 = vrot.lane.b32.xlu0 %v4382, 120
        %v5096 = vpop.permute.xlu0 %5095
        %5097 = vrot.lane.b32.xlu0 %v4383, 120
        %v5098 = vpop.permute.xlu0 %5097
        %5099 = vrot.lane.b32.xlu0 %v4384, 120
        %v5100 = vpop.permute.xlu0 %5099
        %5101 = vrot.lane.b32.xlu0 %v4385, 120
        %v5102 = vpop.permute.xlu0 %5101
        %5103 = vrot.lane.b32.xlu0 %v4386, 120
        %v5104 = vpop.permute.xlu0 %5103
        %5105 = vrot.lane.b32.xlu0 %v4387, 120
        %v5106 = vpop.permute.xlu0 %5105
        %5107 = vrot.lane.b32.xlu0 %v4388, 120
        %v5108 = vpop.permute.xlu0 %5107
        %5109 = vrot.lane.b32.xlu0 %v4389, 120
        %v5110 = vpop.permute.xlu0 %5109
        %5111 = vrot.lane.b32.xlu0 %v4390, 120
        %v5112 = vpop.permute.xlu0 %5111
        %5113 = vrot.lane.b32.xlu0 %v4391, 120
        %v5114 = vpop.permute.xlu0 %5113
        %5115 = vrot.lane.b32.xlu0 %v4392, 120
        %v5116 = vpop.permute.xlu0 %5115
        %5117 = vrot.lane.b32.xlu0 %v4393, 120
        %v5118 = vpop.permute.xlu0 %5117
        %5119 = vrot.lane.b32.xlu0 %v4394, 120
        %v5120 = vpop.permute.xlu0 %5119
        %5121 = vrot.lane.b32.xlu0 %v4395, 120
        %v5122 = vpop.permute.xlu0 %5121
        %5123 = vrot.lane.b32.xlu0 %v4396, 120
        %v5124 = vpop.permute.xlu0 %5123
        %5125 = vrot.lane.b32.xlu0 %v4397, 120
        %v5126 = vpop.permute.xlu0 %5125
        %5127 = vrot.lane.b32.xlu0 %v4398, 120
        %v5128 = vpop.permute.xlu0 %5127
        %5129 = vrot.lane.b32.xlu0 %v4399, 120
        %v5130 = vpop.permute.xlu0 %5129
        %5131 = vrot.lane.b32.xlu0 %v4400, 120
        %v5132 = vpop.permute.xlu0 %5131
        %5133 = vrot.lane.b32.xlu0 %v4401, 120
        %v5134 = vpop.permute.xlu0 %5133
        %5135 = vrot.lane.b32.xlu0 %v4402, 120
        %v5136 = vpop.permute.xlu0 %5135
        %5137 = vrot.lane.b32.xlu0 %v4403, 120
        %v5138 = vpop.permute.xlu0 %5137
        %5139 = vrot.lane.b32.xlu0 %v4404, 120
        %v5140 = vpop.permute.xlu0 %5139
        %5141 = vrot.lane.b32.xlu0 %v4405, 120
        %v5142 = vpop.permute.xlu0 %5141
        %5143 = vrot.lane.b32.xlu0 %v4406, 120
        %v5144 = vpop.permute.xlu0 %5143
        %5145 = vrot.lane.b32.xlu0 %v4407, 120
        %v5146 = vpop.permute.xlu0 %5145
        %5147 = vrot.lane.b32.xlu0 %v4408, 120
        %v5148 = vpop.permute.xlu0 %5147
        %5149 = vrot.lane.b32.xlu0 %v4409, 120
        %v5150 = vpop.permute.xlu0 %5149
        %5151 = vrot.lane.b32.xlu0 %v4410, 120
        %v5152 = vpop.permute.xlu0 %5151
        %5153 = vrot.lane.b32.xlu0 %v4411, 120
        %v5154 = vpop.permute.xlu0 %5153
        %5155 = vrot.lane.b32.xlu0 %v4412, 120
        %v5156 = vpop.permute.xlu0 %5155
        %5157 = vrot.lane.b32.xlu0 %v4413, 120
        %v5158 = vpop.permute.xlu0 %5157
        %5159 = vrot.lane.b32.xlu0 %v4414, 120
        %v5160 = vpop.permute.xlu0 %5159
        %5161 = vrot.lane.b32.xlu0 %v4415, 120
        %v5162 = vpop.permute.xlu0 %5161
        %5163 = vrot.lane.b32.xlu0 %v4416, 120
        %v5164 = vpop.permute.xlu0 %5163
        %5165 = vrot.lane.b32.xlu0 %v4417, 120
        %v5166 = vpop.permute.xlu0 %5165
        %5167 = vrot.lane.b32.xlu0 %v4418, 120
        %v5168 = vpop.permute.xlu0 %5167
        %5169 = vrot.lane.b32.xlu0 %v4419, 120
        %v5170 = vpop.permute.xlu0 %5169
        %5171 = vrot.lane.b32.xlu0 %v4420, 120
        %v5172 = vpop.permute.xlu0 %5171
        %5173 = vrot.lane.b32.xlu0 %v4421, 120
        %v5174 = vpop.permute.xlu0 %5173
        %5175 = vrot.lane.b32.xlu0 %v4422, 120
        %v5176 = vpop.permute.xlu0 %5175
        %5177 = vrot.lane.b32.xlu0 %v4423, 120
        %v5178 = vpop.permute.xlu0 %5177
        %5179 = vrot.lane.b32.xlu0 %v4424, 120
        %v5180 = vpop.permute.xlu0 %5179
        %5181 = vrot.lane.b32.xlu0 %v4425, 120
        %v5182 = vpop.permute.xlu0 %5181
        %5183 = vrot.lane.b32.xlu0 %v4426, 120
        %v5184 = vpop.permute.xlu0 %5183
        %5185 = vrot.lane.b32.xlu0 %v4427, 120
        %v5186 = vpop.permute.xlu0 %5185
        %5187 = vrot.lane.b32.xlu0 %v4428, 120
        %v5188 = vpop.permute.xlu0 %5187
        %5189 = vrot.lane.b32.xlu0 %v4429, 120
        %v5190 = vpop.permute.xlu0 %5189
        %5191 = vrot.lane.b32.xlu0 %v4430, 120
        %v5192 = vpop.permute.xlu0 %5191
        %5193 = vrot.lane.b32.xlu0 %v4431, 120
        %v5194 = vpop.permute.xlu0 %5193
        %5195 = vrot.lane.b32.xlu0 %v4432, 120
        %v5196 = vpop.permute.xlu0 %5195
        %5197 = vrot.lane.b32.xlu0 %v4433, 120
        %v5198 = vpop.permute.xlu0 %5197
        %5199 = vrot.lane.b32.xlu0 %v4434, 120
        %v5200 = vpop.permute.xlu0 %5199
        %5201 = vrot.lane.b32.xlu0 %v4435, 120
        %v5202 = vpop.permute.xlu0 %5201
        %5203 = vrot.lane.b32.xlu0 %v4436, 120
        %v5204 = vpop.permute.xlu0 %5203
        %v5205 = vcombine.low %v4181, %v4182
        %v5206 = vcombine.low %v4183, %v4184
        %v5208 = vunpack.c.l.s4 1983009808
        %v5209 = vunpack.c.0.s8 %v5208
        %v5210 = vlaneseq
        %v5211 = vshrl.u32 %v5210, 7
        %v5212 = vsub.s32 %v5209, %v5211
        %v5213 = vrot.slane %v5205, %v5212
        %v5215 = vunpack.c.l.s4 1983009808
        %v5216 = vunpack.c.0.s8 %v5215
        %v5217 = vlaneseq
        %v5218 = vshrl.u32 %v5217, 7
        %v5219 = vsub.s32 %v5216, %v5218
        %v5220 = vrot.slane %v5206, %v5219
        %v5221 = vcombine.low %v5213, %v5220
        %v5222 = vcombine.low %v4185, %v4186
        %v5223 = vcombine.low %v4187, %v4188
        %v5225 = vunpack.c.l.s4 1983009808
        %v5226 = vunpack.c.0.s8 %v5225
        %v5227 = vlaneseq
        %v5228 = vshrl.u32 %v5227, 7
        %v5229 = vsub.s32 %v5226, %v5228
        %v5230 = vrot.slane %v5222, %v5229
        %v5232 = vunpack.c.l.s4 1983009808
        %v5233 = vunpack.c.0.s8 %v5232
        %v5234 = vlaneseq
        %v5235 = vshrl.u32 %v5234, 7
        %v5236 = vsub.s32 %v5233, %v5235
        %v5237 = vrot.slane %v5223, %v5236
        %v5238 = vcombine.low %v5230, %v5237
        %v5239 = vcombine.low %v4189, %v4190
        %v5240 = vcombine.low %v4191, %v4192
        %v5242 = vunpack.c.l.s4 1983009808
        %v5243 = vunpack.c.0.s8 %v5242
        %v5244 = vlaneseq
        %v5245 = vshrl.u32 %v5244, 7
        %v5246 = vsub.s32 %v5243, %v5245
        %v5247 = vrot.slane %v5239, %v5246
        %v5249 = vunpack.c.l.s4 1983009808
        %v5250 = vunpack.c.0.s8 %v5249
        %v5251 = vlaneseq
        %v5252 = vshrl.u32 %v5251, 7
        %v5253 = vsub.s32 %v5250, %v5252
        %v5254 = vrot.slane %v5240, %v5253
        %v5255 = vcombine.low %v5247, %v5254
        %v5256 = vcombine.low %v4193, %v4194
        %v5257 = vcombine.low %v4195, %v4196
        %v5259 = vunpack.c.l.s4 1983009808
        %v5260 = vunpack.c.0.s8 %v5259
        %v5261 = vlaneseq
        %v5262 = vshrl.u32 %v5261, 7
        %v5263 = vsub.s32 %v5260, %v5262
        %v5264 = vrot.slane %v5256, %v5263
        %v5266 = vunpack.c.l.s4 1983009808
        %v5267 = vunpack.c.0.s8 %v5266
        %v5268 = vlaneseq
        %v5269 = vshrl.u32 %v5268, 7
        %v5270 = vsub.s32 %v5267, %v5269
        %v5271 = vrot.slane %v5257, %v5270
        %v5272 = vcombine.low %v5264, %v5271
        %v5273 = vcombine.low %v4694, %v4696
        %v5274 = vcombine.low %v4698, %v4700
        %v5276 = vunpack.c.l.s4 1983009808
        %v5277 = vunpack.c.0.s8 %v5276
        %v5278 = vlaneseq
        %v5279 = vshrl.u32 %v5278, 7
        %v5280 = vsub.s32 %v5277, %v5279
        %v5281 = vrot.slane %v5273, %v5280
        %v5283 = vunpack.c.l.s4 1983009808
        %v5284 = vunpack.c.0.s8 %v5283
        %v5285 = vlaneseq
        %v5286 = vshrl.u32 %v5285, 7
        %v5287 = vsub.s32 %v5284, %v5286
        %v5288 = vrot.slane %v5274, %v5287
        %v5289 = vcombine.low %v5281, %v5288
        %v5290 = vcombine.low %v4702, %v4704
        %v5291 = vcombine.low %v4706, %v4708
        %v5293 = vunpack.c.l.s4 1983009808
        %v5294 = vunpack.c.0.s8 %v5293
        %v5295 = vlaneseq
        %v5296 = vshrl.u32 %v5295, 7
        %v5297 = vsub.s32 %v5294, %v5296
        %v5298 = vrot.slane %v5290, %v5297
        %v5300 = vunpack.c.l.s4 1983009808
        %v5301 = vunpack.c.0.s8 %v5300
        %v5302 = vlaneseq
        %v5303 = vshrl.u32 %v5302, 7
        %v5304 = vsub.s32 %v5301, %v5303
        %v5305 = vrot.slane %v5291, %v5304
        %v5306 = vcombine.low %v5298, %v5305
        %v5307 = vcombine.low %v4710, %v4712
        %v5308 = vcombine.low %v4714, %v4716
        %v5310 = vunpack.c.l.s4 1983009808
        %v5311 = vunpack.c.0.s8 %v5310
        %v5312 = vlaneseq
        %v5313 = vshrl.u32 %v5312, 7
        %v5314 = vsub.s32 %v5311, %v5313
        %v5315 = vrot.slane %v5307, %v5314
        %v5317 = vunpack.c.l.s4 1983009808
        %v5318 = vunpack.c.0.s8 %v5317
        %v5319 = vlaneseq
        %v5320 = vshrl.u32 %v5319, 7
        %v5321 = vsub.s32 %v5318, %v5320
        %v5322 = vrot.slane %v5308, %v5321
        %v5323 = vcombine.low %v5315, %v5322
        %v5324 = vcombine.low %v4718, %v4720
        %v5325 = vcombine.low %v4722, %v4724
        %v5327 = vunpack.c.l.s4 1983009808
        %v5328 = vunpack.c.0.s8 %v5327
        %v5329 = vlaneseq
        %v5330 = vshrl.u32 %v5329, 7
        %v5331 = vsub.s32 %v5328, %v5330
        %v5332 = vrot.slane %v5324, %v5331
        %v5334 = vunpack.c.l.s4 1983009808
        %v5335 = vunpack.c.0.s8 %v5334
        %v5336 = vlaneseq
        %v5337 = vshrl.u32 %v5336, 7
        %v5338 = vsub.s32 %v5335, %v5337
        %v5339 = vrot.slane %v5325, %v5338
        %v5340 = vcombine.low %v5332, %v5339
        %v5341 = vcombine.low %v4197, %v4198
        %v5342 = vcombine.low %v4199, %v4200
        %v5344 = vunpack.c.l.s4 1983009808
        %v5345 = vunpack.c.0.s8 %v5344
        %v5346 = vlaneseq
        %v5347 = vshrl.u32 %v5346, 7
        %v5348 = vsub.s32 %v5345, %v5347
        %v5349 = vrot.slane %v5341, %v5348
        %v5351 = vunpack.c.l.s4 1983009808
        %v5352 = vunpack.c.0.s8 %v5351
        %v5353 = vlaneseq
        %v5354 = vshrl.u32 %v5353, 7
        %v5355 = vsub.s32 %v5352, %v5354
        %v5356 = vrot.slane %v5342, %v5355
        %v5357 = vcombine.low %v5349, %v5356
        %v5358 = vcombine.low %v4201, %v4202
        %v5359 = vcombine.low %v4203, %v4204
        %v5361 = vunpack.c.l.s4 1983009808
        %v5362 = vunpack.c.0.s8 %v5361
        %v5363 = vlaneseq
        %v5364 = vshrl.u32 %v5363, 7
        %v5365 = vsub.s32 %v5362, %v5364
        %v5366 = vrot.slane %v5358, %v5365
        %v5368 = vunpack.c.l.s4 1983009808
        %v5369 = vunpack.c.0.s8 %v5368
        %v5370 = vlaneseq
        %v5371 = vshrl.u32 %v5370, 7
        %v5372 = vsub.s32 %v5369, %v5371
        %v5373 = vrot.slane %v5359, %v5372
        %v5374 = vcombine.low %v5366, %v5373
        %v5375 = vcombine.low %v4205, %v4206
        %v5376 = vcombine.low %v4207, %v4208
        %v5378 = vunpack.c.l.s4 1983009808
        %v5379 = vunpack.c.0.s8 %v5378
        %v5380 = vlaneseq
        %v5381 = vshrl.u32 %v5380, 7
        %v5382 = vsub.s32 %v5379, %v5381
        %v5383 = vrot.slane %v5375, %v5382
        %v5385 = vunpack.c.l.s4 1983009808
        %v5386 = vunpack.c.0.s8 %v5385
        %v5387 = vlaneseq
        %v5388 = vshrl.u32 %v5387, 7
        %v5389 = vsub.s32 %v5386, %v5388
        %v5390 = vrot.slane %v5376, %v5389
        %v5391 = vcombine.low %v5383, %v5390
        %v5392 = vcombine.low %v4209, %v4210
        %v5393 = vcombine.low %v4211, %v4212
        %v5395 = vunpack.c.l.s4 1983009808
        %v5396 = vunpack.c.0.s8 %v5395
        %v5397 = vlaneseq
        %v5398 = vshrl.u32 %v5397, 7
        %v5399 = vsub.s32 %v5396, %v5398
        %v5400 = vrot.slane %v5392, %v5399
        %v5402 = vunpack.c.l.s4 1983009808
        %v5403 = vunpack.c.0.s8 %v5402
        %v5404 = vlaneseq
        %v5405 = vshrl.u32 %v5404, 7
        %v5406 = vsub.s32 %v5403, %v5405
        %v5407 = vrot.slane %v5393, %v5406
        %v5408 = vcombine.low %v5400, %v5407
        %v5409 = vcombine.low %v4726, %v4728
        %v5410 = vcombine.low %v4730, %v4732
        %v5412 = vunpack.c.l.s4 1983009808
        %v5413 = vunpack.c.0.s8 %v5412
        %v5414 = vlaneseq
        %v5415 = vshrl.u32 %v5414, 7
        %v5416 = vsub.s32 %v5413, %v5415
        %v5417 = vrot.slane %v5409, %v5416
        %v5419 = vunpack.c.l.s4 1983009808
        %v5420 = vunpack.c.0.s8 %v5419
        %v5421 = vlaneseq
        %v5422 = vshrl.u32 %v5421, 7
        %v5423 = vsub.s32 %v5420, %v5422
        %v5424 = vrot.slane %v5410, %v5423
        %v5425 = vcombine.low %v5417, %v5424
        %v5426 = vcombine.low %v4734, %v4736
        %v5427 = vcombine.low %v4738, %v4740
        %v5429 = vunpack.c.l.s4 1983009808
        %v5430 = vunpack.c.0.s8 %v5429
        %v5431 = vlaneseq
        %v5432 = vshrl.u32 %v5431, 7
        %v5433 = vsub.s32 %v5430, %v5432
        %v5434 = vrot.slane %v5426, %v5433
        %v5436 = vunpack.c.l.s4 1983009808
        %v5437 = vunpack.c.0.s8 %v5436
        %v5438 = vlaneseq
        %v5439 = vshrl.u32 %v5438, 7
        %v5440 = vsub.s32 %v5437, %v5439
        %v5441 = vrot.slane %v5427, %v5440
        %v5442 = vcombine.low %v5434, %v5441
        %v5443 = vcombine.low %v4742, %v4744
        %v5444 = vcombine.low %v4746, %v4748
        %v5446 = vunpack.c.l.s4 1983009808
        %v5447 = vunpack.c.0.s8 %v5446
        %v5448 = vlaneseq
        %v5449 = vshrl.u32 %v5448, 7
        %v5450 = vsub.s32 %v5447, %v5449
        %v5451 = vrot.slane %v5443, %v5450
        %v5453 = vunpack.c.l.s4 1983009808
        %v5454 = vunpack.c.0.s8 %v5453
        %v5455 = vlaneseq
        %v5456 = vshrl.u32 %v5455, 7
        %v5457 = vsub.s32 %v5454, %v5456
        %v5458 = vrot.slane %v5444, %v5457
        %v5459 = vcombine.low %v5451, %v5458
        %v5460 = vcombine.low %v4750, %v4752
        %v5461 = vcombine.low %v4754, %v4756
        %v5463 = vunpack.c.l.s4 1983009808
        %v5464 = vunpack.c.0.s8 %v5463
        %v5465 = vlaneseq
        %v5466 = vshrl.u32 %v5465, 7
        %v5467 = vsub.s32 %v5464, %v5466
        %v5468 = vrot.slane %v5460, %v5467
        %v5470 = vunpack.c.l.s4 1983009808
        %v5471 = vunpack.c.0.s8 %v5470
        %v5472 = vlaneseq
        %v5473 = vshrl.u32 %v5472, 7
        %v5474 = vsub.s32 %v5471, %v5473
        %v5475 = vrot.slane %v5461, %v5474
        %v5476 = vcombine.low %v5468, %v5475
        %v5477 = vcombine.low %v4213, %v4214
        %v5478 = vcombine.low %v4215, %v4216
        %v5480 = vunpack.c.l.s4 1983009808
        %v5481 = vunpack.c.0.s8 %v5480
        %v5482 = vlaneseq
        %v5483 = vshrl.u32 %v5482, 7
        %v5484 = vsub.s32 %v5481, %v5483
        %v5485 = vrot.slane %v5477, %v5484
        %v5487 = vunpack.c.l.s4 1983009808
        %v5488 = vunpack.c.0.s8 %v5487
        %v5489 = vlaneseq
        %v5490 = vshrl.u32 %v5489, 7
        %v5491 = vsub.s32 %v5488, %v5490
        %v5492 = vrot.slane %v5478, %v5491
        %v5493 = vcombine.low %v5485, %v5492
        %v5494 = vcombine.low %v4217, %v4218
        %v5495 = vcombine.low %v4219, %v4220
        %v5497 = vunpack.c.l.s4 1983009808
        %v5498 = vunpack.c.0.s8 %v5497
        %v5499 = vlaneseq
        %v5500 = vshrl.u32 %v5499, 7
        %v5501 = vsub.s32 %v5498, %v5500
        %v5502 = vrot.slane %v5494, %v5501
        %v5504 = vunpack.c.l.s4 1983009808
        %v5505 = vunpack.c.0.s8 %v5504
        %v5506 = vlaneseq
        %v5507 = vshrl.u32 %v5506, 7
        %v5508 = vsub.s32 %v5505, %v5507
        %v5509 = vrot.slane %v5495, %v5508
        %v5510 = vcombine.low %v5502, %v5509
        %v5511 = vcombine.low %v4221, %v4222
        %v5512 = vcombine.low %v4223, %v4224
        %v5514 = vunpack.c.l.s4 1983009808
        %v5515 = vunpack.c.0.s8 %v5514
        %v5516 = vlaneseq
        %v5517 = vshrl.u32 %v5516, 7
        %v5518 = vsub.s32 %v5515, %v5517
        %v5519 = vrot.slane %v5511, %v5518
        %v5521 = vunpack.c.l.s4 1983009808
        %v5522 = vunpack.c.0.s8 %v5521
        %v5523 = vlaneseq
        %v5524 = vshrl.u32 %v5523, 7
        %v5525 = vsub.s32 %v5522, %v5524
        %v5526 = vrot.slane %v5512, %v5525
        %v5527 = vcombine.low %v5519, %v5526
        %v5528 = vcombine.low %v4225, %v4226
        %v5529 = vcombine.low %v4227, %v4228
        %v5531 = vunpack.c.l.s4 1983009808
        %v5532 = vunpack.c.0.s8 %v5531
        %v5533 = vlaneseq
        %v5534 = vshrl.u32 %v5533, 7
        %v5535 = vsub.s32 %v5532, %v5534
        %v5536 = vrot.slane %v5528, %v5535
        %v5538 = vunpack.c.l.s4 1983009808
        %v5539 = vunpack.c.0.s8 %v5538
        %v5540 = vlaneseq
        %v5541 = vshrl.u32 %v5540, 7
        %v5542 = vsub.s32 %v5539, %v5541
        %v5543 = vrot.slane %v5529, %v5542
        %v5544 = vcombine.low %v5536, %v5543
        %v5545 = vcombine.low %v4758, %v4760
        %v5546 = vcombine.low %v4762, %v4764
        %v5548 = vunpack.c.l.s4 1983009808
        %v5549 = vunpack.c.0.s8 %v5548
        %v5550 = vlaneseq
        %v5551 = vshrl.u32 %v5550, 7
        %v5552 = vsub.s32 %v5549, %v5551
        %v5553 = vrot.slane %v5545, %v5552
        %v5555 = vunpack.c.l.s4 1983009808
        %v5556 = vunpack.c.0.s8 %v5555
        %v5557 = vlaneseq
        %v5558 = vshrl.u32 %v5557, 7
        %v5559 = vsub.s32 %v5556, %v5558
        %v5560 = vrot.slane %v5546, %v5559
        %v5561 = vcombine.low %v5553, %v5560
        %v5562 = vcombine.low %v4766, %v4768
        %v5563 = vcombine.low %v4770, %v4772
        %v5565 = vunpack.c.l.s4 1983009808
        %v5566 = vunpack.c.0.s8 %v5565
        %v5567 = vlaneseq
        %v5568 = vshrl.u32 %v5567, 7
        %v5569 = vsub.s32 %v5566, %v5568
        %v5570 = vrot.slane %v5562, %v5569
        %v5572 = vunpack.c.l.s4 1983009808
        %v5573 = vunpack.c.0.s8 %v5572
        %v5574 = vlaneseq
        %v5575 = vshrl.u32 %v5574, 7
        %v5576 = vsub.s32 %v5573, %v5575
        %v5577 = vrot.slane %v5563, %v5576
        %v5578 = vcombine.low %v5570, %v5577
        %v5579 = vcombine.low %v4774, %v4776
        %v5580 = vcombine.low %v4778, %v4780
        %v5582 = vunpack.c.l.s4 1983009808
        %v5583 = vunpack.c.0.s8 %v5582
        %v5584 = vlaneseq
        %v5585 = vshrl.u32 %v5584, 7
        %v5586 = vsub.s32 %v5583, %v5585
        %v5587 = vrot.slane %v5579, %v5586
        %v5589 = vunpack.c.l.s4 1983009808
        %v5590 = vunpack.c.0.s8 %v5589
        %v5591 = vlaneseq
        %v5592 = vshrl.u32 %v5591, 7
        %v5593 = vsub.s32 %v5590, %v5592
        %v5594 = vrot.slane %v5580, %v5593
        %v5595 = vcombine.low %v5587, %v5594
        %v5596 = vcombine.low %v4782, %v4784
        %v5597 = vcombine.low %v4786, %v4788
        %v5599 = vunpack.c.l.s4 1983009808
        %v5600 = vunpack.c.0.s8 %v5599
        %v5601 = vlaneseq
        %v5602 = vshrl.u32 %v5601, 7
        %v5603 = vsub.s32 %v5600, %v5602
        %v5604 = vrot.slane %v5596, %v5603
        %v5606 = vunpack.c.l.s4 1983009808
        %v5607 = vunpack.c.0.s8 %v5606
        %v5608 = vlaneseq
        %v5609 = vshrl.u32 %v5608, 7
        %v5610 = vsub.s32 %v5607, %v5609
        %v5611 = vrot.slane %v5597, %v5610
        %v5612 = vcombine.low %v5604, %v5611
        %v5613 = vcombine.low %v4229, %v4230
        %v5614 = vcombine.low %v4231, %v4232
        %v5616 = vunpack.c.l.s4 1983009808
        %v5617 = vunpack.c.0.s8 %v5616
        %v5618 = vlaneseq
        %v5619 = vshrl.u32 %v5618, 7
        %v5620 = vsub.s32 %v5617, %v5619
        %v5621 = vrot.slane %v5613, %v5620
        %v5623 = vunpack.c.l.s4 1983009808
        %v5624 = vunpack.c.0.s8 %v5623
        %v5625 = vlaneseq
        %v5626 = vshrl.u32 %v5625, 7
        %v5627 = vsub.s32 %v5624, %v5626
        %v5628 = vrot.slane %v5614, %v5627
        %v5629 = vcombine.low %v5621, %v5628
        %v5630 = vcombine.low %v4233, %v4234
        %v5631 = vcombine.low %v4235, %v4236
        %v5633 = vunpack.c.l.s4 1983009808
        %v5634 = vunpack.c.0.s8 %v5633
        %v5635 = vlaneseq
        %v5636 = vshrl.u32 %v5635, 7
        %v5637 = vsub.s32 %v5634, %v5636
        %v5638 = vrot.slane %v5630, %v5637
        %v5640 = vunpack.c.l.s4 1983009808
        %v5641 = vunpack.c.0.s8 %v5640
        %v5642 = vlaneseq
        %v5643 = vshrl.u32 %v5642, 7
        %v5644 = vsub.s32 %v5641, %v5643
        %v5645 = vrot.slane %v5631, %v5644
        %v5646 = vcombine.low %v5638, %v5645
        %v5647 = vcombine.low %v4237, %v4238
        %v5648 = vcombine.low %v4239, %v4240
        %v5650 = vunpack.c.l.s4 1983009808
        %v5651 = vunpack.c.0.s8 %v5650
        %v5652 = vlaneseq
        %v5653 = vshrl.u32 %v5652, 7
        %v5654 = vsub.s32 %v5651, %v5653
        %v5655 = vrot.slane %v5647, %v5654
        %v5657 = vunpack.c.l.s4 1983009808
        %v5658 = vunpack.c.0.s8 %v5657
        %v5659 = vlaneseq
        %v5660 = vshrl.u32 %v5659, 7
        %v5661 = vsub.s32 %v5658, %v5660
        %v5662 = vrot.slane %v5648, %v5661
        %v5663 = vcombine.low %v5655, %v5662
        %v5664 = vcombine.low %v4241, %v4242
        %v5665 = vcombine.low %v4243, %v4244
        %v5667 = vunpack.c.l.s4 1983009808
        %v5668 = vunpack.c.0.s8 %v5667
        %v5669 = vlaneseq
        %v5670 = vshrl.u32 %v5669, 7
        %v5671 = vsub.s32 %v5668, %v5670
        %v5672 = vrot.slane %v5664, %v5671
        %v5674 = vunpack.c.l.s4 1983009808
        %v5675 = vunpack.c.0.s8 %v5674
        %v5676 = vlaneseq
        %v5677 = vshrl.u32 %v5676, 7
        %v5678 = vsub.s32 %v5675, %v5677
        %v5679 = vrot.slane %v5665, %v5678
        %v5680 = vcombine.low %v5672, %v5679
        %v5681 = vcombine.low %v4790, %v4792
        %v5682 = vcombine.low %v4794, %v4796
        %v5684 = vunpack.c.l.s4 1983009808
        %v5685 = vunpack.c.0.s8 %v5684
        %v5686 = vlaneseq
        %v5687 = vshrl.u32 %v5686, 7
        %v5688 = vsub.s32 %v5685, %v5687
        %v5689 = vrot.slane %v5681, %v5688
        %v5691 = vunpack.c.l.s4 1983009808
        %v5692 = vunpack.c.0.s8 %v5691
        %v5693 = vlaneseq
        %v5694 = vshrl.u32 %v5693, 7
        %v5695 = vsub.s32 %v5692, %v5694
        %v5696 = vrot.slane %v5682, %v5695
        %v5697 = vcombine.low %v5689, %v5696
        %v5698 = vcombine.low %v4798, %v4800
        %v5699 = vcombine.low %v4802, %v4804
        %v5701 = vunpack.c.l.s4 1983009808
        %v5702 = vunpack.c.0.s8 %v5701
        %v5703 = vlaneseq
        %v5704 = vshrl.u32 %v5703, 7
        %v5705 = vsub.s32 %v5702, %v5704
        %v5706 = vrot.slane %v5698, %v5705
        %v5708 = vunpack.c.l.s4 1983009808
        %v5709 = vunpack.c.0.s8 %v5708
        %v5710 = vlaneseq
        %v5711 = vshrl.u32 %v5710, 7
        %v5712 = vsub.s32 %v5709, %v5711
        %v5713 = vrot.slane %v5699, %v5712
        %v5714 = vcombine.low %v5706, %v5713
        %v5715 = vcombine.low %v4806, %v4808
        %v5716 = vcombine.low %v4810, %v4812
        %v5718 = vunpack.c.l.s4 1983009808
        %v5719 = vunpack.c.0.s8 %v5718
        %v5720 = vlaneseq
        %v5721 = vshrl.u32 %v5720, 7
        %v5722 = vsub.s32 %v5719, %v5721
        %v5723 = vrot.slane %v5715, %v5722
        %v5725 = vunpack.c.l.s4 1983009808
        %v5726 = vunpack.c.0.s8 %v5725
        %v5727 = vlaneseq
        %v5728 = vshrl.u32 %v5727, 7
        %v5729 = vsub.s32 %v5726, %v5728
        %v5730 = vrot.slane %v5716, %v5729
        %v5731 = vcombine.low %v5723, %v5730
        %v5732 = vcombine.low %v4814, %v4816
        %v5733 = vcombine.low %v4818, %v4820
        %v5735 = vunpack.c.l.s4 1983009808
        %v5736 = vunpack.c.0.s8 %v5735
        %v5737 = vlaneseq
        %v5738 = vshrl.u32 %v5737, 7
        %v5739 = vsub.s32 %v5736, %v5738
        %v5740 = vrot.slane %v5732, %v5739
        %v5742 = vunpack.c.l.s4 1983009808
        %v5743 = vunpack.c.0.s8 %v5742
        %v5744 = vlaneseq
        %v5745 = vshrl.u32 %v5744, 7
        %v5746 = vsub.s32 %v5743, %v5745
        %v5747 = vrot.slane %v5733, %v5746
        %v5748 = vcombine.low %v5740, %v5747
        %v5749 = vcombine.low %v4245, %v4246
        %v5750 = vcombine.low %v4247, %v4248
        %v5752 = vunpack.c.l.s4 1983009808
        %v5753 = vunpack.c.0.s8 %v5752
        %v5754 = vlaneseq
        %v5755 = vshrl.u32 %v5754, 7
        %v5756 = vsub.s32 %v5753, %v5755
        %v5757 = vrot.slane %v5749, %v5756
        %v5759 = vunpack.c.l.s4 1983009808
        %v5760 = vunpack.c.0.s8 %v5759
        %v5761 = vlaneseq
        %v5762 = vshrl.u32 %v5761, 7
        %v5763 = vsub.s32 %v5760, %v5762
        %v5764 = vrot.slane %v5750, %v5763
        %v5765 = vcombine.low %v5757, %v5764
        %v5766 = vcombine.low %v4249, %v4250
        %v5767 = vcombine.low %v4251, %v4252
        %v5769 = vunpack.c.l.s4 1983009808
        %v5770 = vunpack.c.0.s8 %v5769
        %v5771 = vlaneseq
        %v5772 = vshrl.u32 %v5771, 7
        %v5773 = vsub.s32 %v5770, %v5772
        %v5774 = vrot.slane %v5766, %v5773
        %v5776 = vunpack.c.l.s4 1983009808
        %v5777 = vunpack.c.0.s8 %v5776
        %v5778 = vlaneseq
        %v5779 = vshrl.u32 %v5778, 7
        %v5780 = vsub.s32 %v5777, %v5779
        %v5781 = vrot.slane %v5767, %v5780
        %v5782 = vcombine.low %v5774, %v5781
        %v5783 = vcombine.low %v4253, %v4254
        %v5784 = vcombine.low %v4255, %v4256
        %v5786 = vunpack.c.l.s4 1983009808
        %v5787 = vunpack.c.0.s8 %v5786
        %v5788 = vlaneseq
        %v5789 = vshrl.u32 %v5788, 7
        %v5790 = vsub.s32 %v5787, %v5789
        %v5791 = vrot.slane %v5783, %v5790
        %v5793 = vunpack.c.l.s4 1983009808
        %v5794 = vunpack.c.0.s8 %v5793
        %v5795 = vlaneseq
        %v5796 = vshrl.u32 %v5795, 7
        %v5797 = vsub.s32 %v5794, %v5796
        %v5798 = vrot.slane %v5784, %v5797
        %v5799 = vcombine.low %v5791, %v5798
        %v5800 = vcombine.low %v4257, %v4258
        %v5801 = vcombine.low %v4259, %v4260
        %v5803 = vunpack.c.l.s4 1983009808
        %v5804 = vunpack.c.0.s8 %v5803
        %v5805 = vlaneseq
        %v5806 = vshrl.u32 %v5805, 7
        %v5807 = vsub.s32 %v5804, %v5806
        %v5808 = vrot.slane %v5800, %v5807
        %v5810 = vunpack.c.l.s4 1983009808
        %v5811 = vunpack.c.0.s8 %v5810
        %v5812 = vlaneseq
        %v5813 = vshrl.u32 %v5812, 7
        %v5814 = vsub.s32 %v5811, %v5813
        %v5815 = vrot.slane %v5801, %v5814
        %v5816 = vcombine.low %v5808, %v5815
        %v5817 = vcombine.low %v4822, %v4824
        %v5818 = vcombine.low %v4826, %v4828
        %v5820 = vunpack.c.l.s4 1983009808
        %v5821 = vunpack.c.0.s8 %v5820
        %v5822 = vlaneseq
        %v5823 = vshrl.u32 %v5822, 7
        %v5824 = vsub.s32 %v5821, %v5823
        %v5825 = vrot.slane %v5817, %v5824
        %v5827 = vunpack.c.l.s4 1983009808
        %v5828 = vunpack.c.0.s8 %v5827
        %v5829 = vlaneseq
        %v5830 = vshrl.u32 %v5829, 7
        %v5831 = vsub.s32 %v5828, %v5830
        %v5832 = vrot.slane %v5818, %v5831
        %v5833 = vcombine.low %v5825, %v5832
        %v5834 = vcombine.low %v4830, %v4832
        %v5835 = vcombine.low %v4834, %v4836
        %v5837 = vunpack.c.l.s4 1983009808
        %v5838 = vunpack.c.0.s8 %v5837
        %v5839 = vlaneseq
        %v5840 = vshrl.u32 %v5839, 7
        %v5841 = vsub.s32 %v5838, %v5840
        %v5842 = vrot.slane %v5834, %v5841
        %v5844 = vunpack.c.l.s4 1983009808
        %v5845 = vunpack.c.0.s8 %v5844
        %v5846 = vlaneseq
        %v5847 = vshrl.u32 %v5846, 7
        %v5848 = vsub.s32 %v5845, %v5847
        %v5849 = vrot.slane %v5835, %v5848
        %v5850 = vcombine.low %v5842, %v5849
        %v5851 = vcombine.low %v4838, %v4840
        %v5852 = vcombine.low %v4842, %v4844
        %v5854 = vunpack.c.l.s4 1983009808
        %v5855 = vunpack.c.0.s8 %v5854
        %v5856 = vlaneseq
        %v5857 = vshrl.u32 %v5856, 7
        %v5858 = vsub.s32 %v5855, %v5857
        %v5859 = vrot.slane %v5851, %v5858
        %v5861 = vunpack.c.l.s4 1983009808
        %v5862 = vunpack.c.0.s8 %v5861
        %v5863 = vlaneseq
        %v5864 = vshrl.u32 %v5863, 7
        %v5865 = vsub.s32 %v5862, %v5864
        %v5866 = vrot.slane %v5852, %v5865
        %v5867 = vcombine.low %v5859, %v5866
        %v5868 = vcombine.low %v4846, %v4848
        %v5869 = vcombine.low %v4850, %v4852
        %v5871 = vunpack.c.l.s4 1983009808
        %v5872 = vunpack.c.0.s8 %v5871
        %v5873 = vlaneseq
        %v5874 = vshrl.u32 %v5873, 7
        %v5875 = vsub.s32 %v5872, %v5874
        %v5876 = vrot.slane %v5868, %v5875
        %v5878 = vunpack.c.l.s4 1983009808
        %v5879 = vunpack.c.0.s8 %v5878
        %v5880 = vlaneseq
        %v5881 = vshrl.u32 %v5880, 7
        %v5882 = vsub.s32 %v5879, %v5881
        %v5883 = vrot.slane %v5869, %v5882
        %v5884 = vcombine.low %v5876, %v5883
        %v5885 = vcombine.low %v4261, %v4262
        %v5886 = vcombine.low %v4263, %v4264
        %v5888 = vunpack.c.l.s4 1983009808
        %v5889 = vunpack.c.0.s8 %v5888
        %v5890 = vlaneseq
        %v5891 = vshrl.u32 %v5890, 7
        %v5892 = vsub.s32 %v5889, %v5891
        %v5893 = vrot.slane %v5885, %v5892
        %v5895 = vunpack.c.l.s4 1983009808
        %v5896 = vunpack.c.0.s8 %v5895
        %v5897 = vlaneseq
        %v5898 = vshrl.u32 %v5897, 7
        %v5899 = vsub.s32 %v5896, %v5898
        %v5900 = vrot.slane %v5886, %v5899
        %v5901 = vcombine.low %v5893, %v5900
        %v5902 = vcombine.low %v4265, %v4266
        %v5903 = vcombine.low %v4267, %v4268
        %v5905 = vunpack.c.l.s4 1983009808
        %v5906 = vunpack.c.0.s8 %v5905
        %v5907 = vlaneseq
        %v5908 = vshrl.u32 %v5907, 7
        %v5909 = vsub.s32 %v5906, %v5908
        %v5910 = vrot.slane %v5902, %v5909
        %v5912 = vunpack.c.l.s4 1983009808
        %v5913 = vunpack.c.0.s8 %v5912
        %v5914 = vlaneseq
        %v5915 = vshrl.u32 %v5914, 7
        %v5916 = vsub.s32 %v5913, %v5915
        %v5917 = vrot.slane %v5903, %v5916
        %v5918 = vcombine.low %v5910, %v5917
        %v5919 = vcombine.low %v4269, %v4270
        %v5920 = vcombine.low %v4271, %v4272
        %v5922 = vunpack.c.l.s4 1983009808
        %v5923 = vunpack.c.0.s8 %v5922
        %v5924 = vlaneseq
        %v5925 = vshrl.u32 %v5924, 7
        %v5926 = vsub.s32 %v5923, %v5925
        %v5927 = vrot.slane %v5919, %v5926
        %v5929 = vunpack.c.l.s4 1983009808
        %v5930 = vunpack.c.0.s8 %v5929
        %v5931 = vlaneseq
        %v5932 = vshrl.u32 %v5931, 7
        %v5933 = vsub.s32 %v5930, %v5932
        %v5934 = vrot.slane %v5920, %v5933
        %v5935 = vcombine.low %v5927, %v5934
        %v5936 = vcombine.low %v4273, %v4274
        %v5937 = vcombine.low %v4275, %v4276
        %v5939 = vunpack.c.l.s4 1983009808
        %v5940 = vunpack.c.0.s8 %v5939
        %v5941 = vlaneseq
        %v5942 = vshrl.u32 %v5941, 7
        %v5943 = vsub.s32 %v5940, %v5942
        %v5944 = vrot.slane %v5936, %v5943
        %v5946 = vunpack.c.l.s4 1983009808
        %v5947 = vunpack.c.0.s8 %v5946
        %v5948 = vlaneseq
        %v5949 = vshrl.u32 %v5948, 7
        %v5950 = vsub.s32 %v5947, %v5949
        %v5951 = vrot.slane %v5937, %v5950
        %v5952 = vcombine.low %v5944, %v5951
        %v5953 = vcombine.low %v4854, %v4856
        %v5954 = vcombine.low %v4858, %v4860
        %v5956 = vunpack.c.l.s4 1983009808
        %v5957 = vunpack.c.0.s8 %v5956
        %v5958 = vlaneseq
        %v5959 = vshrl.u32 %v5958, 7
        %v5960 = vsub.s32 %v5957, %v5959
        %v5961 = vrot.slane %v5953, %v5960
        %v5963 = vunpack.c.l.s4 1983009808
        %v5964 = vunpack.c.0.s8 %v5963
        %v5965 = vlaneseq
        %v5966 = vshrl.u32 %v5965, 7
        %v5967 = vsub.s32 %v5964, %v5966
        %v5968 = vrot.slane %v5954, %v5967
        %v5969 = vcombine.low %v5961, %v5968
        %v5970 = vcombine.low %v4862, %v4864
        %v5971 = vcombine.low %v4866, %v4868
        %v5973 = vunpack.c.l.s4 1983009808
        %v5974 = vunpack.c.0.s8 %v5973
        %v5975 = vlaneseq
        %v5976 = vshrl.u32 %v5975, 7
        %v5977 = vsub.s32 %v5974, %v5976
        %v5978 = vrot.slane %v5970, %v5977
        %v5980 = vunpack.c.l.s4 1983009808
        %v5981 = vunpack.c.0.s8 %v5980
        %v5982 = vlaneseq
        %v5983 = vshrl.u32 %v5982, 7
        %v5984 = vsub.s32 %v5981, %v5983
        %v5985 = vrot.slane %v5971, %v5984
        %v5986 = vcombine.low %v5978, %v5985
        %v5987 = vcombine.low %v4870, %v4872
        %v5988 = vcombine.low %v4874, %v4876
        %v5990 = vunpack.c.l.s4 1983009808
        %v5991 = vunpack.c.0.s8 %v5990
        %v5992 = vlaneseq
        %v5993 = vshrl.u32 %v5992, 7
        %v5994 = vsub.s32 %v5991, %v5993
        %v5995 = vrot.slane %v5987, %v5994
        %v5997 = vunpack.c.l.s4 1983009808
        %v5998 = vunpack.c.0.s8 %v5997
        %v5999 = vlaneseq
        %v6000 = vshrl.u32 %v5999, 7
        %v6001 = vsub.s32 %v5998, %v6000
        %v6002 = vrot.slane %v5988, %v6001
        %v6003 = vcombine.low %v5995, %v6002
        %v6004 = vcombine.low %v4878, %v4880
        %v6005 = vcombine.low %v4882, %v4884
        %v6007 = vunpack.c.l.s4 1983009808
        %v6008 = vunpack.c.0.s8 %v6007
        %v6009 = vlaneseq
        %v6010 = vshrl.u32 %v6009, 7
        %v6011 = vsub.s32 %v6008, %v6010
        %v6012 = vrot.slane %v6004, %v6011
        %v6014 = vunpack.c.l.s4 1983009808
        %v6015 = vunpack.c.0.s8 %v6014
        %v6016 = vlaneseq
        %v6017 = vshrl.u32 %v6016, 7
        %v6018 = vsub.s32 %v6015, %v6017
        %v6019 = vrot.slane %v6005, %v6018
        %v6020 = vcombine.low %v6012, %v6019
        %v6021 = vcombine.low %v4277, %v4278
        %v6022 = vcombine.low %v4279, %v4280
        %v6024 = vunpack.c.l.s4 1983009808
        %v6025 = vunpack.c.0.s8 %v6024
        %v6026 = vlaneseq
        %v6027 = vshrl.u32 %v6026, 7
        %v6028 = vsub.s32 %v6025, %v6027
        %v6029 = vrot.slane %v6021, %v6028
        %v6031 = vunpack.c.l.s4 1983009808
        %v6032 = vunpack.c.0.s8 %v6031
        %v6033 = vlaneseq
        %v6034 = vshrl.u32 %v6033, 7
        %v6035 = vsub.s32 %v6032, %v6034
        %v6036 = vrot.slane %v6022, %v6035
        %v6037 = vcombine.low %v6029, %v6036
        %v6038 = vcombine.low %v4281, %v4282
        %v6039 = vcombine.low %v4283, %v4284
        %v6041 = vunpack.c.l.s4 1983009808
        %v6042 = vunpack.c.0.s8 %v6041
        %v6043 = vlaneseq
        %v6044 = vshrl.u32 %v6043, 7
        %v6045 = vsub.s32 %v6042, %v6044
        %v6046 = vrot.slane %v6038, %v6045
        %v6048 = vunpack.c.l.s4 1983009808
        %v6049 = vunpack.c.0.s8 %v6048
        %v6050 = vlaneseq
        %v6051 = vshrl.u32 %v6050, 7
        %v6052 = vsub.s32 %v6049, %v6051
        %v6053 = vrot.slane %v6039, %v6052
        %v6054 = vcombine.low %v6046, %v6053
        %v6055 = vcombine.low %v4285, %v4286
        %v6056 = vcombine.low %v4287, %v4288
        %v6058 = vunpack.c.l.s4 1983009808
        %v6059 = vunpack.c.0.s8 %v6058
        %v6060 = vlaneseq
        %v6061 = vshrl.u32 %v6060, 7
        %v6062 = vsub.s32 %v6059, %v6061
        %v6063 = vrot.slane %v6055, %v6062
        %v6065 = vunpack.c.l.s4 1983009808
        %v6066 = vunpack.c.0.s8 %v6065
        %v6067 = vlaneseq
        %v6068 = vshrl.u32 %v6067, 7
        %v6069 = vsub.s32 %v6066, %v6068
        %v6070 = vrot.slane %v6056, %v6069
        %v6071 = vcombine.low %v6063, %v6070
        %v6072 = vcombine.low %v4289, %v4290
        %v6073 = vcombine.low %v4291, %v4292
        %v6075 = vunpack.c.l.s4 1983009808
        %v6076 = vunpack.c.0.s8 %v6075
        %v6077 = vlaneseq
        %v6078 = vshrl.u32 %v6077, 7
        %v6079 = vsub.s32 %v6076, %v6078
        %v6080 = vrot.slane %v6072, %v6079
        %v6082 = vunpack.c.l.s4 1983009808
        %v6083 = vunpack.c.0.s8 %v6082
        %v6084 = vlaneseq
        %v6085 = vshrl.u32 %v6084, 7
        %v6086 = vsub.s32 %v6083, %v6085
        %v6087 = vrot.slane %v6073, %v6086
        %v6088 = vcombine.low %v6080, %v6087
        %v6089 = vcombine.low %v4886, %v4888
        %v6090 = vcombine.low %v4890, %v4892
        %v6092 = vunpack.c.l.s4 1983009808
        %v6093 = vunpack.c.0.s8 %v6092
        %v6094 = vlaneseq
        %v6095 = vshrl.u32 %v6094, 7
        %v6096 = vsub.s32 %v6093, %v6095
        %v6097 = vrot.slane %v6089, %v6096
        %v6099 = vunpack.c.l.s4 1983009808
        %v6100 = vunpack.c.0.s8 %v6099
        %v6101 = vlaneseq
        %v6102 = vshrl.u32 %v6101, 7
        %v6103 = vsub.s32 %v6100, %v6102
        %v6104 = vrot.slane %v6090, %v6103
        %v6105 = vcombine.low %v6097, %v6104
        %v6106 = vcombine.low %v4894, %v4896
        %v6107 = vcombine.low %v4898, %v4900
        %v6109 = vunpack.c.l.s4 1983009808
        %v6110 = vunpack.c.0.s8 %v6109
        %v6111 = vlaneseq
        %v6112 = vshrl.u32 %v6111, 7
        %v6113 = vsub.s32 %v6110, %v6112
        %v6114 = vrot.slane %v6106, %v6113
        %v6116 = vunpack.c.l.s4 1983009808
        %v6117 = vunpack.c.0.s8 %v6116
        %v6118 = vlaneseq
        %v6119 = vshrl.u32 %v6118, 7
        %v6120 = vsub.s32 %v6117, %v6119
        %v6121 = vrot.slane %v6107, %v6120
        %v6122 = vcombine.low %v6114, %v6121
        %v6123 = vcombine.low %v4902, %v4904
        %v6124 = vcombine.low %v4906, %v4908
        %v6126 = vunpack.c.l.s4 1983009808
        %v6127 = vunpack.c.0.s8 %v6126
        %v6128 = vlaneseq
        %v6129 = vshrl.u32 %v6128, 7
        %v6130 = vsub.s32 %v6127, %v6129
        %v6131 = vrot.slane %v6123, %v6130
        %v6133 = vunpack.c.l.s4 1983009808
        %v6134 = vunpack.c.0.s8 %v6133
        %v6135 = vlaneseq
        %v6136 = vshrl.u32 %v6135, 7
        %v6137 = vsub.s32 %v6134, %v6136
        %v6138 = vrot.slane %v6124, %v6137
        %v6139 = vcombine.low %v6131, %v6138
        %v6140 = vcombine.low %v4910, %v4912
        %v6141 = vcombine.low %v4914, %v4916
        %v6143 = vunpack.c.l.s4 1983009808
        %v6144 = vunpack.c.0.s8 %v6143
        %v6145 = vlaneseq
        %v6146 = vshrl.u32 %v6145, 7
        %v6147 = vsub.s32 %v6144, %v6146
        %v6148 = vrot.slane %v6140, %v6147
        %v6150 = vunpack.c.l.s4 1983009808
        %v6151 = vunpack.c.0.s8 %v6150
        %v6152 = vlaneseq
        %v6153 = vshrl.u32 %v6152, 7
        %v6154 = vsub.s32 %v6151, %v6153
        %v6155 = vrot.slane %v6141, %v6154
        %v6156 = vcombine.low %v6148, %v6155
        %v6157 = vcombine.low %v4293, %v4294
        %v6158 = vcombine.low %v4295, %v4296
        %v6160 = vunpack.c.l.s4 1983009808
        %v6161 = vunpack.c.0.s8 %v6160
        %v6162 = vlaneseq
        %v6163 = vshrl.u32 %v6162, 7
        %v6164 = vsub.s32 %v6161, %v6163
        %v6165 = vrot.slane %v6157, %v6164
        %v6167 = vunpack.c.l.s4 1983009808
        %v6168 = vunpack.c.0.s8 %v6167
        %v6169 = vlaneseq
        %v6170 = vshrl.u32 %v6169, 7
        %v6171 = vsub.s32 %v6168, %v6170
        %v6172 = vrot.slane %v6158, %v6171
        %v6173 = vcombine.low %v6165, %v6172
        %v6174 = vcombine.low %v4297, %v4298
        %v6175 = vcombine.low %v4299, %v4300
        %v6177 = vunpack.c.l.s4 1983009808
        %v6178 = vunpack.c.0.s8 %v6177
        %v6179 = vlaneseq
        %v6180 = vshrl.u32 %v6179, 7
        %v6181 = vsub.s32 %v6178, %v6180
        %v6182 = vrot.slane %v6174, %v6181
        %v6184 = vunpack.c.l.s4 1983009808
        %v6185 = vunpack.c.0.s8 %v6184
        %v6186 = vlaneseq
        %v6187 = vshrl.u32 %v6186, 7
        %v6188 = vsub.s32 %v6185, %v6187
        %v6189 = vrot.slane %v6175, %v6188
        %v6190 = vcombine.low %v6182, %v6189
        %v6191 = vcombine.low %v4301, %v4302
        %v6192 = vcombine.low %v4303, %v4304
        %v6194 = vunpack.c.l.s4 1983009808
        %v6195 = vunpack.c.0.s8 %v6194
        %v6196 = vlaneseq
        %v6197 = vshrl.u32 %v6196, 7
        %v6198 = vsub.s32 %v6195, %v6197
        %v6199 = vrot.slane %v6191, %v6198
        %v6201 = vunpack.c.l.s4 1983009808
        %v6202 = vunpack.c.0.s8 %v6201
        %v6203 = vlaneseq
        %v6204 = vshrl.u32 %v6203, 7
        %v6205 = vsub.s32 %v6202, %v6204
        %v6206 = vrot.slane %v6192, %v6205
        %v6207 = vcombine.low %v6199, %v6206
        %v6208 = vcombine.low %v4305, %v4306
        %v6209 = vcombine.low %v4307, %v4308
        %v6211 = vunpack.c.l.s4 1983009808
        %v6212 = vunpack.c.0.s8 %v6211
        %v6213 = vlaneseq
        %v6214 = vshrl.u32 %v6213, 7
        %v6215 = vsub.s32 %v6212, %v6214
        %v6216 = vrot.slane %v6208, %v6215
        %v6218 = vunpack.c.l.s4 1983009808
        %v6219 = vunpack.c.0.s8 %v6218
        %v6220 = vlaneseq
        %v6221 = vshrl.u32 %v6220, 7
        %v6222 = vsub.s32 %v6219, %v6221
        %v6223 = vrot.slane %v6209, %v6222
        %v6224 = vcombine.low %v6216, %v6223
        %v6225 = vcombine.low %v4918, %v4920
        %v6226 = vcombine.low %v4922, %v4924
        %v6228 = vunpack.c.l.s4 1983009808
        %v6229 = vunpack.c.0.s8 %v6228
        %v6230 = vlaneseq
        %v6231 = vshrl.u32 %v6230, 7
        %v6232 = vsub.s32 %v6229, %v6231
        %v6233 = vrot.slane %v6225, %v6232
        %v6235 = vunpack.c.l.s4 1983009808
        %v6236 = vunpack.c.0.s8 %v6235
        %v6237 = vlaneseq
        %v6238 = vshrl.u32 %v6237, 7
        %v6239 = vsub.s32 %v6236, %v6238
        %v6240 = vrot.slane %v6226, %v6239
        %v6241 = vcombine.low %v6233, %v6240
        %v6242 = vcombine.low %v4926, %v4928
        %v6243 = vcombine.low %v4930, %v4932
        %v6245 = vunpack.c.l.s4 1983009808
        %v6246 = vunpack.c.0.s8 %v6245
        %v6247 = vlaneseq
        %v6248 = vshrl.u32 %v6247, 7
        %v6249 = vsub.s32 %v6246, %v6248
        %v6250 = vrot.slane %v6242, %v6249
        %v6252 = vunpack.c.l.s4 1983009808
        %v6253 = vunpack.c.0.s8 %v6252
        %v6254 = vlaneseq
        %v6255 = vshrl.u32 %v6254, 7
        %v6256 = vsub.s32 %v6253, %v6255
        %v6257 = vrot.slane %v6243, %v6256
        %v6258 = vcombine.low %v6250, %v6257
        %v6259 = vcombine.low %v4934, %v4936
        %v6260 = vcombine.low %v4938, %v4940
        %v6262 = vunpack.c.l.s4 1983009808
        %v6263 = vunpack.c.0.s8 %v6262
        %v6264 = vlaneseq
        %v6265 = vshrl.u32 %v6264, 7
        %v6266 = vsub.s32 %v6263, %v6265
        %v6267 = vrot.slane %v6259, %v6266
        %v6269 = vunpack.c.l.s4 1983009808
        %v6270 = vunpack.c.0.s8 %v6269
        %v6271 = vlaneseq
        %v6272 = vshrl.u32 %v6271, 7
        %v6273 = vsub.s32 %v6270, %v6272
        %v6274 = vrot.slane %v6260, %v6273
        %v6275 = vcombine.low %v6267, %v6274
        %v6276 = vcombine.low %v4942, %v4944
        %v6277 = vcombine.low %v4946, %v4948
        %v6279 = vunpack.c.l.s4 1983009808
        %v6280 = vunpack.c.0.s8 %v6279
        %v6281 = vlaneseq
        %v6282 = vshrl.u32 %v6281, 7
        %v6283 = vsub.s32 %v6280, %v6282
        %v6284 = vrot.slane %v6276, %v6283
        %v6286 = vunpack.c.l.s4 1983009808
        %v6287 = vunpack.c.0.s8 %v6286
        %v6288 = vlaneseq
        %v6289 = vshrl.u32 %v6288, 7
        %v6290 = vsub.s32 %v6287, %v6289
        %v6291 = vrot.slane %v6277, %v6290
        %v6292 = vcombine.low %v6284, %v6291
        %v6293 = vcombine.low %v4309, %v4310
        %v6294 = vcombine.low %v4311, %v4312
        %v6296 = vunpack.c.l.s4 1983009808
        %v6297 = vunpack.c.0.s8 %v6296
        %v6298 = vlaneseq
        %v6299 = vshrl.u32 %v6298, 7
        %v6300 = vsub.s32 %v6297, %v6299
        %v6301 = vrot.slane %v6293, %v6300
        %v6303 = vunpack.c.l.s4 1983009808
        %v6304 = vunpack.c.0.s8 %v6303
        %v6305 = vlaneseq
        %v6306 = vshrl.u32 %v6305, 7
        %v6307 = vsub.s32 %v6304, %v6306
        %v6308 = vrot.slane %v6294, %v6307
        %v6309 = vcombine.low %v6301, %v6308
        %v6310 = vcombine.low %v4313, %v4314
        %v6311 = vcombine.low %v4315, %v4316
        %v6313 = vunpack.c.l.s4 1983009808
        %v6314 = vunpack.c.0.s8 %v6313
        %v6315 = vlaneseq
        %v6316 = vshrl.u32 %v6315, 7
        %v6317 = vsub.s32 %v6314, %v6316
        %v6318 = vrot.slane %v6310, %v6317
        %v6320 = vunpack.c.l.s4 1983009808
        %v6321 = vunpack.c.0.s8 %v6320
        %v6322 = vlaneseq
        %v6323 = vshrl.u32 %v6322, 7
        %v6324 = vsub.s32 %v6321, %v6323
        %v6325 = vrot.slane %v6311, %v6324
        %v6326 = vcombine.low %v6318, %v6325
        %v6327 = vcombine.low %v4317, %v4318
        %v6328 = vcombine.low %v4319, %v4320
        %v6330 = vunpack.c.l.s4 1983009808
        %v6331 = vunpack.c.0.s8 %v6330
        %v6332 = vlaneseq
        %v6333 = vshrl.u32 %v6332, 7
        %v6334 = vsub.s32 %v6331, %v6333
        %v6335 = vrot.slane %v6327, %v6334
        %v6337 = vunpack.c.l.s4 1983009808
        %v6338 = vunpack.c.0.s8 %v6337
        %v6339 = vlaneseq
        %v6340 = vshrl.u32 %v6339, 7
        %v6341 = vsub.s32 %v6338, %v6340
        %v6342 = vrot.slane %v6328, %v6341
        %v6343 = vcombine.low %v6335, %v6342
        %v6344 = vcombine.low %v4321, %v4322
        %v6345 = vcombine.low %v4323, %v4324
        %v6347 = vunpack.c.l.s4 1983009808
        %v6348 = vunpack.c.0.s8 %v6347
        %v6349 = vlaneseq
        %v6350 = vshrl.u32 %v6349, 7
        %v6351 = vsub.s32 %v6348, %v6350
        %v6352 = vrot.slane %v6344, %v6351
        %v6354 = vunpack.c.l.s4 1983009808
        %v6355 = vunpack.c.0.s8 %v6354
        %v6356 = vlaneseq
        %v6357 = vshrl.u32 %v6356, 7
        %v6358 = vsub.s32 %v6355, %v6357
        %v6359 = vrot.slane %v6345, %v6358
        %v6360 = vcombine.low %v6352, %v6359
        %v6361 = vcombine.low %v4950, %v4952
        %v6362 = vcombine.low %v4954, %v4956
        %v6364 = vunpack.c.l.s4 1983009808
        %v6365 = vunpack.c.0.s8 %v6364
        %v6366 = vlaneseq
        %v6367 = vshrl.u32 %v6366, 7
        %v6368 = vsub.s32 %v6365, %v6367
        %v6369 = vrot.slane %v6361, %v6368
        %v6371 = vunpack.c.l.s4 1983009808
        %v6372 = vunpack.c.0.s8 %v6371
        %v6373 = vlaneseq
        %v6374 = vshrl.u32 %v6373, 7
        %v6375 = vsub.s32 %v6372, %v6374
        %v6376 = vrot.slane %v6362, %v6375
        %v6377 = vcombine.low %v6369, %v6376
        %v6378 = vcombine.low %v4958, %v4960
        %v6379 = vcombine.low %v4962, %v4964
        %v6381 = vunpack.c.l.s4 1983009808
        %v6382 = vunpack.c.0.s8 %v6381
        %v6383 = vlaneseq
        %v6384 = vshrl.u32 %v6383, 7
        %v6385 = vsub.s32 %v6382, %v6384
        %v6386 = vrot.slane %v6378, %v6385
        %v6388 = vunpack.c.l.s4 1983009808
        %v6389 = vunpack.c.0.s8 %v6388
        %v6390 = vlaneseq
        %v6391 = vshrl.u32 %v6390, 7
        %v6392 = vsub.s32 %v6389, %v6391
        %v6393 = vrot.slane %v6379, %v6392
        %v6394 = vcombine.low %v6386, %v6393
        %v6395 = vcombine.low %v4966, %v4968
        %v6396 = vcombine.low %v4970, %v4972
        %v6398 = vunpack.c.l.s4 1983009808
        %v6399 = vunpack.c.0.s8 %v6398
        %v6400 = vlaneseq
        %v6401 = vshrl.u32 %v6400, 7
        %v6402 = vsub.s32 %v6399, %v6401
        %v6403 = vrot.slane %v6395, %v6402
        %v6405 = vunpack.c.l.s4 1983009808
        %v6406 = vunpack.c.0.s8 %v6405
        %v6407 = vlaneseq
        %v6408 = vshrl.u32 %v6407, 7
        %v6409 = vsub.s32 %v6406, %v6408
        %v6410 = vrot.slane %v6396, %v6409
        %v6411 = vcombine.low %v6403, %v6410
        %v6412 = vcombine.low %v4974, %v4976
        %v6413 = vcombine.low %v4978, %v4980
        %v6415 = vunpack.c.l.s4 1983009808
        %v6416 = vunpack.c.0.s8 %v6415
        %v6417 = vlaneseq
        %v6418 = vshrl.u32 %v6417, 7
        %v6419 = vsub.s32 %v6416, %v6418
        %v6420 = vrot.slane %v6412, %v6419
        %v6422 = vunpack.c.l.s4 1983009808
        %v6423 = vunpack.c.0.s8 %v6422
        %v6424 = vlaneseq
        %v6425 = vshrl.u32 %v6424, 7
        %v6426 = vsub.s32 %v6423, %v6425
        %v6427 = vrot.slane %v6413, %v6426
        %v6428 = vcombine.low %v6420, %v6427
        %v6429 = vcombine.low %v4325, %v4326
        %v6430 = vcombine.low %v4327, %v4328
        %v6432 = vunpack.c.l.s4 1983009808
        %v6433 = vunpack.c.0.s8 %v6432
        %v6434 = vlaneseq
        %v6435 = vshrl.u32 %v6434, 7
        %v6436 = vsub.s32 %v6433, %v6435
        %v6437 = vrot.slane %v6429, %v6436
        %v6439 = vunpack.c.l.s4 1983009808
        %v6440 = vunpack.c.0.s8 %v6439
        %v6441 = vlaneseq
        %v6442 = vshrl.u32 %v6441, 7
        %v6443 = vsub.s32 %v6440, %v6442
        %v6444 = vrot.slane %v6430, %v6443
        %v6445 = vcombine.low %v6437, %v6444
        %v6446 = vcombine.low %v4329, %v4330
        %v6447 = vcombine.low %v4331, %v4332
        %v6449 = vunpack.c.l.s4 1983009808
        %v6450 = vunpack.c.0.s8 %v6449
        %v6451 = vlaneseq
        %v6452 = vshrl.u32 %v6451, 7
        %v6453 = vsub.s32 %v6450, %v6452
        %v6454 = vrot.slane %v6446, %v6453
        %v6456 = vunpack.c.l.s4 1983009808
        %v6457 = vunpack.c.0.s8 %v6456
        %v6458 = vlaneseq
        %v6459 = vshrl.u32 %v6458, 7
        %v6460 = vsub.s32 %v6457, %v6459
        %v6461 = vrot.slane %v6447, %v6460
        %v6462 = vcombine.low %v6454, %v6461
        %v6463 = vcombine.low %v4333, %v4334
        %v6464 = vcombine.low %v4335, %v4336
        %v6466 = vunpack.c.l.s4 1983009808
        %v6467 = vunpack.c.0.s8 %v6466
        %v6468 = vlaneseq
        %v6469 = vshrl.u32 %v6468, 7
        %v6470 = vsub.s32 %v6467, %v6469
        %v6471 = vrot.slane %v6463, %v6470
        %v6473 = vunpack.c.l.s4 1983009808
        %v6474 = vunpack.c.0.s8 %v6473
        %v6475 = vlaneseq
        %v6476 = vshrl.u32 %v6475, 7
        %v6477 = vsub.s32 %v6474, %v6476
        %v6478 = vrot.slane %v6464, %v6477
        %v6479 = vcombine.low %v6471, %v6478
        %v6480 = vcombine.low %v4337, %v4338
        %v6481 = vcombine.low %v4339, %v4340
        %v6483 = vunpack.c.l.s4 1983009808
        %v6484 = vunpack.c.0.s8 %v6483
        %v6485 = vlaneseq
        %v6486 = vshrl.u32 %v6485, 7
        %v6487 = vsub.s32 %v6484, %v6486
        %v6488 = vrot.slane %v6480, %v6487
        %v6490 = vunpack.c.l.s4 1983009808
        %v6491 = vunpack.c.0.s8 %v6490
        %v6492 = vlaneseq
        %v6493 = vshrl.u32 %v6492, 7
        %v6494 = vsub.s32 %v6491, %v6493
        %v6495 = vrot.slane %v6481, %v6494
        %v6496 = vcombine.low %v6488, %v6495
        %v6497 = vcombine.low %v4982, %v4984
        %v6498 = vcombine.low %v4986, %v4988
        %v6500 = vunpack.c.l.s4 1983009808
        %v6501 = vunpack.c.0.s8 %v6500
        %v6502 = vlaneseq
        %v6503 = vshrl.u32 %v6502, 7
        %v6504 = vsub.s32 %v6501, %v6503
        %v6505 = vrot.slane %v6497, %v6504
        %v6507 = vunpack.c.l.s4 1983009808
        %v6508 = vunpack.c.0.s8 %v6507
        %v6509 = vlaneseq
        %v6510 = vshrl.u32 %v6509, 7
        %v6511 = vsub.s32 %v6508, %v6510
        %v6512 = vrot.slane %v6498, %v6511
        %v6513 = vcombine.low %v6505, %v6512
        %v6514 = vcombine.low %v4990, %v4992
        %v6515 = vcombine.low %v4994, %v4996
        %v6517 = vunpack.c.l.s4 1983009808
        %v6518 = vunpack.c.0.s8 %v6517
        %v6519 = vlaneseq
        %v6520 = vshrl.u32 %v6519, 7
        %v6521 = vsub.s32 %v6518, %v6520
        %v6522 = vrot.slane %v6514, %v6521
        %v6524 = vunpack.c.l.s4 1983009808
        %v6525 = vunpack.c.0.s8 %v6524
        %v6526 = vlaneseq
        %v6527 = vshrl.u32 %v6526, 7
        %v6528 = vsub.s32 %v6525, %v6527
        %v6529 = vrot.slane %v6515, %v6528
        %v6530 = vcombine.low %v6522, %v6529
        %v6531 = vcombine.low %v4998, %v5000
        %v6532 = vcombine.low %v5002, %v5004
        %v6534 = vunpack.c.l.s4 1983009808
        %v6535 = vunpack.c.0.s8 %v6534
        %v6536 = vlaneseq
        %v6537 = vshrl.u32 %v6536, 7
        %v6538 = vsub.s32 %v6535, %v6537
        %v6539 = vrot.slane %v6531, %v6538
        %v6541 = vunpack.c.l.s4 1983009808
        %v6542 = vunpack.c.0.s8 %v6541
        %v6543 = vlaneseq
        %v6544 = vshrl.u32 %v6543, 7
        %v6545 = vsub.s32 %v6542, %v6544
        %v6546 = vrot.slane %v6532, %v6545
        %v6547 = vcombine.low %v6539, %v6546
        %v6548 = vcombine.low %v5006, %v5008
        %v6549 = vcombine.low %v5010, %v5012
        %v6551 = vunpack.c.l.s4 1983009808
        %v6552 = vunpack.c.0.s8 %v6551
        %v6553 = vlaneseq
        %v6554 = vshrl.u32 %v6553, 7
        %v6555 = vsub.s32 %v6552, %v6554
        %v6556 = vrot.slane %v6548, %v6555
        %v6558 = vunpack.c.l.s4 1983009808
        %v6559 = vunpack.c.0.s8 %v6558
        %v6560 = vlaneseq
        %v6561 = vshrl.u32 %v6560, 7
        %v6562 = vsub.s32 %v6559, %v6561
        %v6563 = vrot.slane %v6549, %v6562
        %v6564 = vcombine.low %v6556, %v6563
        %v6565 = vcombine.low %v4341, %v4342
        %v6566 = vcombine.low %v4343, %v4344
        %v6568 = vunpack.c.l.s4 1983009808
        %v6569 = vunpack.c.0.s8 %v6568
        %v6570 = vlaneseq
        %v6571 = vshrl.u32 %v6570, 7
        %v6572 = vsub.s32 %v6569, %v6571
        %v6573 = vrot.slane %v6565, %v6572
        %v6575 = vunpack.c.l.s4 1983009808
        %v6576 = vunpack.c.0.s8 %v6575
        %v6577 = vlaneseq
        %v6578 = vshrl.u32 %v6577, 7
        %v6579 = vsub.s32 %v6576, %v6578
        %v6580 = vrot.slane %v6566, %v6579
        %v6581 = vcombine.low %v6573, %v6580
        %v6582 = vcombine.low %v4345, %v4346
        %v6583 = vcombine.low %v4347, %v4348
        %v6585 = vunpack.c.l.s4 1983009808
        %v6586 = vunpack.c.0.s8 %v6585
        %v6587 = vlaneseq
        %v6588 = vshrl.u32 %v6587, 7
        %v6589 = vsub.s32 %v6586, %v6588
        %v6590 = vrot.slane %v6582, %v6589
        %v6592 = vunpack.c.l.s4 1983009808
        %v6593 = vunpack.c.0.s8 %v6592
        %v6594 = vlaneseq
        %v6595 = vshrl.u32 %v6594, 7
        %v6596 = vsub.s32 %v6593, %v6595
        %v6597 = vrot.slane %v6583, %v6596
        %v6598 = vcombine.low %v6590, %v6597
        %v6599 = vcombine.low %v4349, %v4350
        %v6600 = vcombine.low %v4351, %v4352
        %v6602 = vunpack.c.l.s4 1983009808
        %v6603 = vunpack.c.0.s8 %v6602
        %v6604 = vlaneseq
        %v6605 = vshrl.u32 %v6604, 7
        %v6606 = vsub.s32 %v6603, %v6605
        %v6607 = vrot.slane %v6599, %v6606
        %v6609 = vunpack.c.l.s4 1983009808
        %v6610 = vunpack.c.0.s8 %v6609
        %v6611 = vlaneseq
        %v6612 = vshrl.u32 %v6611, 7
        %v6613 = vsub.s32 %v6610, %v6612
        %v6614 = vrot.slane %v6600, %v6613
        %v6615 = vcombine.low %v6607, %v6614
        %v6616 = vcombine.low %v4353, %v4354
        %v6617 = vcombine.low %v4355, %v4356
        %v6619 = vunpack.c.l.s4 1983009808
        %v6620 = vunpack.c.0.s8 %v6619
        %v6621 = vlaneseq
        %v6622 = vshrl.u32 %v6621, 7
        %v6623 = vsub.s32 %v6620, %v6622
        %v6624 = vrot.slane %v6616, %v6623
        %v6626 = vunpack.c.l.s4 1983009808
        %v6627 = vunpack.c.0.s8 %v6626
        %v6628 = vlaneseq
        %v6629 = vshrl.u32 %v6628, 7
        %v6630 = vsub.s32 %v6627, %v6629
        %v6631 = vrot.slane %v6617, %v6630
        %v6632 = vcombine.low %v6624, %v6631
        %v6633 = vcombine.low %v5014, %v5016
        %v6634 = vcombine.low %v5018, %v5020
        %v6636 = vunpack.c.l.s4 1983009808
        %v6637 = vunpack.c.0.s8 %v6636
        %v6638 = vlaneseq
        %v6639 = vshrl.u32 %v6638, 7
        %v6640 = vsub.s32 %v6637, %v6639
        %v6641 = vrot.slane %v6633, %v6640
        %v6643 = vunpack.c.l.s4 1983009808
        %v6644 = vunpack.c.0.s8 %v6643
        %v6645 = vlaneseq
        %v6646 = vshrl.u32 %v6645, 7
        %v6647 = vsub.s32 %v6644, %v6646
        %v6648 = vrot.slane %v6634, %v6647
        %v6649 = vcombine.low %v6641, %v6648
        %v6650 = vcombine.low %v5022, %v5024
        %v6651 = vcombine.low %v5026, %v5028
        %v6653 = vunpack.c.l.s4 1983009808
        %v6654 = vunpack.c.0.s8 %v6653
        %v6655 = vlaneseq
        %v6656 = vshrl.u32 %v6655, 7
        %v6657 = vsub.s32 %v6654, %v6656
        %v6658 = vrot.slane %v6650, %v6657
        %v6660 = vunpack.c.l.s4 1983009808
        %v6661 = vunpack.c.0.s8 %v6660
        %v6662 = vlaneseq
        %v6663 = vshrl.u32 %v6662, 7
        %v6664 = vsub.s32 %v6661, %v6663
        %v6665 = vrot.slane %v6651, %v6664
        %v6666 = vcombine.low %v6658, %v6665
        %v6667 = vcombine.low %v5030, %v5032
        %v6668 = vcombine.low %v5034, %v5036
        %v6670 = vunpack.c.l.s4 1983009808
        %v6671 = vunpack.c.0.s8 %v6670
        %v6672 = vlaneseq
        %v6673 = vshrl.u32 %v6672, 7
        %v6674 = vsub.s32 %v6671, %v6673
        %v6675 = vrot.slane %v6667, %v6674
        %v6677 = vunpack.c.l.s4 1983009808
        %v6678 = vunpack.c.0.s8 %v6677
        %v6679 = vlaneseq
        %v6680 = vshrl.u32 %v6679, 7
        %v6681 = vsub.s32 %v6678, %v6680
        %v6682 = vrot.slane %v6668, %v6681
        %v6683 = vcombine.low %v6675, %v6682
        %v6684 = vcombine.low %v5038, %v5040
        %v6685 = vcombine.low %v5042, %v5044
        %v6687 = vunpack.c.l.s4 1983009808
        %v6688 = vunpack.c.0.s8 %v6687
        %v6689 = vlaneseq
        %v6690 = vshrl.u32 %v6689, 7
        %v6691 = vsub.s32 %v6688, %v6690
        %v6692 = vrot.slane %v6684, %v6691
        %v6694 = vunpack.c.l.s4 1983009808
        %v6695 = vunpack.c.0.s8 %v6694
        %v6696 = vlaneseq
        %v6697 = vshrl.u32 %v6696, 7
        %v6698 = vsub.s32 %v6695, %v6697
        %v6699 = vrot.slane %v6685, %v6698
        %v6700 = vcombine.low %v6692, %v6699
        %v6701 = vcombine.low %v4357, %v4358
        %v6702 = vcombine.low %v4359, %v4360
        %v6704 = vunpack.c.l.s4 1983009808
        %v6705 = vunpack.c.0.s8 %v6704
        %v6706 = vlaneseq
        %v6707 = vshrl.u32 %v6706, 7
        %v6708 = vsub.s32 %v6705, %v6707
        %v6709 = vrot.slane %v6701, %v6708
        %v6711 = vunpack.c.l.s4 1983009808
        %v6712 = vunpack.c.0.s8 %v6711
        %v6713 = vlaneseq
        %v6714 = vshrl.u32 %v6713, 7
        %v6715 = vsub.s32 %v6712, %v6714
        %v6716 = vrot.slane %v6702, %v6715
        %v6717 = vcombine.low %v6709, %v6716
        %v6718 = vcombine.low %v4361, %v4362
        %v6719 = vcombine.low %v4363, %v4364
        %v6721 = vunpack.c.l.s4 1983009808
        %v6722 = vunpack.c.0.s8 %v6721
        %v6723 = vlaneseq
        %v6724 = vshrl.u32 %v6723, 7
        %v6725 = vsub.s32 %v6722, %v6724
        %v6726 = vrot.slane %v6718, %v6725
        %v6728 = vunpack.c.l.s4 1983009808
        %v6729 = vunpack.c.0.s8 %v6728
        %v6730 = vlaneseq
        %v6731 = vshrl.u32 %v6730, 7
        %v6732 = vsub.s32 %v6729, %v6731
        %v6733 = vrot.slane %v6719, %v6732
        %v6734 = vcombine.low %v6726, %v6733
        %v6735 = vcombine.low %v4365, %v4366
        %v6736 = vcombine.low %v4367, %v4368
        %v6738 = vunpack.c.l.s4 1983009808
        %v6739 = vunpack.c.0.s8 %v6738
        %v6740 = vlaneseq
        %v6741 = vshrl.u32 %v6740, 7
        %v6742 = vsub.s32 %v6739, %v6741
        %v6743 = vrot.slane %v6735, %v6742
        %v6745 = vunpack.c.l.s4 1983009808
        %v6746 = vunpack.c.0.s8 %v6745
        %v6747 = vlaneseq
        %v6748 = vshrl.u32 %v6747, 7
        %v6749 = vsub.s32 %v6746, %v6748
        %v6750 = vrot.slane %v6736, %v6749
        %v6751 = vcombine.low %v6743, %v6750
        %v6752 = vcombine.low %v4369, %v4370
        %v6753 = vcombine.low %v4371, %v4372
        %v6755 = vunpack.c.l.s4 1983009808
        %v6756 = vunpack.c.0.s8 %v6755
        %v6757 = vlaneseq
        %v6758 = vshrl.u32 %v6757, 7
        %v6759 = vsub.s32 %v6756, %v6758
        %v6760 = vrot.slane %v6752, %v6759
        %v6762 = vunpack.c.l.s4 1983009808
        %v6763 = vunpack.c.0.s8 %v6762
        %v6764 = vlaneseq
        %v6765 = vshrl.u32 %v6764, 7
        %v6766 = vsub.s32 %v6763, %v6765
        %v6767 = vrot.slane %v6753, %v6766
        %v6768 = vcombine.low %v6760, %v6767
        %v6769 = vcombine.low %v5046, %v5048
        %v6770 = vcombine.low %v5050, %v5052
        %v6772 = vunpack.c.l.s4 1983009808
        %v6773 = vunpack.c.0.s8 %v6772
        %v6774 = vlaneseq
        %v6775 = vshrl.u32 %v6774, 7
        %v6776 = vsub.s32 %v6773, %v6775
        %v6777 = vrot.slane %v6769, %v6776
        %v6779 = vunpack.c.l.s4 1983009808
        %v6780 = vunpack.c.0.s8 %v6779
        %v6781 = vlaneseq
        %v6782 = vshrl.u32 %v6781, 7
        %v6783 = vsub.s32 %v6780, %v6782
        %v6784 = vrot.slane %v6770, %v6783
        %v6785 = vcombine.low %v6777, %v6784
        %v6786 = vcombine.low %v5054, %v5056
        %v6787 = vcombine.low %v5058, %v5060
        %v6789 = vunpack.c.l.s4 1983009808
        %v6790 = vunpack.c.0.s8 %v6789
        %v6791 = vlaneseq
        %v6792 = vshrl.u32 %v6791, 7
        %v6793 = vsub.s32 %v6790, %v6792
        %v6794 = vrot.slane %v6786, %v6793
        %v6796 = vunpack.c.l.s4 1983009808
        %v6797 = vunpack.c.0.s8 %v6796
        %v6798 = vlaneseq
        %v6799 = vshrl.u32 %v6798, 7
        %v6800 = vsub.s32 %v6797, %v6799
        %v6801 = vrot.slane %v6787, %v6800
        %v6802 = vcombine.low %v6794, %v6801
        %v6803 = vcombine.low %v5062, %v5064
        %v6804 = vcombine.low %v5066, %v5068
        %v6806 = vunpack.c.l.s4 1983009808
        %v6807 = vunpack.c.0.s8 %v6806
        %v6808 = vlaneseq
        %v6809 = vshrl.u32 %v6808, 7
        %v6810 = vsub.s32 %v6807, %v6809
        %v6811 = vrot.slane %v6803, %v6810
        %v6813 = vunpack.c.l.s4 1983009808
        %v6814 = vunpack.c.0.s8 %v6813
        %v6815 = vlaneseq
        %v6816 = vshrl.u32 %v6815, 7
        %v6817 = vsub.s32 %v6814, %v6816
        %v6818 = vrot.slane %v6804, %v6817
        %v6819 = vcombine.low %v6811, %v6818
        %v6820 = vcombine.low %v5070, %v5072
        %v6821 = vcombine.low %v5074, %v5076
        %v6823 = vunpack.c.l.s4 1983009808
        %v6824 = vunpack.c.0.s8 %v6823
        %v6825 = vlaneseq
        %v6826 = vshrl.u32 %v6825, 7
        %v6827 = vsub.s32 %v6824, %v6826
        %v6828 = vrot.slane %v6820, %v6827
        %v6830 = vunpack.c.l.s4 1983009808
        %v6831 = vunpack.c.0.s8 %v6830
        %v6832 = vlaneseq
        %v6833 = vshrl.u32 %v6832, 7
        %v6834 = vsub.s32 %v6831, %v6833
        %v6835 = vrot.slane %v6821, %v6834
        %v6836 = vcombine.low %v6828, %v6835
        %v6837 = vcombine.low %v4373, %v4374
        %v6838 = vcombine.low %v4375, %v4376
        %v6840 = vunpack.c.l.s4 1983009808
        %v6841 = vunpack.c.0.s8 %v6840
        %v6842 = vlaneseq
        %v6843 = vshrl.u32 %v6842, 7
        %v6844 = vsub.s32 %v6841, %v6843
        %v6845 = vrot.slane %v6837, %v6844
        %v6847 = vunpack.c.l.s4 1983009808
        %v6848 = vunpack.c.0.s8 %v6847
        %v6849 = vlaneseq
        %v6850 = vshrl.u32 %v6849, 7
        %v6851 = vsub.s32 %v6848, %v6850
        %v6852 = vrot.slane %v6838, %v6851
        %v6853 = vcombine.low %v6845, %v6852
        %v6854 = vcombine.low %v4377, %v4378
        %v6855 = vcombine.low %v4379, %v4380
        %v6857 = vunpack.c.l.s4 1983009808
        %v6858 = vunpack.c.0.s8 %v6857
        %v6859 = vlaneseq
        %v6860 = vshrl.u32 %v6859, 7
        %v6861 = vsub.s32 %v6858, %v6860
        %v6862 = vrot.slane %v6854, %v6861
        %v6864 = vunpack.c.l.s4 1983009808
        %v6865 = vunpack.c.0.s8 %v6864
        %v6866 = vlaneseq
        %v6867 = vshrl.u32 %v6866, 7
        %v6868 = vsub.s32 %v6865, %v6867
        %v6869 = vrot.slane %v6855, %v6868
        %v6870 = vcombine.low %v6862, %v6869
        %v6871 = vcombine.low %v4381, %v4382
        %v6872 = vcombine.low %v4383, %v4384
        %v6874 = vunpack.c.l.s4 1983009808
        %v6875 = vunpack.c.0.s8 %v6874
        %v6876 = vlaneseq
        %v6877 = vshrl.u32 %v6876, 7
        %v6878 = vsub.s32 %v6875, %v6877
        %v6879 = vrot.slane %v6871, %v6878
        %v6881 = vunpack.c.l.s4 1983009808
        %v6882 = vunpack.c.0.s8 %v6881
        %v6883 = vlaneseq
        %v6884 = vshrl.u32 %v6883, 7
        %v6885 = vsub.s32 %v6882, %v6884
        %v6886 = vrot.slane %v6872, %v6885
        %v6887 = vcombine.low %v6879, %v6886
        %v6888 = vcombine.low %v4385, %v4386
        %v6889 = vcombine.low %v4387, %v4388
        %v6891 = vunpack.c.l.s4 1983009808
        %v6892 = vunpack.c.0.s8 %v6891
        %v6893 = vlaneseq
        %v6894 = vshrl.u32 %v6893, 7
        %v6895 = vsub.s32 %v6892, %v6894
        %v6896 = vrot.slane %v6888, %v6895
        %v6898 = vunpack.c.l.s4 1983009808
        %v6899 = vunpack.c.0.s8 %v6898
        %v6900 = vlaneseq
        %v6901 = vshrl.u32 %v6900, 7
        %v6902 = vsub.s32 %v6899, %v6901
        %v6903 = vrot.slane %v6889, %v6902
        %v6904 = vcombine.low %v6896, %v6903
        %v6905 = vcombine.low %v5078, %v5080
        %v6906 = vcombine.low %v5082, %v5084
        %v6908 = vunpack.c.l.s4 1983009808
        %v6909 = vunpack.c.0.s8 %v6908
        %v6910 = vlaneseq
        %v6911 = vshrl.u32 %v6910, 7
        %v6912 = vsub.s32 %v6909, %v6911
        %v6913 = vrot.slane %v6905, %v6912
        %v6915 = vunpack.c.l.s4 1983009808
        %v6916 = vunpack.c.0.s8 %v6915
        %v6917 = vlaneseq
        %v6918 = vshrl.u32 %v6917, 7
        %v6919 = vsub.s32 %v6916, %v6918
        %v6920 = vrot.slane %v6906, %v6919
        %v6921 = vcombine.low %v6913, %v6920
        %v6922 = vcombine.low %v5086, %v5088
        %v6923 = vcombine.low %v5090, %v5092
        %v6925 = vunpack.c.l.s4 1983009808
        %v6926 = vunpack.c.0.s8 %v6925
        %v6927 = vlaneseq
        %v6928 = vshrl.u32 %v6927, 7
        %v6929 = vsub.s32 %v6926, %v6928
        %v6930 = vrot.slane %v6922, %v6929
        %v6932 = vunpack.c.l.s4 1983009808
        %v6933 = vunpack.c.0.s8 %v6932
        %v6934 = vlaneseq
        %v6935 = vshrl.u32 %v6934, 7
        %v6936 = vsub.s32 %v6933, %v6935
        %v6937 = vrot.slane %v6923, %v6936
        %v6938 = vcombine.low %v6930, %v6937
        %v6939 = vcombine.low %v5094, %v5096
        %v6940 = vcombine.low %v5098, %v5100
        %v6942 = vunpack.c.l.s4 1983009808
        %v6943 = vunpack.c.0.s8 %v6942
        %v6944 = vlaneseq
        %v6945 = vshrl.u32 %v6944, 7
        %v6946 = vsub.s32 %v6943, %v6945
        %v6947 = vrot.slane %v6939, %v6946
        %v6949 = vunpack.c.l.s4 1983009808
        %v6950 = vunpack.c.0.s8 %v6949
        %v6951 = vlaneseq
        %v6952 = vshrl.u32 %v6951, 7
        %v6953 = vsub.s32 %v6950, %v6952
        %v6954 = vrot.slane %v6940, %v6953
        %v6955 = vcombine.low %v6947, %v6954
        %v6956 = vcombine.low %v5102, %v5104
        %v6957 = vcombine.low %v5106, %v5108
        %v6959 = vunpack.c.l.s4 1983009808
        %v6960 = vunpack.c.0.s8 %v6959
        %v6961 = vlaneseq
        %v6962 = vshrl.u32 %v6961, 7
        %v6963 = vsub.s32 %v6960, %v6962
        %v6964 = vrot.slane %v6956, %v6963
        %v6966 = vunpack.c.l.s4 1983009808
        %v6967 = vunpack.c.0.s8 %v6966
        %v6968 = vlaneseq
        %v6969 = vshrl.u32 %v6968, 7
        %v6970 = vsub.s32 %v6967, %v6969
        %v6971 = vrot.slane %v6957, %v6970
        %v6972 = vcombine.low %v6964, %v6971
        %v6973 = vcombine.low %v4389, %v4390
        %v6974 = vcombine.low %v4391, %v4392
        %v6976 = vunpack.c.l.s4 1983009808
        %v6977 = vunpack.c.0.s8 %v6976
        %v6978 = vlaneseq
        %v6979 = vshrl.u32 %v6978, 7
        %v6980 = vsub.s32 %v6977, %v6979
        %v6981 = vrot.slane %v6973, %v6980
        %v6983 = vunpack.c.l.s4 1983009808
        %v6984 = vunpack.c.0.s8 %v6983
        %v6985 = vlaneseq
        %v6986 = vshrl.u32 %v6985, 7
        %v6987 = vsub.s32 %v6984, %v6986
        %v6988 = vrot.slane %v6974, %v6987
        %v6989 = vcombine.low %v6981, %v6988
        %v6990 = vcombine.low %v4393, %v4394
        %v6991 = vcombine.low %v4395, %v4396
        %v6993 = vunpack.c.l.s4 1983009808
        %v6994 = vunpack.c.0.s8 %v6993
        %v6995 = vlaneseq
        %v6996 = vshrl.u32 %v6995, 7
        %v6997 = vsub.s32 %v6994, %v6996
        %v6998 = vrot.slane %v6990, %v6997
        %v7000 = vunpack.c.l.s4 1983009808
        %v7001 = vunpack.c.0.s8 %v7000
        %v7002 = vlaneseq
        %v7003 = vshrl.u32 %v7002, 7
        %v7004 = vsub.s32 %v7001, %v7003
        %v7005 = vrot.slane %v6991, %v7004
        %v7006 = vcombine.low %v6998, %v7005
        %v7007 = vcombine.low %v4397, %v4398
        %v7008 = vcombine.low %v4399, %v4400
        %v7010 = vunpack.c.l.s4 1983009808
        %v7011 = vunpack.c.0.s8 %v7010
        %v7012 = vlaneseq
        %v7013 = vshrl.u32 %v7012, 7
        %v7014 = vsub.s32 %v7011, %v7013
        %v7015 = vrot.slane %v7007, %v7014
        %v7017 = vunpack.c.l.s4 1983009808
        %v7018 = vunpack.c.0.s8 %v7017
        %v7019 = vlaneseq
        %v7020 = vshrl.u32 %v7019, 7
        %v7021 = vsub.s32 %v7018, %v7020
        %v7022 = vrot.slane %v7008, %v7021
        %v7023 = vcombine.low %v7015, %v7022
        %v7024 = vcombine.low %v4401, %v4402
        %v7025 = vcombine.low %v4403, %v4404
        %v7027 = vunpack.c.l.s4 1983009808
        %v7028 = vunpack.c.0.s8 %v7027
        %v7029 = vlaneseq
        %v7030 = vshrl.u32 %v7029, 7
        %v7031 = vsub.s32 %v7028, %v7030
        %v7032 = vrot.slane %v7024, %v7031
        %v7034 = vunpack.c.l.s4 1983009808
        %v7035 = vunpack.c.0.s8 %v7034
        %v7036 = vlaneseq
        %v7037 = vshrl.u32 %v7036, 7
        %v7038 = vsub.s32 %v7035, %v7037
        %v7039 = vrot.slane %v7025, %v7038
        %v7040 = vcombine.low %v7032, %v7039
        %v7041 = vcombine.low %v5110, %v5112
        %v7042 = vcombine.low %v5114, %v5116
        %v7044 = vunpack.c.l.s4 1983009808
        %v7045 = vunpack.c.0.s8 %v7044
        %v7046 = vlaneseq
        %v7047 = vshrl.u32 %v7046, 7
        %v7048 = vsub.s32 %v7045, %v7047
        %v7049 = vrot.slane %v7041, %v7048
        %v7051 = vunpack.c.l.s4 1983009808
        %v7052 = vunpack.c.0.s8 %v7051
        %v7053 = vlaneseq
        %v7054 = vshrl.u32 %v7053, 7
        %v7055 = vsub.s32 %v7052, %v7054
        %v7056 = vrot.slane %v7042, %v7055
        %v7057 = vcombine.low %v7049, %v7056
        %v7058 = vcombine.low %v5118, %v5120
        %v7059 = vcombine.low %v5122, %v5124
        %v7061 = vunpack.c.l.s4 1983009808
        %v7062 = vunpack.c.0.s8 %v7061
        %v7063 = vlaneseq
        %v7064 = vshrl.u32 %v7063, 7
        %v7065 = vsub.s32 %v7062, %v7064
        %v7066 = vrot.slane %v7058, %v7065
        %v7068 = vunpack.c.l.s4 1983009808
        %v7069 = vunpack.c.0.s8 %v7068
        %v7070 = vlaneseq
        %v7071 = vshrl.u32 %v7070, 7
        %v7072 = vsub.s32 %v7069, %v7071
        %v7073 = vrot.slane %v7059, %v7072
        %v7074 = vcombine.low %v7066, %v7073
        %v7075 = vcombine.low %v5126, %v5128
        %v7076 = vcombine.low %v5130, %v5132
        %v7078 = vunpack.c.l.s4 1983009808
        %v7079 = vunpack.c.0.s8 %v7078
        %v7080 = vlaneseq
        %v7081 = vshrl.u32 %v7080, 7
        %v7082 = vsub.s32 %v7079, %v7081
        %v7083 = vrot.slane %v7075, %v7082
        %v7085 = vunpack.c.l.s4 1983009808
        %v7086 = vunpack.c.0.s8 %v7085
        %v7087 = vlaneseq
        %v7088 = vshrl.u32 %v7087, 7
        %v7089 = vsub.s32 %v7086, %v7088
        %v7090 = vrot.slane %v7076, %v7089
        %v7091 = vcombine.low %v7083, %v7090
        %v7092 = vcombine.low %v5134, %v5136
        %v7093 = vcombine.low %v5138, %v5140
        %v7095 = vunpack.c.l.s4 1983009808
        %v7096 = vunpack.c.0.s8 %v7095
        %v7097 = vlaneseq
        %v7098 = vshrl.u32 %v7097, 7
        %v7099 = vsub.s32 %v7096, %v7098
        %v7100 = vrot.slane %v7092, %v7099
        %v7102 = vunpack.c.l.s4 1983009808
        %v7103 = vunpack.c.0.s8 %v7102
        %v7104 = vlaneseq
        %v7105 = vshrl.u32 %v7104, 7
        %v7106 = vsub.s32 %v7103, %v7105
        %v7107 = vrot.slane %v7093, %v7106
        %v7108 = vcombine.low %v7100, %v7107
        %v7109 = vcombine.low %v4405, %v4406
        %v7110 = vcombine.low %v4407, %v4408
        %v7112 = vunpack.c.l.s4 1983009808
        %v7113 = vunpack.c.0.s8 %v7112
        %v7114 = vlaneseq
        %v7115 = vshrl.u32 %v7114, 7
        %v7116 = vsub.s32 %v7113, %v7115
        %v7117 = vrot.slane %v7109, %v7116
        %v7119 = vunpack.c.l.s4 1983009808
        %v7120 = vunpack.c.0.s8 %v7119
        %v7121 = vlaneseq
        %v7122 = vshrl.u32 %v7121, 7
        %v7123 = vsub.s32 %v7120, %v7122
        %v7124 = vrot.slane %v7110, %v7123
        %v7125 = vcombine.low %v7117, %v7124
        %v7126 = vcombine.low %v4409, %v4410
        %v7127 = vcombine.low %v4411, %v4412
        %v7129 = vunpack.c.l.s4 1983009808
        %v7130 = vunpack.c.0.s8 %v7129
        %v7131 = vlaneseq
        %v7132 = vshrl.u32 %v7131, 7
        %v7133 = vsub.s32 %v7130, %v7132
        %v7134 = vrot.slane %v7126, %v7133
        %v7136 = vunpack.c.l.s4 1983009808
        %v7137 = vunpack.c.0.s8 %v7136
        %v7138 = vlaneseq
        %v7139 = vshrl.u32 %v7138, 7
        %v7140 = vsub.s32 %v7137, %v7139
        %v7141 = vrot.slane %v7127, %v7140
        %v7142 = vcombine.low %v7134, %v7141
        %v7143 = vcombine.low %v4413, %v4414
        %v7144 = vcombine.low %v4415, %v4416
        %v7146 = vunpack.c.l.s4 1983009808
        %v7147 = vunpack.c.0.s8 %v7146
        %v7148 = vlaneseq
        %v7149 = vshrl.u32 %v7148, 7
        %v7150 = vsub.s32 %v7147, %v7149
        %v7151 = vrot.slane %v7143, %v7150
        %v7153 = vunpack.c.l.s4 1983009808
        %v7154 = vunpack.c.0.s8 %v7153
        %v7155 = vlaneseq
        %v7156 = vshrl.u32 %v7155, 7
        %v7157 = vsub.s32 %v7154, %v7156
        %v7158 = vrot.slane %v7144, %v7157
        %v7159 = vcombine.low %v7151, %v7158
        %v7160 = vcombine.low %v4417, %v4418
        %v7161 = vcombine.low %v4419, %v4420
        %v7163 = vunpack.c.l.s4 1983009808
        %v7164 = vunpack.c.0.s8 %v7163
        %v7165 = vlaneseq
        %v7166 = vshrl.u32 %v7165, 7
        %v7167 = vsub.s32 %v7164, %v7166
        %v7168 = vrot.slane %v7160, %v7167
        %v7170 = vunpack.c.l.s4 1983009808
        %v7171 = vunpack.c.0.s8 %v7170
        %v7172 = vlaneseq
        %v7173 = vshrl.u32 %v7172, 7
        %v7174 = vsub.s32 %v7171, %v7173
        %v7175 = vrot.slane %v7161, %v7174
        %v7176 = vcombine.low %v7168, %v7175
        %v7177 = vcombine.low %v5142, %v5144
        %v7178 = vcombine.low %v5146, %v5148
        %v7180 = vunpack.c.l.s4 1983009808
        %v7181 = vunpack.c.0.s8 %v7180
        %v7182 = vlaneseq
        %v7183 = vshrl.u32 %v7182, 7
        %v7184 = vsub.s32 %v7181, %v7183
        %v7185 = vrot.slane %v7177, %v7184
        %v7187 = vunpack.c.l.s4 1983009808
        %v7188 = vunpack.c.0.s8 %v7187
        %v7189 = vlaneseq
        %v7190 = vshrl.u32 %v7189, 7
        %v7191 = vsub.s32 %v7188, %v7190
        %v7192 = vrot.slane %v7178, %v7191
        %v7193 = vcombine.low %v7185, %v7192
        %v7194 = vcombine.low %v5150, %v5152
        %v7195 = vcombine.low %v5154, %v5156
        %v7197 = vunpack.c.l.s4 1983009808
        %v7198 = vunpack.c.0.s8 %v7197
        %v7199 = vlaneseq
        %v7200 = vshrl.u32 %v7199, 7
        %v7201 = vsub.s32 %v7198, %v7200
        %v7202 = vrot.slane %v7194, %v7201
        %v7204 = vunpack.c.l.s4 1983009808
        %v7205 = vunpack.c.0.s8 %v7204
        %v7206 = vlaneseq
        %v7207 = vshrl.u32 %v7206, 7
        %v7208 = vsub.s32 %v7205, %v7207
        %v7209 = vrot.slane %v7195, %v7208
        %v7210 = vcombine.low %v7202, %v7209
        %v7211 = vcombine.low %v5158, %v5160
        %v7212 = vcombine.low %v5162, %v5164
        %v7214 = vunpack.c.l.s4 1983009808
        %v7215 = vunpack.c.0.s8 %v7214
        %v7216 = vlaneseq
        %v7217 = vshrl.u32 %v7216, 7
        %v7218 = vsub.s32 %v7215, %v7217
        %v7219 = vrot.slane %v7211, %v7218
        %v7221 = vunpack.c.l.s4 1983009808
        %v7222 = vunpack.c.0.s8 %v7221
        %v7223 = vlaneseq
        %v7224 = vshrl.u32 %v7223, 7
        %v7225 = vsub.s32 %v7222, %v7224
        %v7226 = vrot.slane %v7212, %v7225
        %v7227 = vcombine.low %v7219, %v7226
        %v7228 = vcombine.low %v5166, %v5168
        %v7229 = vcombine.low %v5170, %v5172
        %v7231 = vunpack.c.l.s4 1983009808
        %v7232 = vunpack.c.0.s8 %v7231
        %v7233 = vlaneseq
        %v7234 = vshrl.u32 %v7233, 7
        %v7235 = vsub.s32 %v7232, %v7234
        %v7236 = vrot.slane %v7228, %v7235
        %v7238 = vunpack.c.l.s4 1983009808
        %v7239 = vunpack.c.0.s8 %v7238
        %v7240 = vlaneseq
        %v7241 = vshrl.u32 %v7240, 7
        %v7242 = vsub.s32 %v7239, %v7241
        %v7243 = vrot.slane %v7229, %v7242
        %v7244 = vcombine.low %v7236, %v7243
        %v7245 = vcombine.low %v4421, %v4422
        %v7246 = vcombine.low %v4423, %v4424
        %v7248 = vunpack.c.l.s4 1983009808
        %v7249 = vunpack.c.0.s8 %v7248
        %v7250 = vlaneseq
        %v7251 = vshrl.u32 %v7250, 7
        %v7252 = vsub.s32 %v7249, %v7251
        %v7253 = vrot.slane %v7245, %v7252
        %v7255 = vunpack.c.l.s4 1983009808
        %v7256 = vunpack.c.0.s8 %v7255
        %v7257 = vlaneseq
        %v7258 = vshrl.u32 %v7257, 7
        %v7259 = vsub.s32 %v7256, %v7258
        %v7260 = vrot.slane %v7246, %v7259
        %v7261 = vcombine.low %v7253, %v7260
        %v7262 = vcombine.low %v4425, %v4426
        %v7263 = vcombine.low %v4427, %v4428
        %v7265 = vunpack.c.l.s4 1983009808
        %v7266 = vunpack.c.0.s8 %v7265
        %v7267 = vlaneseq
        %v7268 = vshrl.u32 %v7267, 7
        %v7269 = vsub.s32 %v7266, %v7268
        %v7270 = vrot.slane %v7262, %v7269
        %v7272 = vunpack.c.l.s4 1983009808
        %v7273 = vunpack.c.0.s8 %v7272
        %v7274 = vlaneseq
        %v7275 = vshrl.u32 %v7274, 7
        %v7276 = vsub.s32 %v7273, %v7275
        %v7277 = vrot.slane %v7263, %v7276
        %v7278 = vcombine.low %v7270, %v7277
        %v7279 = vcombine.low %v4429, %v4430
        %v7280 = vcombine.low %v4431, %v4432
        %v7282 = vunpack.c.l.s4 1983009808
        %v7283 = vunpack.c.0.s8 %v7282
        %v7284 = vlaneseq
        %v7285 = vshrl.u32 %v7284, 7
        %v7286 = vsub.s32 %v7283, %v7285
        %v7287 = vrot.slane %v7279, %v7286
        %v7289 = vunpack.c.l.s4 1983009808
        %v7290 = vunpack.c.0.s8 %v7289
        %v7291 = vlaneseq
        %v7292 = vshrl.u32 %v7291, 7
        %v7293 = vsub.s32 %v7290, %v7292
        %v7294 = vrot.slane %v7280, %v7293
        %v7295 = vcombine.low %v7287, %v7294
        %v7296 = vcombine.low %v4433, %v4434
        %v7297 = vcombine.low %v4435, %v4436
        %v7299 = vunpack.c.l.s4 1983009808
        %v7300 = vunpack.c.0.s8 %v7299
        %v7301 = vlaneseq
        %v7302 = vshrl.u32 %v7301, 7
        %v7303 = vsub.s32 %v7300, %v7302
        %v7304 = vrot.slane %v7296, %v7303
        %v7306 = vunpack.c.l.s4 1983009808
        %v7307 = vunpack.c.0.s8 %v7306
        %v7308 = vlaneseq
        %v7309 = vshrl.u32 %v7308, 7
        %v7310 = vsub.s32 %v7307, %v7309
        %v7311 = vrot.slane %v7297, %v7310
        %v7312 = vcombine.low %v7304, %v7311
        %v7313 = vcombine.low %v5174, %v5176
        %v7314 = vcombine.low %v5178, %v5180
        %v7316 = vunpack.c.l.s4 1983009808
        %v7317 = vunpack.c.0.s8 %v7316
        %v7318 = vlaneseq
        %v7319 = vshrl.u32 %v7318, 7
        %v7320 = vsub.s32 %v7317, %v7319
        %v7321 = vrot.slane %v7313, %v7320
        %v7323 = vunpack.c.l.s4 1983009808
        %v7324 = vunpack.c.0.s8 %v7323
        %v7325 = vlaneseq
        %v7326 = vshrl.u32 %v7325, 7
        %v7327 = vsub.s32 %v7324, %v7326
        %v7328 = vrot.slane %v7314, %v7327
        %v7329 = vcombine.low %v7321, %v7328
        %v7330 = vcombine.low %v5182, %v5184
        %v7331 = vcombine.low %v5186, %v5188
        %v7333 = vunpack.c.l.s4 1983009808
        %v7334 = vunpack.c.0.s8 %v7333
        %v7335 = vlaneseq
        %v7336 = vshrl.u32 %v7335, 7
        %v7337 = vsub.s32 %v7334, %v7336
        %v7338 = vrot.slane %v7330, %v7337
        %v7340 = vunpack.c.l.s4 1983009808
        %v7341 = vunpack.c.0.s8 %v7340
        %v7342 = vlaneseq
        %v7343 = vshrl.u32 %v7342, 7
        %v7344 = vsub.s32 %v7341, %v7343
        %v7345 = vrot.slane %v7331, %v7344
        %v7346 = vcombine.low %v7338, %v7345
        %v7347 = vcombine.low %v5190, %v5192
        %v7348 = vcombine.low %v5194, %v5196
        %v7350 = vunpack.c.l.s4 1983009808
        %v7351 = vunpack.c.0.s8 %v7350
        %v7352 = vlaneseq
        %v7353 = vshrl.u32 %v7352, 7
        %v7354 = vsub.s32 %v7351, %v7353
        %v7355 = vrot.slane %v7347, %v7354
        %v7357 = vunpack.c.l.s4 1983009808
        %v7358 = vunpack.c.0.s8 %v7357
        %v7359 = vlaneseq
        %v7360 = vshrl.u32 %v7359, 7
        %v7361 = vsub.s32 %v7358, %v7360
        %v7362 = vrot.slane %v7348, %v7361
        %v7363 = vcombine.low %v7355, %v7362
        %v7364 = vcombine.low %v5198, %v5200
        %v7365 = vcombine.low %v5202, %v5204
        %v7367 = vunpack.c.l.s4 1983009808
        %v7368 = vunpack.c.0.s8 %v7367
        %v7369 = vlaneseq
        %v7370 = vshrl.u32 %v7369, 7
        %v7371 = vsub.s32 %v7368, %v7370
        %v7372 = vrot.slane %v7364, %v7371
        %v7374 = vunpack.c.l.s4 1983009808
        %v7375 = vunpack.c.0.s8 %v7374
        %v7376 = vlaneseq
        %v7377 = vshrl.u32 %v7376, 7
        %v7378 = vsub.s32 %v7375, %v7377
        %v7379 = vrot.slane %v7365, %v7378
        %v7380 = vcombine.low %v7372, %v7379
        %7509 = vxpose.xlu0.b32.start [1/16] %v5221, 128
        %7510 = vxpose.xlu0.b32.cont [2/16] %v5238, 128
        %7511 = vxpose.xlu0.b32.cont [3/16] %v5255, 128
        %7512 = vxpose.xlu0.b32.cont [4/16] %v5272, 128
        %7513 = vxpose.xlu0.b32.cont [5/16] %v5289, 128
        %7514 = vxpose.xlu0.b32.cont [6/16] %v5306, 128
        %7515 = vxpose.xlu0.b32.cont [7/16] %v5323, 128
        %7516 = vxpose.xlu0.b32.cont [8/16] %v5340, 128
        %7517 = vxpose.xlu0.b32.cont [9/16] %v5357, 128
        %7518 = vxpose.xlu0.b32.cont [10/16] %v5374, 128
        %7519 = vxpose.xlu0.b32.cont [11/16] %v5391, 128
        %7520 = vxpose.xlu0.b32.cont [12/16] %v5408, 128
        %7521 = vxpose.xlu0.b32.cont [13/16] %v5425, 128
        %7522 = vxpose.xlu0.b32.cont [14/16] %v5442, 128
        %7523 = vxpose.xlu0.b32.cont [15/16] %v5459, 128
        %7524 = vxpose.xlu0.b32.end [16/16] %v5476, 128
        %v7525 = vpop.trf.xlu0
        %v7526 = vpop.trf.xlu0
        %v7527 = vpop.trf.xlu0
        %v7528 = vpop.trf.xlu0
        %v7529 = vpop.trf.xlu0
        %v7530 = vpop.trf.xlu0
        %v7531 = vpop.trf.xlu0
        %v7532 = vpop.trf.xlu0
        %v7533 = vpop.trf.xlu0
        %v7534 = vpop.trf.xlu0
        %v7535 = vpop.trf.xlu0
        %v7536 = vpop.trf.xlu0
        %v7537 = vpop.trf.xlu0
        %v7538 = vpop.trf.xlu0
        %v7539 = vpop.trf.xlu0
        %v7540 = vpop.trf.xlu0
        %7541 = vxpose.xlu0.b32.start [1/16] %v5493, 128
        %7542 = vxpose.xlu0.b32.cont [2/16] %v5510, 128
        %7543 = vxpose.xlu0.b32.cont [3/16] %v5527, 128
        %7544 = vxpose.xlu0.b32.cont [4/16] %v5544, 128
        %7545 = vxpose.xlu0.b32.cont [5/16] %v5561, 128
        %7546 = vxpose.xlu0.b32.cont [6/16] %v5578, 128
        %7547 = vxpose.xlu0.b32.cont [7/16] %v5595, 128
        %7548 = vxpose.xlu0.b32.cont [8/16] %v5612, 128
        %7549 = vxpose.xlu0.b32.cont [9/16] %v5629, 128
        %7550 = vxpose.xlu0.b32.cont [10/16] %v5646, 128
        %7551 = vxpose.xlu0.b32.cont [11/16] %v5663, 128
        %7552 = vxpose.xlu0.b32.cont [12/16] %v5680, 128
        %7553 = vxpose.xlu0.b32.cont [13/16] %v5697, 128
        %7554 = vxpose.xlu0.b32.cont [14/16] %v5714, 128
        %7555 = vxpose.xlu0.b32.cont [15/16] %v5731, 128
        %7556 = vxpose.xlu0.b32.end [16/16] %v5748, 128
        %v7557 = vpop.trf.xlu0
        %v7558 = vpop.trf.xlu0
        %v7559 = vpop.trf.xlu0
        %v7560 = vpop.trf.xlu0
        %v7561 = vpop.trf.xlu0
        %v7562 = vpop.trf.xlu0
        %v7563 = vpop.trf.xlu0
        %v7564 = vpop.trf.xlu0
        %v7565 = vpop.trf.xlu0
        %v7566 = vpop.trf.xlu0
        %v7567 = vpop.trf.xlu0
        %v7568 = vpop.trf.xlu0
        %v7569 = vpop.trf.xlu0
        %v7570 = vpop.trf.xlu0
        %v7571 = vpop.trf.xlu0
        %v7572 = vpop.trf.xlu0
        %7573 = vxpose.xlu0.b32.start [1/16] %v5765, 128
        %7574 = vxpose.xlu0.b32.cont [2/16] %v5782, 128
        %7575 = vxpose.xlu0.b32.cont [3/16] %v5799, 128
        %7576 = vxpose.xlu0.b32.cont [4/16] %v5816, 128
        %7577 = vxpose.xlu0.b32.cont [5/16] %v5833, 128
        %7578 = vxpose.xlu0.b32.cont [6/16] %v5850, 128
        %7579 = vxpose.xlu0.b32.cont [7/16] %v5867, 128
        %7580 = vxpose.xlu0.b32.cont [8/16] %v5884, 128
        %7581 = vxpose.xlu0.b32.cont [9/16] %v5901, 128
        %7582 = vxpose.xlu0.b32.cont [10/16] %v5918, 128
        %7583 = vxpose.xlu0.b32.cont [11/16] %v5935, 128
        %7584 = vxpose.xlu0.b32.cont [12/16] %v5952, 128
        %7585 = vxpose.xlu0.b32.cont [13/16] %v5969, 128
        %7586 = vxpose.xlu0.b32.cont [14/16] %v5986, 128
        %7587 = vxpose.xlu0.b32.cont [15/16] %v6003, 128
        %7588 = vxpose.xlu0.b32.end [16/16] %v6020, 128
        %v7589 = vpop.trf.xlu0
        %v7590 = vpop.trf.xlu0
        %v7591 = vpop.trf.xlu0
        %v7592 = vpop.trf.xlu0
        %v7593 = vpop.trf.xlu0
        %v7594 = vpop.trf.xlu0
        %v7595 = vpop.trf.xlu0
        %v7596 = vpop.trf.xlu0
        %v7597 = vpop.trf.xlu0
        %v7598 = vpop.trf.xlu0
        %v7599 = vpop.trf.xlu0
        %v7600 = vpop.trf.xlu0
        %v7601 = vpop.trf.xlu0
        %v7602 = vpop.trf.xlu0
        %v7603 = vpop.trf.xlu0
        %v7604 = vpop.trf.xlu0
        %7605 = vxpose.xlu0.b32.start [1/16] %v6037, 128
        %7606 = vxpose.xlu0.b32.cont [2/16] %v6054, 128
        %7607 = vxpose.xlu0.b32.cont [3/16] %v6071, 128
        %7608 = vxpose.xlu0.b32.cont [4/16] %v6088, 128
        %7609 = vxpose.xlu0.b32.cont [5/16] %v6105, 128
        %7610 = vxpose.xlu0.b32.cont [6/16] %v6122, 128
        %7611 = vxpose.xlu0.b32.cont [7/16] %v6139, 128
        %7612 = vxpose.xlu0.b32.cont [8/16] %v6156, 128
        %7613 = vxpose.xlu0.b32.cont [9/16] %v6173, 128
        %7614 = vxpose.xlu0.b32.cont [10/16] %v6190, 128
        %7615 = vxpose.xlu0.b32.cont [11/16] %v6207, 128
        %7616 = vxpose.xlu0.b32.cont [12/16] %v6224, 128
        %7617 = vxpose.xlu0.b32.cont [13/16] %v6241, 128
        %7618 = vxpose.xlu0.b32.cont [14/16] %v6258, 128
        %7619 = vxpose.xlu0.b32.cont [15/16] %v6275, 128
        %7620 = vxpose.xlu0.b32.end [16/16] %v6292, 128
        %v7621 = vpop.trf.xlu0
        %v7622 = vpop.trf.xlu0
        %v7623 = vpop.trf.xlu0
        %v7624 = vpop.trf.xlu0
        %v7625 = vpop.trf.xlu0
        %v7626 = vpop.trf.xlu0
        %v7627 = vpop.trf.xlu0
        %v7628 = vpop.trf.xlu0
        %v7629 = vpop.trf.xlu0
        %v7630 = vpop.trf.xlu0
        %v7631 = vpop.trf.xlu0
        %v7632 = vpop.trf.xlu0
        %v7633 = vpop.trf.xlu0
        %v7634 = vpop.trf.xlu0
        %v7635 = vpop.trf.xlu0
        %v7636 = vpop.trf.xlu0
        %7637 = vxpose.xlu0.b32.start [1/16] %v6309, 128
        %7638 = vxpose.xlu0.b32.cont [2/16] %v6326, 128
        %7639 = vxpose.xlu0.b32.cont [3/16] %v6343, 128
        %7640 = vxpose.xlu0.b32.cont [4/16] %v6360, 128
        %7641 = vxpose.xlu0.b32.cont [5/16] %v6377, 128
        %7642 = vxpose.xlu0.b32.cont [6/16] %v6394, 128
        %7643 = vxpose.xlu0.b32.cont [7/16] %v6411, 128
        %7644 = vxpose.xlu0.b32.cont [8/16] %v6428, 128
        %7645 = vxpose.xlu0.b32.cont [9/16] %v6445, 128
        %7646 = vxpose.xlu0.b32.cont [10/16] %v6462, 128
        %7647 = vxpose.xlu0.b32.cont [11/16] %v6479, 128
        %7648 = vxpose.xlu0.b32.cont [12/16] %v6496, 128
        %7649 = vxpose.xlu0.b32.cont [13/16] %v6513, 128
        %7650 = vxpose.xlu0.b32.cont [14/16] %v6530, 128
        %7651 = vxpose.xlu0.b32.cont [15/16] %v6547, 128
        %7652 = vxpose.xlu0.b32.end [16/16] %v6564, 128
        %v7653 = vpop.trf.xlu0
        %v7654 = vpop.trf.xlu0
        %v7655 = vpop.trf.xlu0
        %v7656 = vpop.trf.xlu0
        %v7657 = vpop.trf.xlu0
        %v7658 = vpop.trf.xlu0
        %v7659 = vpop.trf.xlu0
        %v7660 = vpop.trf.xlu0
        %v7661 = vpop.trf.xlu0
        %v7662 = vpop.trf.xlu0
        %v7663 = vpop.trf.xlu0
        %v7664 = vpop.trf.xlu0
        %v7665 = vpop.trf.xlu0
        %v7666 = vpop.trf.xlu0
        %v7667 = vpop.trf.xlu0
        %v7668 = vpop.trf.xlu0
        %7669 = vxpose.xlu0.b32.start [1/16] %v6581, 128
        %7670 = vxpose.xlu0.b32.cont [2/16] %v6598, 128
        %7671 = vxpose.xlu0.b32.cont [3/16] %v6615, 128
        %7672 = vxpose.xlu0.b32.cont [4/16] %v6632, 128
        %7673 = vxpose.xlu0.b32.cont [5/16] %v6649, 128
        %7674 = vxpose.xlu0.b32.cont [6/16] %v6666, 128
        %7675 = vxpose.xlu0.b32.cont [7/16] %v6683, 128
        %7676 = vxpose.xlu0.b32.cont [8/16] %v6700, 128
        %7677 = vxpose.xlu0.b32.cont [9/16] %v6717, 128
        %7678 = vxpose.xlu0.b32.cont [10/16] %v6734, 128
        %7679 = vxpose.xlu0.b32.cont [11/16] %v6751, 128
        %7680 = vxpose.xlu0.b32.cont [12/16] %v6768, 128
        %7681 = vxpose.xlu0.b32.cont [13/16] %v6785, 128
        %7682 = vxpose.xlu0.b32.cont [14/16] %v6802, 128
        %7683 = vxpose.xlu0.b32.cont [15/16] %v6819, 128
        %7684 = vxpose.xlu0.b32.end [16/16] %v6836, 128
        %v7685 = vpop.trf.xlu0
        %v7686 = vpop.trf.xlu0
        %v7687 = vpop.trf.xlu0
        %v7688 = vpop.trf.xlu0
        %v7689 = vpop.trf.xlu0
        %v7690 = vpop.trf.xlu0
        %v7691 = vpop.trf.xlu0
        %v7692 = vpop.trf.xlu0
        %v7693 = vpop.trf.xlu0
        %v7694 = vpop.trf.xlu0
        %v7695 = vpop.trf.xlu0
        %v7696 = vpop.trf.xlu0
        %v7697 = vpop.trf.xlu0
        %v7698 = vpop.trf.xlu0
        %v7699 = vpop.trf.xlu0
        %v7700 = vpop.trf.xlu0
        %7701 = vxpose.xlu0.b32.start [1/16] %v6853, 128
        %7702 = vxpose.xlu0.b32.cont [2/16] %v6870, 128
        %7703 = vxpose.xlu0.b32.cont [3/16] %v6887, 128
        %7704 = vxpose.xlu0.b32.cont [4/16] %v6904, 128
        %7705 = vxpose.xlu0.b32.cont [5/16] %v6921, 128
        %7706 = vxpose.xlu0.b32.cont [6/16] %v6938, 128
        %7707 = vxpose.xlu0.b32.cont [7/16] %v6955, 128
        %7708 = vxpose.xlu0.b32.cont [8/16] %v6972, 128
        %7709 = vxpose.xlu0.b32.cont [9/16] %v6989, 128
        %7710 = vxpose.xlu0.b32.cont [10/16] %v7006, 128
        %7711 = vxpose.xlu0.b32.cont [11/16] %v7023, 128
        %7712 = vxpose.xlu0.b32.cont [12/16] %v7040, 128
        %7713 = vxpose.xlu0.b32.cont [13/16] %v7057, 128
        %7714 = vxpose.xlu0.b32.cont [14/16] %v7074, 128
        %7715 = vxpose.xlu0.b32.cont [15/16] %v7091, 128
        %7716 = vxpose.xlu0.b32.end [16/16] %v7108, 128
        %v7717 = vpop.trf.xlu0
        %v7718 = vpop.trf.xlu0
        %v7719 = vpop.trf.xlu0
        %v7720 = vpop.trf.xlu0
        %v7721 = vpop.trf.xlu0
        %v7722 = vpop.trf.xlu0
        %v7723 = vpop.trf.xlu0
        %v7724 = vpop.trf.xlu0
        %v7725 = vpop.trf.xlu0
        %v7726 = vpop.trf.xlu0
        %v7727 = vpop.trf.xlu0
        %v7728 = vpop.trf.xlu0
        %v7729 = vpop.trf.xlu0
        %v7730 = vpop.trf.xlu0
        %v7731 = vpop.trf.xlu0
        %v7732 = vpop.trf.xlu0
        %7733 = vxpose.xlu0.b32.start [1/16] %v7125, 128
        %7734 = vxpose.xlu0.b32.cont [2/16] %v7142, 128
        %7735 = vxpose.xlu0.b32.cont [3/16] %v7159, 128
        %7736 = vxpose.xlu0.b32.cont [4/16] %v7176, 128
        %7737 = vxpose.xlu0.b32.cont [5/16] %v7193, 128
        %7738 = vxpose.xlu0.b32.cont [6/16] %v7210, 128
        %7739 = vxpose.xlu0.b32.cont [7/16] %v7227, 128
        %7740 = vxpose.xlu0.b32.cont [8/16] %v7244, 128
        %7741 = vxpose.xlu0.b32.cont [9/16] %v7261, 128
        %7742 = vxpose.xlu0.b32.cont [10/16] %v7278, 128
        %7743 = vxpose.xlu0.b32.cont [11/16] %v7295, 128
        %7744 = vxpose.xlu0.b32.cont [12/16] %v7312, 128
        %7745 = vxpose.xlu0.b32.cont [13/16] %v7329, 128
        %7746 = vxpose.xlu0.b32.cont [14/16] %v7346, 128
        %7747 = vxpose.xlu0.b32.cont [15/16] %v7363, 128
        %7748 = vxpose.xlu0.b32.end [16/16] %v7380, 128
        %v7749 = vpop.trf.xlu0
        %v7750 = vpop.trf.xlu0
        %v7751 = vpop.trf.xlu0
        %v7752 = vpop.trf.xlu0
        %v7753 = vpop.trf.xlu0
        %v7754 = vpop.trf.xlu0
        %v7755 = vpop.trf.xlu0
        %v7756 = vpop.trf.xlu0
        %v7757 = vpop.trf.xlu0
        %v7758 = vpop.trf.xlu0
        %v7759 = vpop.trf.xlu0
        %v7760 = vpop.trf.xlu0
        %v7761 = vpop.trf.xlu0
        %v7762 = vpop.trf.xlu0
        %v7763 = vpop.trf.xlu0
        %v7764 = vpop.trf.xlu0
        %v7773 = vcombine.low %v7525, %v7557
        %v7774 = vcombine.low %v7589, %v7621
        %v7775 = vcombine.low %v7653, %v7685
        %v7776 = vcombine.low %v7717, %v7749
        %7781 = vst [vmem:[%s174] sm:$0xff] %v7773
        %7782 = vst [vmem:[%s174 + $0x8] sm:$0xff] %v7774
        %7783 = vst [vmem:[%s174 + $0x10] sm:$0xff] %v7775
        %7784 = vst [vmem:[%s174 + $0x18] sm:$0xff] %v7776
        %s7785 = sand.u32 %s75, 1
        %s7786 = scalar_lea.sflag [#allocation5], %s7785
        %s7787 = sand.u32 %s75, 1
        %s7788 = smul.addr %s7787, 32
        %s7789 = scalar_lea.vmem [#allocation8], %s7788
        // Predicated region
        $region37: #{tpu_custom_call.1} parent=27 // pred_check
          %p7790 = pneg %p85
        $region38: #{tpu_custom_call.1} parent=27 // pred_check_branch
          %7792 = sbr.rel (%p7790) target = $region40
        $region39: #{tpu_custom_call.1} parent=27 // pred_region
          %s7794 = ssub.s32 512, 512
          %7795 = vsyncadd %s7786, %s7794
          %s7796 = smul.addr %s20, 8
          %s7797 = smul.addr %s7796, 64
          %s7798 = scalar_lea.hbm %s2, %s7797
          %s7800 = sshll.u32 %s7789, 4
          %s7801 = int_to_ptr.vmem [resolvable:$true] %s7800
          %7803 = dma.vmem_to_hbm [thread:$0]  %s7801, 512, %s7798, %s7786
        $region40: #{tpu_custom_call.1} parent=27 // pred_fallthru
          _
      $region28: #{tpu_custom_call.1} parent=5 // pred_fallthru
        _
      %p7804 = scmp.le.s32.totalorder 2, %s15
      // Predicated region
      $region41: #{tpu_custom_call.1} parent=5 // pred_check
        %p7805 = pneg %p7804
      $region42: #{tpu_custom_call.1} parent=5 // pred_check_branch
        %7807 = sbr.rel (%p7805) target = $region44
      $region43: #{tpu_custom_call.1} parent=5 // pred_region
        %s7808 = ssub.s32 %s15, 2
        // Predicated region
        $region45: #{tpu_custom_call.1} parent=43 // pred_check
          %p7809 = pneg %p91
        $region46: #{tpu_custom_call.1} parent=43 // pred_check_branch
          %7811 = sbr.rel (%p7809) target = $region48
        $region47: #{tpu_custom_call.1} parent=43 // pred_region
          %s7812 = sand.u32 %s76, 1
          %s7813 = scalar_lea.sflag [#allocation5], %s7812
          %s7814 = sand.u32 %s76, 1
          %s7815 = smul.addr %s7814, 32
          %s7816 = scalar_lea.vmem [#allocation8], %s7815
          %7817 = dma.done %s7813, 512
        $region48: #{tpu_custom_call.1} parent=43 // pred_fallthru
          _
      $region44: #{tpu_custom_call.1} parent=5 // pred_fallthru
        _
    $region6: #{tpu_custom_call.1} parent=1 // loop_footer
      %s19 = sadd.s32 1, %s15
    $region7: #{tpu_custom_call.1} parent=1 // loop_footer_branch
      %14 = sbr.rel target = $region3
    $region8: #{tpu_custom_call.1} parent=1 // loop_exit
      _
    %7818 = vsyncpa [#allocation4], 1
    %s7819 = scalar_lea.sflag [#allocation4], 1
    %7820 = vsyncpa %s7819, 1
    %7821 = vsyncpa [#allocation7], 1
    %7822 = vsyncpa [#allocation5], 1
    %s7823 = scalar_lea.sflag [#allocation5], 1
    %7824 = vsyncpa %s7823, 1

</llo_original>
